<compile_context>
chip_gen: v7x
topology: tpu7x:2x2x1
jax: 0.10.0
libtpu: 0.0.40
codegen_flags: <defaults>
</compile_context>

<pallas_src>
import functools

import jax
import jax.numpy as jnp
from jax import lax
from jax.experimental import pallas as pl
from jax.experimental.pallas import tpu as pltpu


def _round_up(x, m):
    return (x + m - 1) // m * m


def _cdiv(a, b):
    return (a + b - 1) // b


def _vmem_capacity_bytes():
    """Per-TensorCore VMEM capacity; conservative fallback = v7x's 64 MiB."""
    try:
        return int(pltpu.get_tpu_info().vmem_capacity_bytes)
    except Exception:  # non-TPU trace / older API
        return 64 * 1024 * 1024


def _lifrnn_kernel(ff_ref, wh_ref, out_ref, u_sc, h_sc, *,
                   tb, t_valid, decay, threshold, only_last, unroll):
    """One (batch-block, time-block) grid step of the LIF recurrence.

    ff_ref : (tb, Bb, Hp) f32   pre-activations x_t @ Wx^T + bias
    wh_ref : (Hp, Hp)     cdt   recurrent weight (pre-transposed, zero-padded)
    out_ref: (tb, Bb, Hp) / (Bb, Hp)   spikes
    u_sc   : (Bb, Hp) f32       membrane potential (persists across t blocks)
    h_sc   : (Bb, Hp) cdt       previous spikes, already in the matmul dtype
    """
    t_blk = pl.program_id(1)

    # layer.reset() before the first time step of each batch block.
    @pl.when(t_blk == 0)
    def _():
        u_sc[...] = jnp.zeros_like(u_sc)
        h_sc[...] = jnp.zeros_like(h_sc)

    decay_f = jnp.float32(decay)
    thr = jnp.float32(threshold)

    def step(i, carry):
        u = u_sc[...]                                   # (Bb, Hp) f32
        h = h_sc[...]                                   # (Bb, Hp) compute dtype, 0/1
        ff = ff_ref[i]                                  # (Bb, Hp) f32

        # Only the recurrent matmul remains on the serial critical path.
        rec = jnp.dot(h, wh_ref[...], preferred_element_type=jnp.float32)

        # Leak: decay*u*(1-h) == where(h>0, 0, decay*u) since h is exactly 0/1.
        u = ff + rec + jnp.where(h > 0, 0.0, decay_f * u)
        spike = u > thr                                 # hard Heaviside at threshold
        h_new = spike.astype(h_sc.dtype)                # matmul-dtype spikes, no extra cast

        u_sc[...] = u
        h_sc[...] = h_new

        if only_last:
            # Gate on the true last step so padded time steps never overwrite it.
            @pl.when(t_blk * tb + i == t_valid - 1)
            def _():
                out_ref[...] = spike.astype(out_ref.dtype)
        else:
            out_ref[i] = spike.astype(out_ref.dtype)
        return carry

    # Capped unroll bounds live ranges (fully-unrolled Python loops do not).
    lax.fori_loop(0, tb, step, 0, unroll=unroll)


def lifrnn_forward(data, w, b, *, hidden_size, decay=0.3, threshold=0.5,
                   only_last=False, compute_dtype=jnp.bfloat16,
                   out_dtype=jnp.float32, time_block=32, batch_block=128,
                   max_unroll=8):
    """data: (B, inputSize, T). w: (H, I+H) (nn.Linear weight). b: (H,).

    Returns (B, H, T) if only_last=False else (B, H), matching LIFRNN.forward.
    compute_dtype=float32 reproduces the reference bit-for-bit; the default
    bf16 path feeds the MXU natively (spikes are exact 0/1 in bf16, only
    near-threshold pre-activations can differ).
    """
    B, I, T = data.shape
    H = hidden_size
    compute_dtype = jnp.dtype(compute_dtype)
    out_dtype = jnp.dtype(out_dtype)

    # Hardware-friendly padding: lanes (128) for H, sublanes for B.
    sub = 8 * (4 // compute_dtype.itemsize)             # 8 for f32, 16 for bf16
    Hp = _round_up(H, 128)

    # Batch blocking (leading "parallel" grid axis -> megacore shards it).
    Bp0 = _round_up(B, sub)
    bb_cap = max(sub, _round_up(min(batch_block, Bp0), sub))
    n_b = _cdiv(Bp0, bb_cap)
    Bb = _round_up(_cdiv(Bp0, n_b), sub)
    Bp = Bb * n_b

    # --- Hoisted feedforward GEMM (recurrence-independent): one big MXU op. ---
    wxT = w[:, :I].T.astype(compute_dtype)                          # (I, H)
    x_tm = jnp.transpose(data, (2, 0, 1)).reshape(T * B, I)         # (T*B, I)
    ff = jnp.dot(x_tm.astype(compute_dtype), wxT,
                 preferred_element_type=jnp.float32)                # (T*B, H) f32
    ff = ff + b.astype(jnp.float32)[None, :]                        # fold bias in
    ff = ff.reshape(T, B, H)

    # Pre-transposed, zero-padded recurrent weight (padded units stay inert).
    wh = jnp.zeros((Hp, Hp), compute_dtype).at[:H, :H].set(
        w[:, I:].T.astype(compute_dtype))

    # --- Per-generation VMEM budget -> time-block size tb. ---
    cap = _vmem_capacity_bytes()
    budget = int(cap * 0.8)                             # ~20% headroom
    wh_bytes = Hp * Hp * compute_dtype.itemsize         # single-buffered copy
    state_bytes = Bb * Hp * (4 + compute_dtype.itemsize)
    fixed = wh_bytes + state_bytes
    per_step = 2 * Bb * Hp * 4                          # ff block (f32), double-buffered
    if only_last:
        fixed += 2 * Bb * Hp * out_dtype.itemsize       # resident (Bb,Hp) output
    else:
        per_step += 2 * Bb * Hp * out_dtype.itemsize    # (tb,Bb,Hp) output slab
    tb_cap = max(1, (budget - fixed) // per_step) if budget > fixed else 1
    tb = int(min(time_block, T, tb_cap))
    n_t = _cdiv(T, tb)
    tb = _cdiv(T, n_t)                                  # minimal padding (< n_t steps)
    Tp = tb * n_t

    # Padded, time-major pre-activations: (Tp, Bp, Hp) f32. Zero padding keeps
    # padded hidden units / batch rows inert (u stays 0, never spikes).
    ff = jnp.pad(ff, ((0, Tp - T), (0, Bp - B), (0, Hp - H)))

    need = fixed + tb * per_step
    vmem_limit = min(budget, max(int(need * 1.5), 16 * 1024 * 1024))

    if only_last:
        out_shape = jax.ShapeDtypeStruct((Bp, Hp), out_dtype)
        out_spec = pl.BlockSpec((Bb, Hp), lambda bi, ti: (bi, 0))
    else:
        out_shape = jax.ShapeDtypeStruct((Tp, Bp, Hp), out_dtype)
        out_spec = pl.BlockSpec((tb, Bb, Hp), lambda bi, ti: (ti, bi, 0))

    ff_spec = pl.BlockSpec((tb, Bb, Hp), lambda bi, ti: (ti, bi, 0))

    kernel = functools.partial(
        _lifrnn_kernel, tb=tb, t_valid=T, decay=float(decay),
        threshold=float(threshold), only_last=only_last,
        unroll=int(min(tb, max_unroll)))

    def _run(wh_spec):
        return pl.pallas_call(
            kernel,
            out_shape=out_shape,
            grid_spec=pltpu.PrefetchScalarGridSpec(
                num_scalar_prefetch=0,
                grid=(n_b, n_t),
                in_specs=[ff_spec, wh_spec],
                out_specs=out_spec,
                scratch_shapes=[
                    pltpu.VMEM((Bb, Hp), jnp.float32),   # membrane potential u
                    pltpu.VMEM((Bb, Hp), compute_dtype),  # previous spikes h
                ],
            ),
            compiler_params=pltpu.CompilerParams(
                # batch blocks independent -> parallel (v7x megacore);
                # time is the serial recurrence -> arbitrary.
                dimension_semantics=("parallel", "arbitrary"),
                vmem_limit_bytes=vmem_limit,
            ),
        )(ff, wh)

    try:
        # Wh has a constant index_map and is DMA'd exactly once -> single-buffer
        # it to halve its VMEM footprint (decisive on v7x's 64 MiB).
        out_padded = _run(pl.BlockSpec((Hp, Hp), lambda bi, ti: (0, 0),
                                       pipeline_mode=pl.Buffered(1)))
    except Exception:
        # Fallback for jax versions without pipeline_mode support.
        out_padded = _run(pl.BlockSpec((Hp, Hp), lambda bi, ti: (0, 0)))

    if only_last:
        return out_padded[:B, :H]                                   # (B, H)
    out = out_padded[:T, :B, :H]                                    # (T, B, H)
    # TODO(synk): consumers that accept time-major / bf16 output can skip this
    #             relayout and halve the extra HBM read+write.
    return jnp.transpose(out, (1, 2, 0))                            # (B, H, T)


def lifrnn_reference(data, w, b, *, hidden_size, decay=0.3, threshold=0.5):
    """Pure-JAX reference of the same recurrence (for correctness check)."""
    B, I, T = data.shape
    H = hidden_size
    wxT, whT = w[:, :I].T, w[:, I:].T

    def step(carry, x_t):
        u_prev, h_prev = carry
        u = (jnp.dot(x_t, wxT, preferred_element_type=jnp.float32)
             + jnp.dot(h_prev, whT, preferred_element_type=jnp.float32)
             + b[None, :] + decay * u_prev * (1.0 - h_prev))
        h = (u > threshold).astype(jnp.float32)
        return (u, h), h

    xs = jnp.transpose(data, (2, 0, 1))            # (T, B, I)
    init = (jnp.zeros((B, H), jnp.float32), jnp.zeros((B, H), jnp.float32))
    _, hs = jax.lax.scan(step, init, xs)
    return jnp.transpose(hs, (1, 2, 0))            # (B, H, T)


if __name__ == "__main__":
    B, I, H, T = 2, 32, 32, 8
    decay = 0.3

    key = jax.random.PRNGKey(0)
    k_data, k_w, k_b = jax.random.split(key, 3)

    # data: (B, inputSize, T), as consumed by LIFRNN.forward (time is last axis).
    data = jax.random.normal(k_data, (B, I, T), dtype=jnp.float32)

    # nn.Linear(inputSize + hiddenSize, hiddenSize) init: U(-1/sqrt(fan_in), +)
    fan_in = I + H
    bound = 1.0 / (fan_in ** 0.5)
    w = jax.random.uniform(k_w, (H, I + H), jnp.float32, -bound, bound)
    b = jax.random.uniform(k_b, (H,), jnp.float32, -bound, bound)

    ref = lifrnn_reference(data, w, b, hidden_size=H, decay=decay)

    # f32 path: matches the pure-JAX reference.
    out = jax.block_until_ready(
        lifrnn_forward(data, w, b, hidden_size=H, decay=decay,
                       compute_dtype=jnp.float32))
    assert out.shape == (B, H, T), out.shape
    assert jnp.allclose(out, ref, atol=1e-5), "mismatch vs reference (f32)"

    # Awkward T (11) -> padded time blocks (tb=4, Tp=12) + partial fori unroll.
    data11 = jax.random.normal(k_data, (B, I, 11), dtype=jnp.float32)
    ref11 = lifrnn_reference(data11, w, b, hidden_size=H, decay=decay)
    out11 = jax.block_until_ready(
        lifrnn_forward(data11, w, b, hidden_size=H, decay=decay,
                       compute_dtype=jnp.float32, time_block=4, max_unroll=2))
    assert out11.shape == (B, H, 11), out11.shape
    assert jnp.allclose(out11, ref11, atol=1e-5), "mismatch (padded T)"

    # onlyLast=True with padded T: gated final write, no (T,B,H) materialization.
    last = jax.block_until_ready(
        lifrnn_forward(data11, w, b, hidden_size=H, decay=decay,
                       compute_dtype=jnp.float32, only_last=True, time_block=4))
    assert last.shape == (B, H), last.shape
    assert jnp.allclose(last, ref11[:, :, -1], atol=1e-5), "mismatch (only_last)"

    # Default bf16 MXU path with bf16 spike output (0/1 is exact in bf16).
    out_bf16 = jax.block_until_ready(
        lifrnn_forward(data, w, b, hidden_size=H, decay=decay,
                       out_dtype=jnp.bfloat16))
    assert out_bf16.shape == (B, H, T), out_bf16.shape
    vals = out_bf16.astype(jnp.float32)
    assert bool(jnp.all((vals == 0.0) | (vals == 1.0))), "non-spike output"

    print("KERNEL_OK")
</pallas_src>

<mosaic_0001>
module attributes {stable_mosaic.version = 11 : i64} {
  func.func @_lifrnn_kernel(%arg0: i32, %arg1: i32, %arg2: memref<8x8x128xf32, #tpu.memory_space<vmem>>, %arg3: memref<128x128xf32, #tpu.memory_space<vmem>>, %arg4: memref<8x8x128xf32, #tpu.memory_space<vmem>>, %arg5: memref<8x128xf32, #tpu.memory_space<vmem>>, %arg6: memref<8x128xf32, #tpu.memory_space<vmem>>) attributes {dimension_semantics = [#tpu.dimension_semantics<parallel>, #tpu.dimension_semantics<arbitrary>], iteration_bounds = array<i64: 1, 1>, scalar_prefetch = 0 : i64, scratch_operands = 2 : i64, tpu.core_type = #tpu.core_type<tc>, window_params = [{transform_indices = @transform_0, window_bounds = array<i64: 8, 8, 128>}, {pipeline_mode = #tpu.pipeline_mode<synchronous>, transform_indices = @transform_1, window_bounds = array<i64: 128, 128>}, {transform_indices = @transform_2, window_bounds = array<i64: 8, 8, 128>}]} {
    %c0_i32 = arith.constant 0 : i32
    %0 = arith.cmpi eq, %arg1, %c0_i32 : i32
    %1 = arith.extui %0 : i1 to i32
    %c0_i32_0 = arith.constant 0 : i32
    %2 = arith.cmpi ne, %1, %c0_i32_0 : i32
    scf.if %2 {
      %cst_138 = arith.constant 0.000000e+00 : f32
      %219 = vector.broadcast %cst_138 : f32 to vector<8x128xf32>
      %c0_139 = arith.constant 0 : index
      %c0_140 = arith.constant 0 : index
      %220 = vector.load %arg5[%c0_139, %c0_140] : memref<8x128xf32, #tpu.memory_space<vmem>>, vector<8x128xf32>
      tpu.vector_store %arg5[%c0_139, %c0_140], %219 {strides = array<i32>} : memref<8x128xf32, #tpu.memory_space<vmem>>, vector<8x128xf32>,
      %cst_141 = arith.constant 0.000000e+00 : f32
      %221 = vector.broadcast %cst_141 : f32 to vector<8x128xf32>
      %c0_142 = arith.constant 0 : index
      %c0_143 = arith.constant 0 : index
      %222 = vector.load %arg6[%c0_142, %c0_143] : memref<8x128xf32, #tpu.memory_space<vmem>>, vector<8x128xf32>
      tpu.vector_store %arg6[%c0_142, %c0_143], %221 {strides = array<i32>} : memref<8x128xf32, #tpu.memory_space<vmem>>, vector<8x128xf32>,
    } else {
    }
    %cst = arith.constant 3.000000e-01 : f32
    %cst_1 = arith.constant 5.000000e-01 : f32
    %c0_i32_2 = arith.constant 0 : i32
    %c0 = arith.constant 0 : index
    %c0_3 = arith.constant 0 : index
    %3 = vector.load %arg5[%c0, %c0_3] : memref<8x128xf32, #tpu.memory_space<vmem>>, vector<8x128xf32>
    %c0_4 = arith.constant 0 : index
    %c0_5 = arith.constant 0 : index
    %4 = vector.load %arg6[%c0_4, %c0_5] : memref<8x128xf32, #tpu.memory_space<vmem>>, vector<8x128xf32>
    %5 = arith.index_cast %c0_i32_2 : i32 to index
    %c0_6 = arith.constant 0 : index
    %c0_7 = arith.constant 0 : index
    %6 = vector.load %arg2[%5, %c0_6, %c0_7] : memref<8x8x128xf32, #tpu.memory_space<vmem>>, vector<1x8x128xf32>
    %7 = vector.shape_cast %6 : vector<1x8x128xf32> to vector<8x128xf32>
    %c0_8 = arith.constant 0 : index
    %c0_9 = arith.constant 0 : index
    %8 = vector.load %arg3[%c0_8, %c0_9] : memref<128x128xf32, #tpu.memory_space<vmem>>, vector<128x128xf32>
    %cst_10 = arith.constant dense<0.000000e+00> : vector<8x128xf32>
    %9 = tpu.matmul %4, %8, %cst_10 {dimension_numbers = #tpu.dot_dimension_numbers<[1], [0], [0], [1], [0, 0, 1, 1], [], []>} : vector<8x128xf32>, vector<128x128xf32>, vector<8x128xf32> -> vector<8x128xf32>
    %10 = arith.addf %7, %9 : vector<8x128xf32>
    %cst_11 = arith.constant 0.000000e+00 : f32
    %11 = vector.broadcast %cst_11 : f32 to vector<8x128xf32>
    %12 = arith.cmpf ogt, %4, %11 : vector<8x128xf32>
    %13 = vector.broadcast %cst : f32 to vector<8x128xf32>
    %14 = arith.mulf %13, %3 : vector<8x128xf32>
    %cst_12 = arith.constant 0.000000e+00 : f32
    %15 = vector.broadcast %cst_12 : f32 to vector<8x128xf32>
    %16 = arith.select %12, %15, %14 : vector<8x128xi1>, vector<8x128xf32>
    %17 = arith.addf %10, %16 : vector<8x128xf32>
    %18 = vector.broadcast %cst_1 : f32 to vector<8x128xf32>
    %19 = arith.cmpf ogt, %17, %18 : vector<8x128xf32>
    %20 = arith.extui %19 : vector<8x128xi1> to vector<8x128xi32>
    %21 = arith.sitofp %20 : vector<8x128xi32> to vector<8x128xf32>
    %c0_13 = arith.constant 0 : index
    %c0_14 = arith.constant 0 : index
    %22 = vector.load %arg5[%c0_13, %c0_14] : memref<8x128xf32, #tpu.memory_space<vmem>>, vector<8x128xf32>
    tpu.vector_store %arg5[%c0_13, %c0_14], %17 {strides = array<i32>} : memref<8x128xf32, #tpu.memory_space<vmem>>, vector<8x128xf32>,
    %c0_15 = arith.constant 0 : index
    %c0_16 = arith.constant 0 : index
    %23 = vector.load %arg6[%c0_15, %c0_16] : memref<8x128xf32, #tpu.memory_space<vmem>>, vector<8x128xf32>
    tpu.vector_store %arg6[%c0_15, %c0_16], %21 {strides = array<i32>} : memref<8x128xf32, #tpu.memory_space<vmem>>, vector<8x128xf32>,
    %24 = arith.extui %19 : vector<8x128xi1> to vector<8x128xi32>
    %25 = arith.sitofp %24 : vector<8x128xi32> to vector<8x128xf32>
    %26 = arith.index_cast %c0_i32_2 : i32 to index
    %c0_17 = arith.constant 0 : index
    %c0_18 = arith.constant 0 : index
    %27 = vector.load %arg4[%26, %c0_17, %c0_18] : memref<8x8x128xf32, #tpu.memory_space<vmem>>, vector<1x8x128xf32>
    %28 = vector.shape_cast %27 : vector<1x8x128xf32> to vector<8x128xf32>
    %29 = vector.shape_cast %25 : vector<8x128xf32> to vector<1x8x128xf32>
    tpu.vector_store %arg4[%26, %c0_17, %c0_18], %29 {strides = array<i32>} : memref<8x8x128xf32, #tpu.memory_space<vmem>>, vector<1x8x128xf32>,
    %c1_i32 = arith.constant 1 : i32
    %c0_19 = arith.constant 0 : index
    %c0_20 = arith.constant 0 : index
    %30 = vector.load %arg5[%c0_19, %c0_20] : memref<8x128xf32, #tpu.memory_space<vmem>>, vector<8x128xf32>
    %c0_21 = arith.constant 0 : index
    %c0_22 = arith.constant 0 : index
    %31 = vector.load %arg6[%c0_21, %c0_22] : memref<8x128xf32, #tpu.memory_space<vmem>>, vector<8x128xf32>
    %32 = arith.index_cast %c1_i32 : i32 to index
    %c0_23 = arith.constant 0 : index
    %c0_24 = arith.constant 0 : index
    %33 = vector.load %arg2[%32, %c0_23, %c0_24] : memref<8x8x128xf32, #tpu.memory_space<vmem>>, vector<1x8x128xf32>
    %34 = vector.shape_cast %33 : vector<1x8x128xf32> to vector<8x128xf32>
    %c0_25 = arith.constant 0 : index
    %c0_26 = arith.constant 0 : index
    %35 = vector.load %arg3[%c0_25, %c0_26] : memref<128x128xf32, #tpu.memory_space<vmem>>, vector<128x128xf32>
    %cst_27 = arith.constant dense<0.000000e+00> : vector<8x128xf32>
    %36 = tpu.matmul %31, %35, %cst_27 {dimension_numbers = #tpu.dot_dimension_numbers<[1], [0], [0], [1], [0, 0, 1, 1], [], []>} : vector<8x128xf32>, vector<128x128xf32>, vector<8x128xf32> -> vector<8x128xf32>
    %37 = arith.addf %34, %36 : vector<8x128xf32>
    %cst_28 = arith.constant 0.000000e+00 : f32
    %38 = vector.broadcast %cst_28 : f32 to vector<8x128xf32>
    %39 = arith.cmpf ogt, %31, %38 : vector<8x128xf32>
    %40 = vector.broadcast %cst : f32 to vector<8x128xf32>
    %41 = arith.mulf %40, %30 : vector<8x128xf32>
    %cst_29 = arith.constant 0.000000e+00 : f32
    %42 = vector.broadcast %cst_29 : f32 to vector<8x128xf32>
    %43 = arith.select %39, %42, %41 : vector<8x128xi1>, vector<8x128xf32>
    %44 = arith.addf %37, %43 : vector<8x128xf32>
    %45 = vector.broadcast %cst_1 : f32 to vector<8x128xf32>
    %46 = arith.cmpf ogt, %44, %45 : vector<8x128xf32>
    %47 = arith.extui %46 : vector<8x128xi1> to vector<8x128xi32>
    %48 = arith.sitofp %47 : vector<8x128xi32> to vector<8x128xf32>
    %c0_30 = arith.constant 0 : index
    %c0_31 = arith.constant 0 : index
    %49 = vector.load %arg5[%c0_30, %c0_31] : memref<8x128xf32, #tpu.memory_space<vmem>>, vector<8x128xf32>
    tpu.vector_store %arg5[%c0_30, %c0_31], %44 {strides = array<i32>} : memref<8x128xf32, #tpu.memory_space<vmem>>, vector<8x128xf32>,
    %c0_32 = arith.constant 0 : index
    %c0_33 = arith.constant 0 : index
    %50 = vector.load %arg6[%c0_32, %c0_33] : memref<8x128xf32, #tpu.memory_space<vmem>>, vector<8x128xf32>
    tpu.vector_store %arg6[%c0_32, %c0_33], %48 {strides = array<i32>} : memref<8x128xf32, #tpu.memory_space<vmem>>, vector<8x128xf32>,
    %51 = arith.extui %46 : vector<8x128xi1> to vector<8x128xi32>
    %52 = arith.sitofp %51 : vector<8x128xi32> to vector<8x128xf32>
    %53 = arith.index_cast %c1_i32 : i32 to index
    %c0_34 = arith.constant 0 : index
    %c0_35 = arith.constant 0 : index
    %54 = vector.load %arg4[%53, %c0_34, %c0_35] : memref<8x8x128xf32, #tpu.memory_space<vmem>>, vector<1x8x128xf32>
    %55 = vector.shape_cast %54 : vector<1x8x128xf32> to vector<8x128xf32>
    %56 = vector.shape_cast %52 : vector<8x128xf32> to vector<1x8x128xf32>
    tpu.vector_store %arg4[%53, %c0_34, %c0_35], %56 {strides = array<i32>} : memref<8x8x128xf32, #tpu.memory_space<vmem>>, vector<1x8x128xf32>,
    %c2_i32 = arith.constant 2 : i32
    %c0_36 = arith.constant 0 : index
    %c0_37 = arith.constant 0 : index
    %57 = vector.load %arg5[%c0_36, %c0_37] : memref<8x128xf32, #tpu.memory_space<vmem>>, vector<8x128xf32>
    %c0_38 = arith.constant 0 : index
    %c0_39 = arith.constant 0 : index
    %58 = vector.load %arg6[%c0_38, %c0_39] : memref<8x128xf32, #tpu.memory_space<vmem>>, vector<8x128xf32>
    %59 = arith.index_cast %c2_i32 : i32 to index
    %c0_40 = arith.constant 0 : index
    %c0_41 = arith.constant 0 : index
    %60 = vector.load %arg2[%59, %c0_40, %c0_41] : memref<8x8x128xf32, #tpu.memory_space<vmem>>, vector<1x8x128xf32>
    %61 = vector.shape_cast %60 : vector<1x8x128xf32> to vector<8x128xf32>
    %c0_42 = arith.constant 0 : index
    %c0_43 = arith.constant 0 : index
    %62 = vector.load %arg3[%c0_42, %c0_43] : memref<128x128xf32, #tpu.memory_space<vmem>>, vector<128x128xf32>
    %cst_44 = arith.constant dense<0.000000e+00> : vector<8x128xf32>
    %63 = tpu.matmul %58, %62, %cst_44 {dimension_numbers = #tpu.dot_dimension_numbers<[1], [0], [0], [1], [0, 0, 1, 1], [], []>} : vector<8x128xf32>, vector<128x128xf32>, vector<8x128xf32> -> vector<8x128xf32>
    %64 = arith.addf %61, %63 : vector<8x128xf32>
    %cst_45 = arith.constant 0.000000e+00 : f32
    %65 = vector.broadcast %cst_45 : f32 to vector<8x128xf32>
    %66 = arith.cmpf ogt, %58, %65 : vector<8x128xf32>
    %67 = vector.broadcast %cst : f32 to vector<8x128xf32>
    %68 = arith.mulf %67, %57 : vector<8x128xf32>
    %cst_46 = arith.constant 0.000000e+00 : f32
    %69 = vector.broadcast %cst_46 : f32 to vector<8x128xf32>
    %70 = arith.select %66, %69, %68 : vector<8x128xi1>, vector<8x128xf32>
    %71 = arith.addf %64, %70 : vector<8x128xf32>
    %72 = vector.broadcast %cst_1 : f32 to vector<8x128xf32>
    %73 = arith.cmpf ogt, %71, %72 : vector<8x128xf32>
    %74 = arith.extui %73 : vector<8x128xi1> to vector<8x128xi32>
    %75 = arith.sitofp %74 : vector<8x128xi32> to vector<8x128xf32>
    %c0_47 = arith.constant 0 : index
    %c0_48 = arith.constant 0 : index
    %76 = vector.load %arg5[%c0_47, %c0_48] : memref<8x128xf32, #tpu.memory_space<vmem>>, vector<8x128xf32>
    tpu.vector_store %arg5[%c0_47, %c0_48], %71 {strides = array<i32>} : memref<8x128xf32, #tpu.memory_space<vmem>>, vector<8x128xf32>,
    %c0_49 = arith.constant 0 : index
    %c0_50 = arith.constant 0 : index
    %77 = vector.load %arg6[%c0_49, %c0_50] : memref<8x128xf32, #tpu.memory_space<vmem>>, vector<8x128xf32>
    tpu.vector_store %arg6[%c0_49, %c0_50], %75 {strides = array<i32>} : memref<8x128xf32, #tpu.memory_space<vmem>>, vector<8x128xf32>,
    %78 = arith.extui %73 : vector<8x128xi1> to vector<8x128xi32>
    %79 = arith.sitofp %78 : vector<8x128xi32> to vector<8x128xf32>
    %80 = arith.index_cast %c2_i32 : i32 to index
    %c0_51 = arith.constant 0 : index
    %c0_52 = arith.constant 0 : index
    %81 = vector.load %arg4[%80, %c0_51, %c0_52] : memref<8x8x128xf32, #tpu.memory_space<vmem>>, vector<1x8x128xf32>
    %82 = vector.shape_cast %81 : vector<1x8x128xf32> to vector<8x128xf32>
    %83 = vector.shape_cast %79 : vector<8x128xf32> to vector<1x8x128xf32>
    tpu.vector_store %arg4[%80, %c0_51, %c0_52], %83 {strides = array<i32>} : memref<8x8x128xf32, #tpu.memory_space<vmem>>, vector<1x8x128xf32>,
    %c3_i32 = arith.constant 3 : i32
    %c0_53 = arith.constant 0 : index
    %c0_54 = arith.constant 0 : index
    %84 = vector.load %arg5[%c0_53, %c0_54] : memref<8x128xf32, #tpu.memory_space<vmem>>, vector<8x128xf32>
    %c0_55 = arith.constant 0 : index
    %c0_56 = arith.constant 0 : index
    %85 = vector.load %arg6[%c0_55, %c0_56] : memref<8x128xf32, #tpu.memory_space<vmem>>, vector<8x128xf32>
    %86 = arith.index_cast %c3_i32 : i32 to index
    %c0_57 = arith.constant 0 : index
    %c0_58 = arith.constant 0 : index
    %87 = vector.load %arg2[%86, %c0_57, %c0_58] : memref<8x8x128xf32, #tpu.memory_space<vmem>>, vector<1x8x128xf32>
    %88 = vector.shape_cast %87 : vector<1x8x128xf32> to vector<8x128xf32>
    %c0_59 = arith.constant 0 : index
    %c0_60 = arith.constant 0 : index
    %89 = vector.load %arg3[%c0_59, %c0_60] : memref<128x128xf32, #tpu.memory_space<vmem>>, vector<128x128xf32>
    %cst_61 = arith.constant dense<0.000000e+00> : vector<8x128xf32>
    %90 = tpu.matmul %85, %89, %cst_61 {dimension_numbers = #tpu.dot_dimension_numbers<[1], [0], [0], [1], [0, 0, 1, 1], [], []>} : vector<8x128xf32>, vector<128x128xf32>, vector<8x128xf32> -> vector<8x128xf32>
    %91 = arith.addf %88, %90 : vector<8x128xf32>
    %cst_62 = arith.constant 0.000000e+00 : f32
    %92 = vector.broadcast %cst_62 : f32 to vector<8x128xf32>
    %93 = arith.cmpf ogt, %85, %92 : vector<8x128xf32>
    %94 = vector.broadcast %cst : f32 to vector<8x128xf32>
    %95 = arith.mulf %94, %84 : vector<8x128xf32>
    %cst_63 = arith.constant 0.000000e+00 : f32
    %96 = vector.broadcast %cst_63 : f32 to vector<8x128xf32>
    %97 = arith.select %93, %96, %95 : vector<8x128xi1>, vector<8x128xf32>
    %98 = arith.addf %91, %97 : vector<8x128xf32>
    %99 = vector.broadcast %cst_1 : f32 to vector<8x128xf32>
    %100 = arith.cmpf ogt, %98, %99 : vector<8x128xf32>
    %101 = arith.extui %100 : vector<8x128xi1> to vector<8x128xi32>
    %102 = arith.sitofp %101 : vector<8x128xi32> to vector<8x128xf32>
    %c0_64 = arith.constant 0 : index
    %c0_65 = arith.constant 0 : index
    %103 = vector.load %arg5[%c0_64, %c0_65] : memref<8x128xf32, #tpu.memory_space<vmem>>, vector<8x128xf32>
    tpu.vector_store %arg5[%c0_64, %c0_65], %98 {strides = array<i32>} : memref<8x128xf32, #tpu.memory_space<vmem>>, vector<8x128xf32>,
    %c0_66 = arith.constant 0 : index
    %c0_67 = arith.constant 0 : index
    %104 = vector.load %arg6[%c0_66, %c0_67] : memref<8x128xf32, #tpu.memory_space<vmem>>, vector<8x128xf32>
    tpu.vector_store %arg6[%c0_66, %c0_67], %102 {strides = array<i32>} : memref<8x128xf32, #tpu.memory_space<vmem>>, vector<8x128xf32>,
    %105 = arith.extui %100 : vector<8x128xi1> to vector<8x128xi32>
    %106 = arith.sitofp %105 : vector<8x128xi32> to vector<8x128xf32>
    %107 = arith.index_cast %c3_i32 : i32 to index
    %c0_68 = arith.constant 0 : index
    %c0_69 = arith.constant 0 : index
    %108 = vector.load %arg4[%107, %c0_68, %c0_69] : memref<8x8x128xf32, #tpu.memory_space<vmem>>, vector<1x8x128xf32>
    %109 = vector.shape_cast %108 : vector<1x8x128xf32> to vector<8x128xf32>
    %110 = vector.shape_cast %106 : vector<8x128xf32> to vector<1x8x128xf32>
    tpu.vector_store %arg4[%107, %c0_68, %c0_69], %110 {strides = array<i32>} : memref<8x8x128xf32, #tpu.memory_space<vmem>>, vector<1x8x128xf32>,
    %c4_i32 = arith.constant 4 : i32
    %c0_70 = arith.constant 0 : index
    %c0_71 = arith.constant 0 : index
    %111 = vector.load %arg5[%c0_70, %c0_71] : memref<8x128xf32, #tpu.memory_space<vmem>>, vector<8x128xf32>
    %c0_72 = arith.constant 0 : index
    %c0_73 = arith.constant 0 : index
    %112 = vector.load %arg6[%c0_72, %c0_73] : memref<8x128xf32, #tpu.memory_space<vmem>>, vector<8x128xf32>
    %113 = arith.index_cast %c4_i32 : i32 to index
    %c0_74 = arith.constant 0 : index
    %c0_75 = arith.constant 0 : index
    %114 = vector.load %arg2[%113, %c0_74, %c0_75] : memref<8x8x128xf32, #tpu.memory_space<vmem>>, vector<1x8x128xf32>
    %115 = vector.shape_cast %114 : vector<1x8x128xf32> to vector<8x128xf32>
    %c0_76 = arith.constant 0 : index
    %c0_77 = arith.constant 0 : index
    %116 = vector.load %arg3[%c0_76, %c0_77] : memref<128x128xf32, #tpu.memory_space<vmem>>, vector<128x128xf32>
    %cst_78 = arith.constant dense<0.000000e+00> : vector<8x128xf32>
    %117 = tpu.matmul %112, %116, %cst_78 {dimension_numbers = #tpu.dot_dimension_numbers<[1], [0], [0], [1], [0, 0, 1, 1], [], []>} : vector<8x128xf32>, vector<128x128xf32>, vector<8x128xf32> -> vector<8x128xf32>
    %118 = arith.addf %115, %117 : vector<8x128xf32>
    %cst_79 = arith.constant 0.000000e+00 : f32
    %119 = vector.broadcast %cst_79 : f32 to vector<8x128xf32>
    %120 = arith.cmpf ogt, %112, %119 : vector<8x128xf32>
    %121 = vector.broadcast %cst : f32 to vector<8x128xf32>
    %122 = arith.mulf %121, %111 : vector<8x128xf32>
    %cst_80 = arith.constant 0.000000e+00 : f32
    %123 = vector.broadcast %cst_80 : f32 to vector<8x128xf32>
    %124 = arith.select %120, %123, %122 : vector<8x128xi1>, vector<8x128xf32>
    %125 = arith.addf %118, %124 : vector<8x128xf32>
    %126 = vector.broadcast %cst_1 : f32 to vector<8x128xf32>
    %127 = arith.cmpf ogt, %125, %126 : vector<8x128xf32>
    %128 = arith.extui %127 : vector<8x128xi1> to vector<8x128xi32>
    %129 = arith.sitofp %128 : vector<8x128xi32> to vector<8x128xf32>
    %c0_81 = arith.constant 0 : index
    %c0_82 = arith.constant 0 : index
    %130 = vector.load %arg5[%c0_81, %c0_82] : memref<8x128xf32, #tpu.memory_space<vmem>>, vector<8x128xf32>
    tpu.vector_store %arg5[%c0_81, %c0_82], %125 {strides = array<i32>} : memref<8x128xf32, #tpu.memory_space<vmem>>, vector<8x128xf32>,
    %c0_83 = arith.constant 0 : index
    %c0_84 = arith.constant 0 : index
    %131 = vector.load %arg6[%c0_83, %c0_84] : memref<8x128xf32, #tpu.memory_space<vmem>>, vector<8x128xf32>
    tpu.vector_store %arg6[%c0_83, %c0_84], %129 {strides = array<i32>} : memref<8x128xf32, #tpu.memory_space<vmem>>, vector<8x128xf32>,
    %132 = arith.extui %127 : vector<8x128xi1> to vector<8x128xi32>
    %133 = arith.sitofp %132 : vector<8x128xi32> to vector<8x128xf32>
    %134 = arith.index_cast %c4_i32 : i32 to index
    %c0_85 = arith.constant 0 : index
    %c0_86 = arith.constant 0 : index
    %135 = vector.load %arg4[%134, %c0_85, %c0_86] : memref<8x8x128xf32, #tpu.memory_space<vmem>>, vector<1x8x128xf32>
    %136 = vector.shape_cast %135 : vector<1x8x128xf32> to vector<8x128xf32>
    %137 = vector.shape_cast %133 : vector<8x128xf32> to vector<1x8x128xf32>
    tpu.vector_store %arg4[%134, %c0_85, %c0_86], %137 {strides = array<i32>} : memref<8x8x128xf32, #tpu.memory_space<vmem>>, vector<1x8x128xf32>,
    %c5_i32 = arith.constant 5 : i32
    %c0_87 = arith.constant 0 : index
    %c0_88 = arith.constant 0 : index
    %138 = vector.load %arg5[%c0_87, %c0_88] : memref<8x128xf32, #tpu.memory_space<vmem>>, vector<8x128xf32>
    %c0_89 = arith.constant 0 : index
    %c0_90 = arith.constant 0 : index
    %139 = vector.load %arg6[%c0_89, %c0_90] : memref<8x128xf32, #tpu.memory_space<vmem>>, vector<8x128xf32>
    %140 = arith.index_cast %c5_i32 : i32 to index
    %c0_91 = arith.constant 0 : index
    %c0_92 = arith.constant 0 : index
    %141 = vector.load %arg2[%140, %c0_91, %c0_92] : memref<8x8x128xf32, #tpu.memory_space<vmem>>, vector<1x8x128xf32>
    %142 = vector.shape_cast %141 : vector<1x8x128xf32> to vector<8x128xf32>
    %c0_93 = arith.constant 0 : index
    %c0_94 = arith.constant 0 : index
    %143 = vector.load %arg3[%c0_93, %c0_94] : memref<128x128xf32, #tpu.memory_space<vmem>>, vector<128x128xf32>
    %cst_95 = arith.constant dense<0.000000e+00> : vector<8x128xf32>
    %144 = tpu.matmul %139, %143, %cst_95 {dimension_numbers = #tpu.dot_dimension_numbers<[1], [0], [0], [1], [0, 0, 1, 1], [], []>} : vector<8x128xf32>, vector<128x128xf32>, vector<8x128xf32> -> vector<8x128xf32>
    %145 = arith.addf %142, %144 : vector<8x128xf32>
    %cst_96 = arith.constant 0.000000e+00 : f32
    %146 = vector.broadcast %cst_96 : f32 to vector<8x128xf32>
    %147 = arith.cmpf ogt, %139, %146 : vector<8x128xf32>
    %148 = vector.broadcast %cst : f32 to vector<8x128xf32>
    %149 = arith.mulf %148, %138 : vector<8x128xf32>
    %cst_97 = arith.constant 0.000000e+00 : f32
    %150 = vector.broadcast %cst_97 : f32 to vector<8x128xf32>
    %151 = arith.select %147, %150, %149 : vector<8x128xi1>, vector<8x128xf32>
    %152 = arith.addf %145, %151 : vector<8x128xf32>
    %153 = vector.broadcast %cst_1 : f32 to vector<8x128xf32>
    %154 = arith.cmpf ogt, %152, %153 : vector<8x128xf32>
    %155 = arith.extui %154 : vector<8x128xi1> to vector<8x128xi32>
    %156 = arith.sitofp %155 : vector<8x128xi32> to vector<8x128xf32>
    %c0_98 = arith.constant 0 : index
    %c0_99 = arith.constant 0 : index
    %157 = vector.load %arg5[%c0_98, %c0_99] : memref<8x128xf32, #tpu.memory_space<vmem>>, vector<8x128xf32>
    tpu.vector_store %arg5[%c0_98, %c0_99], %152 {strides = array<i32>} : memref<8x128xf32, #tpu.memory_space<vmem>>, vector<8x128xf32>,
    %c0_100 = arith.constant 0 : index
    %c0_101 = arith.constant 0 : index
    %158 = vector.load %arg6[%c0_100, %c0_101] : memref<8x128xf32, #tpu.memory_space<vmem>>, vector<8x128xf32>
    tpu.vector_store %arg6[%c0_100, %c0_101], %156 {strides = array<i32>} : memref<8x128xf32, #tpu.memory_space<vmem>>, vector<8x128xf32>,
    %159 = arith.extui %154 : vector<8x128xi1> to vector<8x128xi32>
    %160 = arith.sitofp %159 : vector<8x128xi32> to vector<8x128xf32>
    %161 = arith.index_cast %c5_i32 : i32 to index
    %c0_102 = arith.constant 0 : index
    %c0_103 = arith.constant 0 : index
    %162 = vector.load %arg4[%161, %c0_102, %c0_103] : memref<8x8x128xf32, #tpu.memory_space<vmem>>, vector<1x8x128xf32>
    %163 = vector.shape_cast %162 : vector<1x8x128xf32> to vector<8x128xf32>
    %164 = vector.shape_cast %160 : vector<8x128xf32> to vector<1x8x128xf32>
    tpu.vector_store %arg4[%161, %c0_102, %c0_103], %164 {strides = array<i32>} : memref<8x8x128xf32, #tpu.memory_space<vmem>>, vector<1x8x128xf32>,
    %c6_i32 = arith.constant 6 : i32
    %c0_104 = arith.constant 0 : index
    %c0_105 = arith.constant 0 : index
    %165 = vector.load %arg5[%c0_104, %c0_105] : memref<8x128xf32, #tpu.memory_space<vmem>>, vector<8x128xf32>
    %c0_106 = arith.constant 0 : index
    %c0_107 = arith.constant 0 : index
    %166 = vector.load %arg6[%c0_106, %c0_107] : memref<8x128xf32, #tpu.memory_space<vmem>>, vector<8x128xf32>
    %167 = arith.index_cast %c6_i32 : i32 to index
    %c0_108 = arith.constant 0 : index
    %c0_109 = arith.constant 0 : index
    %168 = vector.load %arg2[%167, %c0_108, %c0_109] : memref<8x8x128xf32, #tpu.memory_space<vmem>>, vector<1x8x128xf32>
    %169 = vector.shape_cast %168 : vector<1x8x128xf32> to vector<8x128xf32>
    %c0_110 = arith.constant 0 : index
    %c0_111 = arith.constant 0 : index
    %170 = vector.load %arg3[%c0_110, %c0_111] : memref<128x128xf32, #tpu.memory_space<vmem>>, vector<128x128xf32>
    %cst_112 = arith.constant dense<0.000000e+00> : vector<8x128xf32>
    %171 = tpu.matmul %166, %170, %cst_112 {dimension_numbers = #tpu.dot_dimension_numbers<[1], [0], [0], [1], [0, 0, 1, 1], [], []>} : vector<8x128xf32>, vector<128x128xf32>, vector<8x128xf32> -> vector<8x128xf32>
    %172 = arith.addf %169, %171 : vector<8x128xf32>
    %cst_113 = arith.constant 0.000000e+00 : f32
    %173 = vector.broadcast %cst_113 : f32 to vector<8x128xf32>
    %174 = arith.cmpf ogt, %166, %173 : vector<8x128xf32>
    %175 = vector.broadcast %cst : f32 to vector<8x128xf32>
    %176 = arith.mulf %175, %165 : vector<8x128xf32>
    %cst_114 = arith.constant 0.000000e+00 : f32
    %177 = vector.broadcast %cst_114 : f32 to vector<8x128xf32>
    %178 = arith.select %174, %177, %176 : vector<8x128xi1>, vector<8x128xf32>
    %179 = arith.addf %172, %178 : vector<8x128xf32>
    %180 = vector.broadcast %cst_1 : f32 to vector<8x128xf32>
    %181 = arith.cmpf ogt, %179, %180 : vector<8x128xf32>
    %182 = arith.extui %181 : vector<8x128xi1> to vector<8x128xi32>
    %183 = arith.sitofp %182 : vector<8x128xi32> to vector<8x128xf32>
    %c0_115 = arith.constant 0 : index
    %c0_116 = arith.constant 0 : index
    %184 = vector.load %arg5[%c0_115, %c0_116] : memref<8x128xf32, #tpu.memory_space<vmem>>, vector<8x128xf32>
    tpu.vector_store %arg5[%c0_115, %c0_116], %179 {strides = array<i32>} : memref<8x128xf32, #tpu.memory_space<vmem>>, vector<8x128xf32>,
    %c0_117 = arith.constant 0 : index
    %c0_118 = arith.constant 0 : index
    %185 = vector.load %arg6[%c0_117, %c0_118] : memref<8x128xf32, #tpu.memory_space<vmem>>, vector<8x128xf32>
    tpu.vector_store %arg6[%c0_117, %c0_118], %183 {strides = array<i32>} : memref<8x128xf32, #tpu.memory_space<vmem>>, vector<8x128xf32>,
    %186 = arith.extui %181 : vector<8x128xi1> to vector<8x128xi32>
    %187 = arith.sitofp %186 : vector<8x128xi32> to vector<8x128xf32>
    %188 = arith.index_cast %c6_i32 : i32 to index
    %c0_119 = arith.constant 0 : index
    %c0_120 = arith.constant 0 : index
    %189 = vector.load %arg4[%188, %c0_119, %c0_120] : memref<8x8x128xf32, #tpu.memory_space<vmem>>, vector<1x8x128xf32>
    %190 = vector.shape_cast %189 : vector<1x8x128xf32> to vector<8x128xf32>
    %191 = vector.shape_cast %187 : vector<8x128xf32> to vector<1x8x128xf32>
    tpu.vector_store %arg4[%188, %c0_119, %c0_120], %191 {strides = array<i32>} : memref<8x8x128xf32, #tpu.memory_space<vmem>>, vector<1x8x128xf32>,
    %c7_i32 = arith.constant 7 : i32
    %c0_121 = arith.constant 0 : index
    %c0_122 = arith.constant 0 : index
    %192 = vector.load %arg5[%c0_121, %c0_122] : memref<8x128xf32, #tpu.memory_space<vmem>>, vector<8x128xf32>
    %c0_123 = arith.constant 0 : index
    %c0_124 = arith.constant 0 : index
    %193 = vector.load %arg6[%c0_123, %c0_124] : memref<8x128xf32, #tpu.memory_space<vmem>>, vector<8x128xf32>
    %194 = arith.index_cast %c7_i32 : i32 to index
    %c0_125 = arith.constant 0 : index
    %c0_126 = arith.constant 0 : index
    %195 = vector.load %arg2[%194, %c0_125, %c0_126] : memref<8x8x128xf32, #tpu.memory_space<vmem>>, vector<1x8x128xf32>
    %196 = vector.shape_cast %195 : vector<1x8x128xf32> to vector<8x128xf32>
    %c0_127 = arith.constant 0 : index
    %c0_128 = arith.constant 0 : index
    %197 = vector.load %arg3[%c0_127, %c0_128] : memref<128x128xf32, #tpu.memory_space<vmem>>, vector<128x128xf32>
    %cst_129 = arith.constant dense<0.000000e+00> : vector<8x128xf32>
    %198 = tpu.matmul %193, %197, %cst_129 {dimension_numbers = #tpu.dot_dimension_numbers<[1], [0], [0], [1], [0, 0, 1, 1], [], []>} : vector<8x128xf32>, vector<128x128xf32>, vector<8x128xf32> -> vector<8x128xf32>
    %199 = arith.addf %196, %198 : vector<8x128xf32>
    %cst_130 = arith.constant 0.000000e+00 : f32
    %200 = vector.broadcast %cst_130 : f32 to vector<8x128xf32>
    %201 = arith.cmpf ogt, %193, %200 : vector<8x128xf32>
    %202 = vector.broadcast %cst : f32 to vector<8x128xf32>
    %203 = arith.mulf %202, %192 : vector<8x128xf32>
    %cst_131 = arith.constant 0.000000e+00 : f32
    %204 = vector.broadcast %cst_131 : f32 to vector<8x128xf32>
    %205 = arith.select %201, %204, %203 : vector<8x128xi1>, vector<8x128xf32>
    %206 = arith.addf %199, %205 : vector<8x128xf32>
    %207 = vector.broadcast %cst_1 : f32 to vector<8x128xf32>
    %208 = arith.cmpf ogt, %206, %207 : vector<8x128xf32>
    %209 = arith.extui %208 : vector<8x128xi1> to vector<8x128xi32>
    %210 = arith.sitofp %209 : vector<8x128xi32> to vector<8x128xf32>
    %c0_132 = arith.constant 0 : index
    %c0_133 = arith.constant 0 : index
    %211 = vector.load %arg5[%c0_132, %c0_133] : memref<8x128xf32, #tpu.memory_space<vmem>>, vector<8x128xf32>
    tpu.vector_store %arg5[%c0_132, %c0_133], %206 {strides = array<i32>} : memref<8x128xf32, #tpu.memory_space<vmem>>, vector<8x128xf32>,
    %c0_134 = arith.constant 0 : index
    %c0_135 = arith.constant 0 : index
    %212 = vector.load %arg6[%c0_134, %c0_135] : memref<8x128xf32, #tpu.memory_space<vmem>>, vector<8x128xf32>
    tpu.vector_store %arg6[%c0_134, %c0_135], %210 {strides = array<i32>} : memref<8x128xf32, #tpu.memory_space<vmem>>, vector<8x128xf32>,
    %213 = arith.extui %208 : vector<8x128xi1> to vector<8x128xi32>
    %214 = arith.sitofp %213 : vector<8x128xi32> to vector<8x128xf32>
    %215 = arith.index_cast %c7_i32 : i32 to index
    %c0_136 = arith.constant 0 : index
    %c0_137 = arith.constant 0 : index
    %216 = vector.load %arg4[%215, %c0_136, %c0_137] : memref<8x8x128xf32, #tpu.memory_space<vmem>>, vector<1x8x128xf32>
    %217 = vector.shape_cast %216 : vector<1x8x128xf32> to vector<8x128xf32>
    %218 = vector.shape_cast %214 : vector<8x128xf32> to vector<1x8x128xf32>
    tpu.vector_store %arg4[%215, %c0_136, %c0_137], %218 {strides = array<i32>} : memref<8x8x128xf32, #tpu.memory_space<vmem>>, vector<1x8x128xf32>,
    %c8_i32 = arith.constant 8 : i32
    return
  }
  func.func @transform_0(%arg0: i32, %arg1: i32) -> (i32, i32, i32) {
    %c0_i32 = arith.constant 0 : i32
    %c0_i32_0 = arith.constant 0 : i32
    return %arg1, %arg0, %c0_i32 : i32, i32, i32
  }
  func.func @transform_1(%arg0: i32, %arg1: i32) -> (i32, i32) {
    %c0_i32 = arith.constant 0 : i32
    %c0_i32_0 = arith.constant 0 : i32
    %c0_i32_1 = arith.constant 0 : i32
    return %c0_i32, %c0_i32_0 : i32, i32
  }
  func.func @transform_2(%arg0: i32, %arg1: i32) -> (i32, i32, i32) {
    %c0_i32 = arith.constant 0 : i32
    %c0_i32_0 = arith.constant 0 : i32
    return %arg1, %arg0, %c0_i32 : i32, i32, i32
  }
}

module attributes {stable_mosaic.version = 11 : i64} {
  func.func @_lifrnn_kernel(%arg0: i32, %arg1: i32, %arg2: memref<8x8x128xf32, #tpu.memory_space<vmem>>, %arg3: memref<128x128xf32, #tpu.memory_space<vmem>>, %arg4: memref<8x8x128xf32, #tpu.memory_space<vmem>>, %arg5: memref<8x128xf32, #tpu.memory_space<vmem>>, %arg6: memref<8x128xf32, #tpu.memory_space<vmem>>) attributes {dimension_semantics = [#tpu.dimension_semantics<parallel>, #tpu.dimension_semantics<arbitrary>], iteration_bounds = array<i64: 1, 1>, scalar_prefetch = 0 : i64, scratch_operands = 2 : i64, tpu.core_type = #tpu.core_type<tc>, window_params = [{transform_indices = @transform_0, window_bounds = array<i64: 8, 8, 128>}, {pipeline_mode = #tpu.pipeline_mode<synchronous>, transform_indices = @transform_1, window_bounds = array<i64: 128, 128>}, {transform_indices = @transform_2, window_bounds = array<i64: 8, 8, 128>}]} {
    %c0_i32 = arith.constant 0 : i32
    %0 = arith.cmpi eq, %arg1, %c0_i32 : i32
    %1 = arith.extui %0 : i1 to i32
    %c0_i32_0 = arith.constant 0 : i32
    %2 = arith.cmpi ne, %1, %c0_i32_0 : i32
    scf.if %2 {
      %cst_138 = arith.constant 0.000000e+00 : f32
      %219 = vector.broadcast %cst_138 : f32 to vector<8x128xf32>
      %c0_139 = arith.constant 0 : index
      %c0_140 = arith.constant 0 : index
      %220 = vector.load %arg5[%c0_139, %c0_140] : memref<8x128xf32, #tpu.memory_space<vmem>>, vector<8x128xf32>
      tpu.vector_store %arg5[%c0_139, %c0_140], %219 {strides = array<i32>} : memref<8x128xf32, #tpu.memory_space<vmem>>, vector<8x128xf32>,
      %cst_141 = arith.constant 0.000000e+00 : f32
      %221 = vector.broadcast %cst_141 : f32 to vector<8x128xf32>
      %c0_142 = arith.constant 0 : index
      %c0_143 = arith.constant 0 : index
      %222 = vector.load %arg6[%c0_142, %c0_143] : memref<8x128xf32, #tpu.memory_space<vmem>>, vector<8x128xf32>
      tpu.vector_store %arg6[%c0_142, %c0_143], %221 {strides = array<i32>} : memref<8x128xf32, #tpu.memory_space<vmem>>, vector<8x128xf32>,
    } else {
    }
    %cst = arith.constant 3.000000e-01 : f32
    %cst_1 = arith.constant 5.000000e-01 : f32
    %c0_i32_2 = arith.constant 0 : i32
    %c0 = arith.constant 0 : index
    %c0_3 = arith.constant 0 : index
    %3 = vector.load %arg5[%c0, %c0_3] : memref<8x128xf32, #tpu.memory_space<vmem>>, vector<8x128xf32>
    %c0_4 = arith.constant 0 : index
    %c0_5 = arith.constant 0 : index
    %4 = vector.load %arg6[%c0_4, %c0_5] : memref<8x128xf32, #tpu.memory_space<vmem>>, vector<8x128xf32>
    %5 = arith.index_cast %c0_i32_2 : i32 to index
    %c0_6 = arith.constant 0 : index
    %c0_7 = arith.constant 0 : index
    %6 = vector.load %arg2[%5, %c0_6, %c0_7] : memref<8x8x128xf32, #tpu.memory_space<vmem>>, vector<1x8x128xf32>
    %7 = vector.shape_cast %6 : vector<1x8x128xf32> to vector<8x128xf32>
    %c0_8 = arith.constant 0 : index
    %c0_9 = arith.constant 0 : index
    %8 = vector.load %arg3[%c0_8, %c0_9] : memref<128x128xf32, #tpu.memory_space<vmem>>, vector<128x128xf32>
    %cst_10 = arith.constant dense<0.000000e+00> : vector<8x128xf32>
    %9 = tpu.matmul %4, %8, %cst_10 {dimension_numbers = #tpu.dot_dimension_numbers<[1], [0], [0], [1], [0, 0, 1, 1], [], []>} : vector<8x128xf32>, vector<128x128xf32>, vector<8x128xf32> -> vector<8x128xf32>
    %10 = arith.addf %7, %9 : vector<8x128xf32>
    %cst_11 = arith.constant 0.000000e+00 : f32
    %11 = vector.broadcast %cst_11 : f32 to vector<8x128xf32>
    %12 = arith.cmpf ogt, %4, %11 : vector<8x128xf32>
    %13 = vector.broadcast %cst : f32 to vector<8x128xf32>
    %14 = arith.mulf %13, %3 : vector<8x128xf32>
    %cst_12 = arith.constant 0.000000e+00 : f32
    %15 = vector.broadcast %cst_12 : f32 to vector<8x128xf32>
    %16 = arith.select %12, %15, %14 : vector<8x128xi1>, vector<8x128xf32>
    %17 = arith.addf %10, %16 : vector<8x128xf32>
    %18 = vector.broadcast %cst_1 : f32 to vector<8x128xf32>
    %19 = arith.cmpf ogt, %17, %18 : vector<8x128xf32>
    %20 = arith.extui %19 : vector<8x128xi1> to vector<8x128xi32>
    %21 = arith.sitofp %20 : vector<8x128xi32> to vector<8x128xf32>
    %c0_13 = arith.constant 0 : index
    %c0_14 = arith.constant 0 : index
    %22 = vector.load %arg5[%c0_13, %c0_14] : memref<8x128xf32, #tpu.memory_space<vmem>>, vector<8x128xf32>
    tpu.vector_store %arg5[%c0_13, %c0_14], %17 {strides = array<i32>} : memref<8x128xf32, #tpu.memory_space<vmem>>, vector<8x128xf32>,
    %c0_15 = arith.constant 0 : index
    %c0_16 = arith.constant 0 : index
    %23 = vector.load %arg6[%c0_15, %c0_16] : memref<8x128xf32, #tpu.memory_space<vmem>>, vector<8x128xf32>
    tpu.vector_store %arg6[%c0_15, %c0_16], %21 {strides = array<i32>} : memref<8x128xf32, #tpu.memory_space<vmem>>, vector<8x128xf32>,
    %24 = arith.extui %19 : vector<8x128xi1> to vector<8x128xi32>
    %25 = arith.sitofp %24 : vector<8x128xi32> to vector<8x128xf32>
    %26 = arith.index_cast %c0_i32_2 : i32 to index
    %c0_17 = arith.constant 0 : index
    %c0_18 = arith.constant 0 : index
    %27 = vector.load %arg4[%26, %c0_17, %c0_18] : memref<8x8x128xf32, #tpu.memory_space<vmem>>, vector<1x8x128xf32>
    %28 = vector.shape_cast %27 : vector<1x8x128xf32> to vector<8x128xf32>
    %29 = vector.shape_cast %25 : vector<8x128xf32> to vector<1x8x128xf32>
    tpu.vector_store %arg4[%26, %c0_17, %c0_18], %29 {strides = array<i32>} : memref<8x8x128xf32, #tpu.memory_space<vmem>>, vector<1x8x128xf32>,
    %c1_i32 = arith.constant 1 : i32
    %c0_19 = arith.constant 0 : index
    %c0_20 = arith.constant 0 : index
    %30 = vector.load %arg5[%c0_19, %c0_20] : memref<8x128xf32, #tpu.memory_space<vmem>>, vector<8x128xf32>
    %c0_21 = arith.constant 0 : index
    %c0_22 = arith.constant 0 : index
    %31 = vector.load %arg6[%c0_21, %c0_22] : memref<8x128xf32, #tpu.memory_space<vmem>>, vector<8x128xf32>
    %32 = arith.index_cast %c1_i32 : i32 to index
    %c0_23 = arith.constant 0 : index
    %c0_24 = arith.constant 0 : index
    %33 = vector.load %arg2[%32, %c0_23, %c0_24] : memref<8x8x128xf32, #tpu.memory_space<vmem>>, vector<1x8x128xf32>
    %34 = vector.shape_cast %33 : vector<1x8x128xf32> to vector<8x128xf32>
    %c0_25 = arith.constant 0 : index
    %c0_26 = arith.constant 0 : index
    %35 = vector.load %arg3[%c0_25, %c0_26] : memref<128x128xf32, #tpu.memory_space<vmem>>, vector<128x128xf32>
    %cst_27 = arith.constant dense<0.000000e+00> : vector<8x128xf32>
    %36 = tpu.matmul %31, %35, %cst_27 {dimension_numbers = #tpu.dot_dimension_numbers<[1], [0], [0], [1], [0, 0, 1, 1], [], []>} : vector<8x128xf32>, vector<128x128xf32>, vector<8x128xf32> -> vector<8x128xf32>
    %37 = arith.addf %34, %36 : vector<8x128xf32>
    %cst_28 = arith.constant 0.000000e+00 : f32
    %38 = vector.broadcast %cst_28 : f32 to vector<8x128xf32>
    %39 = arith.cmpf ogt, %31, %38 : vector<8x128xf32>
    %40 = vector.broadcast %cst : f32 to vector<8x128xf32>
    %41 = arith.mulf %40, %30 : vector<8x128xf32>
    %cst_29 = arith.constant 0.000000e+00 : f32
    %42 = vector.broadcast %cst_29 : f32 to vector<8x128xf32>
    %43 = arith.select %39, %42, %41 : vector<8x128xi1>, vector<8x128xf32>
    %44 = arith.addf %37, %43 : vector<8x128xf32>
    %45 = vector.broadcast %cst_1 : f32 to vector<8x128xf32>
    %46 = arith.cmpf ogt, %44, %45 : vector<8x128xf32>
    %47 = arith.extui %46 : vector<8x128xi1> to vector<8x128xi32>
    %48 = arith.sitofp %47 : vector<8x128xi32> to vector<8x128xf32>
    %c0_30 = arith.constant 0 : index
    %c0_31 = arith.constant 0 : index
    %49 = vector.load %arg5[%c0_30, %c0_31] : memref<8x128xf32, #tpu.memory_space<vmem>>, vector<8x128xf32>
    tpu.vector_store %arg5[%c0_30, %c0_31], %44 {strides = array<i32>} : memref<8x128xf32, #tpu.memory_space<vmem>>, vector<8x128xf32>,
    %c0_32 = arith.constant 0 : index
    %c0_33 = arith.constant 0 : index
    %50 = vector.load %arg6[%c0_32, %c0_33] : memref<8x128xf32, #tpu.memory_space<vmem>>, vector<8x128xf32>
    tpu.vector_store %arg6[%c0_32, %c0_33], %48 {strides = array<i32>} : memref<8x128xf32, #tpu.memory_space<vmem>>, vector<8x128xf32>,
    %51 = arith.extui %46 : vector<8x128xi1> to vector<8x128xi32>
    %52 = arith.sitofp %51 : vector<8x128xi32> to vector<8x128xf32>
    %53 = arith.index_cast %c1_i32 : i32 to index
    %c0_34 = arith.constant 0 : index
    %c0_35 = arith.constant 0 : index
    %54 = vector.load %arg4[%53, %c0_34, %c0_35] : memref<8x8x128xf32, #tpu.memory_space<vmem>>, vector<1x8x128xf32>
    %55 = vector.shape_cast %54 : vector<1x8x128xf32> to vector<8x128xf32>
    %56 = vector.shape_cast %52 : vector<8x128xf32> to vector<1x8x128xf32>
    tpu.vector_store %arg4[%53, %c0_34, %c0_35], %56 {strides = array<i32>} : memref<8x8x128xf32, #tpu.memory_space<vmem>>, vector<1x8x128xf32>,
    %c2_i32 = arith.constant 2 : i32
    %c0_36 = arith.constant 0 : index
    %c0_37 = arith.constant 0 : index
    %57 = vector.load %arg5[%c0_36, %c0_37] : memref<8x128xf32, #tpu.memory_space<vmem>>, vector<8x128xf32>
    %c0_38 = arith.constant 0 : index
    %c0_39 = arith.constant 0 : index
    %58 = vector.load %arg6[%c0_38, %c0_39] : memref<8x128xf32, #tpu.memory_space<vmem>>, vector<8x128xf32>
    %59 = arith.index_cast %c2_i32 : i32 to index
    %c0_40 = arith.constant 0 : index
    %c0_41 = arith.constant 0 : index
    %60 = vector.load %arg2[%59, %c0_40, %c0_41] : memref<8x8x128xf32, #tpu.memory_space<vmem>>, vector<1x8x128xf32>
    %61 = vector.shape_cast %60 : vector<1x8x128xf32> to vector<8x128xf32>
    %c0_42 = arith.constant 0 : index
    %c0_43 = arith.constant 0 : index
    %62 = vector.load %arg3[%c0_42, %c0_43] : memref<128x128xf32, #tpu.memory_space<vmem>>, vector<128x128xf32>
    %cst_44 = arith.constant dense<0.000000e+00> : vector<8x128xf32>
    %63 = tpu.matmul %58, %62, %cst_44 {dimension_numbers = #tpu.dot_dimension_numbers<[1], [0], [0], [1], [0, 0, 1, 1], [], []>} : vector<8x128xf32>, vector<128x128xf32>, vector<8x128xf32> -> vector<8x128xf32>
    %64 = arith.addf %61, %63 : vector<8x128xf32>
    %cst_45 = arith.constant 0.000000e+00 : f32
    %65 = vector.broadcast %cst_45 : f32 to vector<8x128xf32>
    %66 = arith.cmpf ogt, %58, %65 : vector<8x128xf32>
    %67 = vector.broadcast %cst : f32 to vector<8x128xf32>
    %68 = arith.mulf %67, %57 : vector<8x128xf32>
    %cst_46 = arith.constant 0.000000e+00 : f32
    %69 = vector.broadcast %cst_46 : f32 to vector<8x128xf32>
    %70 = arith.select %66, %69, %68 : vector<8x128xi1>, vector<8x128xf32>
    %71 = arith.addf %64, %70 : vector<8x128xf32>
    %72 = vector.broadcast %cst_1 : f32 to vector<8x128xf32>
    %73 = arith.cmpf ogt, %71, %72 : vector<8x128xf32>
    %74 = arith.extui %73 : vector<8x128xi1> to vector<8x128xi32>
    %75 = arith.sitofp %74 : vector<8x128xi32> to vector<8x128xf32>
    %c0_47 = arith.constant 0 : index
    %c0_48 = arith.constant 0 : index
    %76 = vector.load %arg5[%c0_47, %c0_48] : memref<8x128xf32, #tpu.memory_space<vmem>>, vector<8x128xf32>
    tpu.vector_store %arg5[%c0_47, %c0_48], %71 {strides = array<i32>} : memref<8x128xf32, #tpu.memory_space<vmem>>, vector<8x128xf32>,
    %c0_49 = arith.constant 0 : index
    %c0_50 = arith.constant 0 : index
    %77 = vector.load %arg6[%c0_49, %c0_50] : memref<8x128xf32, #tpu.memory_space<vmem>>, vector<8x128xf32>
    tpu.vector_store %arg6[%c0_49, %c0_50], %75 {strides = array<i32>} : memref<8x128xf32, #tpu.memory_space<vmem>>, vector<8x128xf32>,
    %78 = arith.extui %73 : vector<8x128xi1> to vector<8x128xi32>
    %79 = arith.sitofp %78 : vector<8x128xi32> to vector<8x128xf32>
    %80 = arith.index_cast %c2_i32 : i32 to index
    %c0_51 = arith.constant 0 : index
    %c0_52 = arith.constant 0 : index
    %81 = vector.load %arg4[%80, %c0_51, %c0_52] : memref<8x8x128xf32, #tpu.memory_space<vmem>>, vector<1x8x128xf32>
    %82 = vector.shape_cast %81 : vector<1x8x128xf32> to vector<8x128xf32>
    %83 = vector.shape_cast %79 : vector<8x128xf32> to vector<1x8x128xf32>
    tpu.vector_store %arg4[%80, %c0_51, %c0_52], %83 {strides = array<i32>} : memref<8x8x128xf32, #tpu.memory_space<vmem>>, vector<1x8x128xf32>,
    %c3_i32 = arith.constant 3 : i32
    %c0_53 = arith.constant 0 : index
    %c0_54 = arith.constant 0 : index
    %84 = vector.load %arg5[%c0_53, %c0_54] : memref<8x128xf32, #tpu.memory_space<vmem>>, vector<8x128xf32>
    %c0_55 = arith.constant 0 : index
    %c0_56 = arith.constant 0 : index
    %85 = vector.load %arg6[%c0_55, %c0_56] : memref<8x128xf32, #tpu.memory_space<vmem>>, vector<8x128xf32>
    %86 = arith.index_cast %c3_i32 : i32 to index
    %c0_57 = arith.constant 0 : index
    %c0_58 = arith.constant 0 : index
    %87 = vector.load %arg2[%86, %c0_57, %c0_58] : memref<8x8x128xf32, #tpu.memory_space<vmem>>, vector<1x8x128xf32>
    %88 = vector.shape_cast %87 : vector<1x8x128xf32> to vector<8x128xf32>
    %c0_59 = arith.constant 0 : index
    %c0_60 = arith.constant 0 : index
    %89 = vector.load %arg3[%c0_59, %c0_60] : memref<128x128xf32, #tpu.memory_space<vmem>>, vector<128x128xf32>
    %cst_61 = arith.constant dense<0.000000e+00> : vector<8x128xf32>
    %90 = tpu.matmul %85, %89, %cst_61 {dimension_numbers = #tpu.dot_dimension_numbers<[1], [0], [0], [1], [0, 0, 1, 1], [], []>} : vector<8x128xf32>, vector<128x128xf32>, vector<8x128xf32> -> vector<8x128xf32>
    %91 = arith.addf %88, %90 : vector<8x128xf32>
    %cst_62 = arith.constant 0.000000e+00 : f32
    %92 = vector.broadcast %cst_62 : f32 to vector<8x128xf32>
    %93 = arith.cmpf ogt, %85, %92 : vector<8x128xf32>
    %94 = vector.broadcast %cst : f32 to vector<8x128xf32>
    %95 = arith.mulf %94, %84 : vector<8x128xf32>
    %cst_63 = arith.constant 0.000000e+00 : f32
    %96 = vector.broadcast %cst_63 : f32 to vector<8x128xf32>
    %97 = arith.select %93, %96, %95 : vector<8x128xi1>, vector<8x128xf32>
    %98 = arith.addf %91, %97 : vector<8x128xf32>
    %99 = vector.broadcast %cst_1 : f32 to vector<8x128xf32>
    %100 = arith.cmpf ogt, %98, %99 : vector<8x128xf32>
    %101 = arith.extui %100 : vector<8x128xi1> to vector<8x128xi32>
    %102 = arith.sitofp %101 : vector<8x128xi32> to vector<8x128xf32>
    %c0_64 = arith.constant 0 : index
    %c0_65 = arith.constant 0 : index
    %103 = vector.load %arg5[%c0_64, %c0_65] : memref<8x128xf32, #tpu.memory_space<vmem>>, vector<8x128xf32>
    tpu.vector_store %arg5[%c0_64, %c0_65], %98 {strides = array<i32>} : memref<8x128xf32, #tpu.memory_space<vmem>>, vector<8x128xf32>,
    %c0_66 = arith.constant 0 : index
    %c0_67 = arith.constant 0 : index
    %104 = vector.load %arg6[%c0_66, %c0_67] : memref<8x128xf32, #tpu.memory_space<vmem>>, vector<8x128xf32>
    tpu.vector_store %arg6[%c0_66, %c0_67], %102 {strides = array<i32>} : memref<8x128xf32, #tpu.memory_space<vmem>>, vector<8x128xf32>,
    %105 = arith.extui %100 : vector<8x128xi1> to vector<8x128xi32>
    %106 = arith.sitofp %105 : vector<8x128xi32> to vector<8x128xf32>
    %107 = arith.index_cast %c3_i32 : i32 to index
    %c0_68 = arith.constant 0 : index
    %c0_69 = arith.constant 0 : index
    %108 = vector.load %arg4[%107, %c0_68, %c0_69] : memref<8x8x128xf32, #tpu.memory_space<vmem>>, vector<1x8x128xf32>
    %109 = vector.shape_cast %108 : vector<1x8x128xf32> to vector<8x128xf32>
    %110 = vector.shape_cast %106 : vector<8x128xf32> to vector<1x8x128xf32>
    tpu.vector_store %arg4[%107, %c0_68, %c0_69], %110 {strides = array<i32>} : memref<8x8x128xf32, #tpu.memory_space<vmem>>, vector<1x8x128xf32>,
    %c4_i32 = arith.constant 4 : i32
    %c0_70 = arith.constant 0 : index
    %c0_71 = arith.constant 0 : index
    %111 = vector.load %arg5[%c0_70, %c0_71] : memref<8x128xf32, #tpu.memory_space<vmem>>, vector<8x128xf32>
    %c0_72 = arith.constant 0 : index
    %c0_73 = arith.constant 0 : index
    %112 = vector.load %arg6[%c0_72, %c0_73] : memref<8x128xf32, #tpu.memory_space<vmem>>, vector<8x128xf32>
    %113 = arith.index_cast %c4_i32 : i32 to index
    %c0_74 = arith.constant 0 : index
    %c0_75 = arith.constant 0 : index
    %114 = vector.load %arg2[%113, %c0_74, %c0_75] : memref<8x8x128xf32, #tpu.memory_space<vmem>>, vector<1x8x128xf32>
    %115 = vector.shape_cast %114 : vector<1x8x128xf32> to vector<8x128xf32>
    %c0_76 = arith.constant 0 : index
    %c0_77 = arith.constant 0 : index
    %116 = vector.load %arg3[%c0_76, %c0_77] : memref<128x128xf32, #tpu.memory_space<vmem>>, vector<128x128xf32>
    %cst_78 = arith.constant dense<0.000000e+00> : vector<8x128xf32>
    %117 = tpu.matmul %112, %116, %cst_78 {dimension_numbers = #tpu.dot_dimension_numbers<[1], [0], [0], [1], [0, 0, 1, 1], [], []>} : vector<8x128xf32>, vector<128x128xf32>, vector<8x128xf32> -> vector<8x128xf32>
    %118 = arith.addf %115, %117 : vector<8x128xf32>
    %cst_79 = arith.constant 0.000000e+00 : f32
    %119 = vector.broadcast %cst_79 : f32 to vector<8x128xf32>
    %120 = arith.cmpf ogt, %112, %119 : vector<8x128xf32>
    %121 = vector.broadcast %cst : f32 to vector<8x128xf32>
    %122 = arith.mulf %121, %111 : vector<8x128xf32>
    %cst_80 = arith.constant 0.000000e+00 : f32
    %123 = vector.broadcast %cst_80 : f32 to vector<8x128xf32>
    %124 = arith.select %120, %123, %122 : vector<8x128xi1>, vector<8x128xf32>
    %125 = arith.addf %118, %124 : vector<8x128xf32>
    %126 = vector.broadcast %cst_1 : f32 to vector<8x128xf32>
    %127 = arith.cmpf ogt, %125, %126 : vector<8x128xf32>
    %128 = arith.extui %127 : vector<8x128xi1> to vector<8x128xi32>
    %129 = arith.sitofp %128 : vector<8x128xi32> to vector<8x128xf32>
    %c0_81 = arith.constant 0 : index
    %c0_82 = arith.constant 0 : index
    %130 = vector.load %arg5[%c0_81, %c0_82] : memref<8x128xf32, #tpu.memory_space<vmem>>, vector<8x128xf32>
    tpu.vector_store %arg5[%c0_81, %c0_82], %125 {strides = array<i32>} : memref<8x128xf32, #tpu.memory_space<vmem>>, vector<8x128xf32>,
    %c0_83 = arith.constant 0 : index
    %c0_84 = arith.constant 0 : index
    %131 = vector.load %arg6[%c0_83, %c0_84] : memref<8x128xf32, #tpu.memory_space<vmem>>, vector<8x128xf32>
    tpu.vector_store %arg6[%c0_83, %c0_84], %129 {strides = array<i32>} : memref<8x128xf32, #tpu.memory_space<vmem>>, vector<8x128xf32>,
    %132 = arith.extui %127 : vector<8x128xi1> to vector<8x128xi32>
    %133 = arith.sitofp %132 : vector<8x128xi32> to vector<8x128xf32>
    %134 = arith.index_cast %c4_i32 : i32 to index
    %c0_85 = arith.constant 0 : index
    %c0_86 = arith.constant 0 : index
    %135 = vector.load %arg4[%134, %c0_85, %c0_86] : memref<8x8x128xf32, #tpu.memory_space<vmem>>, vector<1x8x128xf32>
    %136 = vector.shape_cast %135 : vector<1x8x128xf32> to vector<8x128xf32>
    %137 = vector.shape_cast %133 : vector<8x128xf32> to vector<1x8x128xf32>
    tpu.vector_store %arg4[%134, %c0_85, %c0_86], %137 {strides = array<i32>} : memref<8x8x128xf32, #tpu.memory_space<vmem>>, vector<1x8x128xf32>,
    %c5_i32 = arith.constant 5 : i32
    %c0_87 = arith.constant 0 : index
    %c0_88 = arith.constant 0 : index
    %138 = vector.load %arg5[%c0_87, %c0_88] : memref<8x128xf32, #tpu.memory_space<vmem>>, vector<8x128xf32>
    %c0_89 = arith.constant 0 : index
    %c0_90 = arith.constant 0 : index
    %139 = vector.load %arg6[%c0_89, %c0_90] : memref<8x128xf32, #tpu.memory_space<vmem>>, vector<8x128xf32>
    %140 = arith.index_cast %c5_i32 : i32 to index
    %c0_91 = arith.constant 0 : index
    %c0_92 = arith.constant 0 : index
    %141 = vector.load %arg2[%140, %c0_91, %c0_92] : memref<8x8x128xf32, #tpu.memory_space<vmem>>, vector<1x8x128xf32>
    %142 = vector.shape_cast %141 : vector<1x8x128xf32> to vector<8x128xf32>
    %c0_93 = arith.constant 0 : index
    %c0_94 = arith.constant 0 : index
    %143 = vector.load %arg3[%c0_93, %c0_94] : memref<128x128xf32, #tpu.memory_space<vmem>>, vector<128x128xf32>
    %cst_95 = arith.constant dense<0.000000e+00> : vector<8x128xf32>
    %144 = tpu.matmul %139, %143, %cst_95 {dimension_numbers = #tpu.dot_dimension_numbers<[1], [0], [0], [1], [0, 0, 1, 1], [], []>} : vector<8x128xf32>, vector<128x128xf32>, vector<8x128xf32> -> vector<8x128xf32>
    %145 = arith.addf %142, %144 : vector<8x128xf32>
    %cst_96 = arith.constant 0.000000e+00 : f32
    %146 = vector.broadcast %cst_96 : f32 to vector<8x128xf32>
    %147 = arith.cmpf ogt, %139, %146 : vector<8x128xf32>
    %148 = vector.broadcast %cst : f32 to vector<8x128xf32>
    %149 = arith.mulf %148, %138 : vector<8x128xf32>
    %cst_97 = arith.constant 0.000000e+00 : f32
    %150 = vector.broadcast %cst_97 : f32 to vector<8x128xf32>
    %151 = arith.select %147, %150, %149 : vector<8x128xi1>, vector<8x128xf32>
    %152 = arith.addf %145, %151 : vector<8x128xf32>
    %153 = vector.broadcast %cst_1 : f32 to vector<8x128xf32>
    %154 = arith.cmpf ogt, %152, %153 : vector<8x128xf32>
    %155 = arith.extui %154 : vector<8x128xi1> to vector<8x128xi32>
    %156 = arith.sitofp %155 : vector<8x128xi32> to vector<8x128xf32>
    %c0_98 = arith.constant 0 : index
    %c0_99 = arith.constant 0 : index
    %157 = vector.load %arg5[%c0_98, %c0_99] : memref<8x128xf32, #tpu.memory_space<vmem>>, vector<8x128xf32>
    tpu.vector_store %arg5[%c0_98, %c0_99], %152 {strides = array<i32>} : memref<8x128xf32, #tpu.memory_space<vmem>>, vector<8x128xf32>,
    %c0_100 = arith.constant 0 : index
    %c0_101 = arith.constant 0 : index
    %158 = vector.load %arg6[%c0_100, %c0_101] : memref<8x128xf32, #tpu.memory_space<vmem>>, vector<8x128xf32>
    tpu.vector_store %arg6[%c0_100, %c0_101], %156 {strides = array<i32>} : memref<8x128xf32, #tpu.memory_space<vmem>>, vector<8x128xf32>,
    %159 = arith.extui %154 : vector<8x128xi1> to vector<8x128xi32>
    %160 = arith.sitofp %159 : vector<8x128xi32> to vector<8x128xf32>
    %161 = arith.index_cast %c5_i32 : i32 to index
    %c0_102 = arith.constant 0 : index
    %c0_103 = arith.constant 0 : index
    %162 = vector.load %arg4[%161, %c0_102, %c0_103] : memref<8x8x128xf32, #tpu.memory_space<vmem>>, vector<1x8x128xf32>
    %163 = vector.shape_cast %162 : vector<1x8x128xf32> to vector<8x128xf32>
    %164 = vector.shape_cast %160 : vector<8x128xf32> to vector<1x8x128xf32>
    tpu.vector_store %arg4[%161, %c0_102, %c0_103], %164 {strides = array<i32>} : memref<8x8x128xf32, #tpu.memory_space<vmem>>, vector<1x8x128xf32>,
    %c6_i32 = arith.constant 6 : i32
    %c0_104 = arith.constant 0 : index
    %c0_105 = arith.constant 0 : index
    %165 = vector.load %arg5[%c0_104, %c0_105] : memref<8x128xf32, #tpu.memory_space<vmem>>, vector<8x128xf32>
    %c0_106 = arith.constant 0 : index
    %c0_107 = arith.constant 0 : index
    %166 = vector.load %arg6[%c0_106, %c0_107] : memref<8x128xf32, #tpu.memory_space<vmem>>, vector<8x128xf32>
    %167 = arith.index_cast %c6_i32 : i32 to index
    %c0_108 = arith.constant 0 : index
    %c0_109 = arith.constant 0 : index
    %168 = vector.load %arg2[%167, %c0_108, %c0_109] : memref<8x8x128xf32, #tpu.memory_space<vmem>>, vector<1x8x128xf32>
    %169 = vector.shape_cast %168 : vector<1x8x128xf32> to vector<8x128xf32>
    %c0_110 = arith.constant 0 : index
    %c0_111 = arith.constant 0 : index
    %170 = vector.load %arg3[%c0_110, %c0_111] : memref<128x128xf32, #tpu.memory_space<vmem>>, vector<128x128xf32>
    %cst_112 = arith.constant dense<0.000000e+00> : vector<8x128xf32>
    %171 = tpu.matmul %166, %170, %cst_112 {dimension_numbers = #tpu.dot_dimension_numbers<[1], [0], [0], [1], [0, 0, 1, 1], [], []>} : vector<8x128xf32>, vector<128x128xf32>, vector<8x128xf32> -> vector<8x128xf32>
    %172 = arith.addf %169, %171 : vector<8x128xf32>
    %cst_113 = arith.constant 0.000000e+00 : f32
    %173 = vector.broadcast %cst_113 : f32 to vector<8x128xf32>
    %174 = arith.cmpf ogt, %166, %173 : vector<8x128xf32>
    %175 = vector.broadcast %cst : f32 to vector<8x128xf32>
    %176 = arith.mulf %175, %165 : vector<8x128xf32>
    %cst_114 = arith.constant 0.000000e+00 : f32
    %177 = vector.broadcast %cst_114 : f32 to vector<8x128xf32>
    %178 = arith.select %174, %177, %176 : vector<8x128xi1>, vector<8x128xf32>
    %179 = arith.addf %172, %178 : vector<8x128xf32>
    %180 = vector.broadcast %cst_1 : f32 to vector<8x128xf32>
    %181 = arith.cmpf ogt, %179, %180 : vector<8x128xf32>
    %182 = arith.extui %181 : vector<8x128xi1> to vector<8x128xi32>
    %183 = arith.sitofp %182 : vector<8x128xi32> to vector<8x128xf32>
    %c0_115 = arith.constant 0 : index
    %c0_116 = arith.constant 0 : index
    %184 = vector.load %arg5[%c0_115, %c0_116] : memref<8x128xf32, #tpu.memory_space<vmem>>, vector<8x128xf32>
    tpu.vector_store %arg5[%c0_115, %c0_116], %179 {strides = array<i32>} : memref<8x128xf32, #tpu.memory_space<vmem>>, vector<8x128xf32>,
    %c0_117 = arith.constant 0 : index
    %c0_118 = arith.constant 0 : index
    %185 = vector.load %arg6[%c0_117, %c0_118] : memref<8x128xf32, #tpu.memory_space<vmem>>, vector<8x128xf32>
    tpu.vector_store %arg6[%c0_117, %c0_118], %183 {strides = array<i32>} : memref<8x128xf32, #tpu.memory_space<vmem>>, vector<8x128xf32>,
    %186 = arith.extui %181 : vector<8x128xi1> to vector<8x128xi32>
    %187 = arith.sitofp %186 : vector<8x128xi32> to vector<8x128xf32>
    %188 = arith.index_cast %c6_i32 : i32 to index
    %c0_119 = arith.constant 0 : index
    %c0_120 = arith.constant 0 : index
    %189 = vector.load %arg4[%188, %c0_119, %c0_120] : memref<8x8x128xf32, #tpu.memory_space<vmem>>, vector<1x8x128xf32>
    %190 = vector.shape_cast %189 : vector<1x8x128xf32> to vector<8x128xf32>
    %191 = vector.shape_cast %187 : vector<8x128xf32> to vector<1x8x128xf32>
    tpu.vector_store %arg4[%188, %c0_119, %c0_120], %191 {strides = array<i32>} : memref<8x8x128xf32, #tpu.memory_space<vmem>>, vector<1x8x128xf32>,
    %c7_i32 = arith.constant 7 : i32
    %c0_121 = arith.constant 0 : index
    %c0_122 = arith.constant 0 : index
    %192 = vector.load %arg5[%c0_121, %c0_122] : memref<8x128xf32, #tpu.memory_space<vmem>>, vector<8x128xf32>
    %c0_123 = arith.constant 0 : index
    %c0_124 = arith.constant 0 : index
    %193 = vector.load %arg6[%c0_123, %c0_124] : memref<8x128xf32, #tpu.memory_space<vmem>>, vector<8x128xf32>
    %194 = arith.index_cast %c7_i32 : i32 to index
    %c0_125 = arith.constant 0 : index
    %c0_126 = arith.constant 0 : index
    %195 = vector.load %arg2[%194, %c0_125, %c0_126] : memref<8x8x128xf32, #tpu.memory_space<vmem>>, vector<1x8x128xf32>
    %196 = vector.shape_cast %195 : vector<1x8x128xf32> to vector<8x128xf32>
    %c0_127 = arith.constant 0 : index
    %c0_128 = arith.constant 0 : index
    %197 = vector.load %arg3[%c0_127, %c0_128] : memref<128x128xf32, #tpu.memory_space<vmem>>, vector<128x128xf32>
    %cst_129 = arith.constant dense<0.000000e+00> : vector<8x128xf32>
    %198 = tpu.matmul %193, %197, %cst_129 {dimension_numbers = #tpu.dot_dimension_numbers<[1], [0], [0], [1], [0, 0, 1, 1], [], []>} : vector<8x128xf32>, vector<128x128xf32>, vector<8x128xf32> -> vector<8x128xf32>
    %199 = arith.addf %196, %198 : vector<8x128xf32>
    %cst_130 = arith.constant 0.000000e+00 : f32
    %200 = vector.broadcast %cst_130 : f32 to vector<8x128xf32>
    %201 = arith.cmpf ogt, %193, %200 : vector<8x128xf32>
    %202 = vector.broadcast %cst : f32 to vector<8x128xf32>
    %203 = arith.mulf %202, %192 : vector<8x128xf32>
    %cst_131 = arith.constant 0.000000e+00 : f32
    %204 = vector.broadcast %cst_131 : f32 to vector<8x128xf32>
    %205 = arith.select %201, %204, %203 : vector<8x128xi1>, vector<8x128xf32>
    %206 = arith.addf %199, %205 : vector<8x128xf32>
    %207 = vector.broadcast %cst_1 : f32 to vector<8x128xf32>
    %208 = arith.cmpf ogt, %206, %207 : vector<8x128xf32>
    %209 = arith.extui %208 : vector<8x128xi1> to vector<8x128xi32>
    %210 = arith.sitofp %209 : vector<8x128xi32> to vector<8x128xf32>
    %c0_132 = arith.constant 0 : index
    %c0_133 = arith.constant 0 : index
    %211 = vector.load %arg5[%c0_132, %c0_133] : memref<8x128xf32, #tpu.memory_space<vmem>>, vector<8x128xf32>
    tpu.vector_store %arg5[%c0_132, %c0_133], %206 {strides = array<i32>} : memref<8x128xf32, #tpu.memory_space<vmem>>, vector<8x128xf32>,
    %c0_134 = arith.constant 0 : index
    %c0_135 = arith.constant 0 : index
    %212 = vector.load %arg6[%c0_134, %c0_135] : memref<8x128xf32, #tpu.memory_space<vmem>>, vector<8x128xf32>
    tpu.vector_store %arg6[%c0_134, %c0_135], %210 {strides = array<i32>} : memref<8x128xf32, #tpu.memory_space<vmem>>, vector<8x128xf32>,
    %213 = arith.extui %208 : vector<8x128xi1> to vector<8x128xi32>
    %214 = arith.sitofp %213 : vector<8x128xi32> to vector<8x128xf32>
    %215 = arith.index_cast %c7_i32 : i32 to index
    %c0_136 = arith.constant 0 : index
    %c0_137 = arith.constant 0 : index
    %216 = vector.load %arg4[%215, %c0_136, %c0_137] : memref<8x8x128xf32, #tpu.memory_space<vmem>>, vector<1x8x128xf32>
    %217 = vector.shape_cast %216 : vector<1x8x128xf32> to vector<8x128xf32>
    %218 = vector.shape_cast %214 : vector<8x128xf32> to vector<1x8x128xf32>
    tpu.vector_store %arg4[%215, %c0_136, %c0_137], %218 {strides = array<i32>} : memref<8x8x128xf32, #tpu.memory_space<vmem>>, vector<1x8x128xf32>,
    %c8_i32 = arith.constant 8 : i32
    return
  }
  func.func @transform_0(%arg0: i32, %arg1: i32) -> (i32, i32, i32) {
    %c0_i32 = arith.constant 0 : i32
    %c0_i32_0 = arith.constant 0 : i32
    return %arg1, %arg0, %c0_i32 : i32, i32, i32
  }
  func.func @transform_1(%arg0: i32, %arg1: i32) -> (i32, i32) {
    %c0_i32 = arith.constant 0 : i32
    %c0_i32_0 = arith.constant 0 : i32
    %c0_i32_1 = arith.constant 0 : i32
    return %c0_i32, %c0_i32_0 : i32, i32
  }
  func.func @transform_2(%arg0: i32, %arg1: i32) -> (i32, i32, i32) {
    %c0_i32 = arith.constant 0 : i32
    %c0_i32_0 = arith.constant 0 : i32
    return %arg1, %arg0, %c0_i32 : i32, i32, i32
  }
}

</mosaic_0001>

<llo_original>
// kernel: tpu_custom_call.1
$region0: #{tpu_custom_call.1}
  #allocation0 [shape = 'u32[]', space=smem, size = 0x4, offset = 0x4, fixed_abs, tag = 'smem constant byte address 0x4 - core index']
  #allocation1 [shape = 'u32[144,128]{1,0:T(1,128)}', space=vmem, size = 0x12000, scoped, tag = 'internal scratch']
  #allocation2 [shape = 'f32[8,128]{1,0:T(8,128)}', space=vmem, size = 0x1000, scoped, tag = 'scratch operand']
  #allocation3 [shape = 'f32[8,128]{1,0:T(8,128)}', space=vmem, size = 0x1000, scoped, tag = 'scratch operand']
  %s0 = inlined_call_operand.hbm [shape: f32[8,8,128], index: 0, kind: input, shape index: {}]
  %s1 = inlined_call_operand.hbm [shape: f32[128,128], index: 1, kind: input, shape index: {}]
  %s2 = inlined_call_operand.hbm [shape: f32[8,8,128], index: 2, kind: output, shape index: {}]
  %s3 = sld [smem:[#allocation0]]
  $region30: #{tpu_custom_call.1} parent=0
    _
  %s5 = ssub.s32 1, %s3
  %s6 = scalar_select 0, %s5, %s3
  $region1: #{tpu_custom_call.1} parent=0
    #allocation4 [shape = 'u8[32768]{0}', space=vmem, size = 0x8000, scoped, tag = 'input window, operand 0, single buffered']
    #allocation5 [shape = 's32[1]{0}', space=sflag, size = 0x4, scoped, tag = 'scoped memory for tpu_custom_call.1']
    #allocation6 [shape = 's32[1]{0}', space=sflag, size = 0x4, scoped, tag = 'scoped memory for tpu_custom_call.1']
    #allocation7 [shape = 'u8[65536]{0}', space=vmem, size = 0x10000, scoped, tag = 'input window, operand 1, single buffered']
    #allocation8 [shape = 's32[1]{0}', space=sflag, size = 0x4, scoped, tag = 'scoped memory for tpu_custom_call.1']
    #allocation9 [shape = 'u8[32768]{0}', space=vmem, size = 0x8000, scoped, tag = 'output window, operand 0, single buffered']
    %7 = vsyncpa [#allocation5], 0
    %8 = vsyncpa [#allocation8], 0
    %9 = vsyncpa [#allocation6], 0
    // Predicated region
    $region2: #{tpu_custom_call.1} parent=1 // pred_check
      _
    $region3: #{tpu_custom_call.1} parent=1 // pred_check_branch
      %11 = sbr.rel (0) target = $region5
    $region4: #{tpu_custom_call.1} parent=1 // pred_region
      %s13 = ssub.s32 1024, 1024
      %14 = vsyncadd [#allocation5], %s13
      %s15 = sshll.u32 [#allocation4], 4
      %s16 = int_to_ptr.vmem [resolvable:$true] %s15
      %21 = dma.hbm_to_vmem [thread:$0]  %s0, 1024, %s16, [#allocation5], 128, 128, 8
    $region5: #{tpu_custom_call.1} parent=1 // pred_fallthru
      _
    // Predicated region
    $region6: #{tpu_custom_call.1} parent=1 // pred_check
      _
    $region7: #{tpu_custom_call.1} parent=1 // pred_check_branch
      %23 = sbr.rel (0) target = $region9
    $region8: #{tpu_custom_call.1} parent=1 // pred_region
      %s25 = ssub.s32 2048, 2048
      %26 = vsyncadd [#allocation8], %s25
      %s27 = sshll.u32 [#allocation7], 4
      %s28 = int_to_ptr.vmem [resolvable:$true] %s27
      %33 = dma.hbm_to_vmem [thread:$0]  %s1, 2048, %s28, [#allocation8], 128, 128, 8
    $region9: #{tpu_custom_call.1} parent=1 // pred_fallthru
      _
    // Predicated region
    $region10: #{tpu_custom_call.1} parent=1 // pred_check
      _
    $region11: #{tpu_custom_call.1} parent=1 // pred_check_branch
      %35 = sbr.rel (0) target = $region13
    $region12: #{tpu_custom_call.1} parent=1 // pred_region
      %36 = dma.done [#allocation5], 1024
    $region13: #{tpu_custom_call.1} parent=1 // pred_fallthru
      _
    // Predicated region
    $region14: #{tpu_custom_call.1} parent=1 // pred_check
      _
    $region15: #{tpu_custom_call.1} parent=1 // pred_check_branch
      %38 = sbr.rel (0) target = $region17
    $region16: #{tpu_custom_call.1} parent=1 // pred_region
      %39 = dma.done [#allocation8], 2048
    $region17: #{tpu_custom_call.1} parent=1 // pred_fallthru
      _
    %p40 = scmp.eq.s32.totalorder 0, 0
    // Predicated region
    $region18: #{tpu_custom_call.1} parent=1 // pred_check
      %p41 = pneg %p40
    $region19: #{tpu_custom_call.1} parent=1 // pred_check_branch
      %43 = sbr.rel (%p41) target = $region21
    $region20: #{tpu_custom_call.1} parent=1 // pred_region
      %44 = vst [vmem:[#allocation2] sm:$0xff] 0.0
      %45 = vst [vmem:[#allocation3] sm:$0xff] 0.0
    $region21: #{tpu_custom_call.1} parent=1 // pred_fallthru
      _
    %v46 = vld [vmem:[#allocation2] sm:$0xff]
    %v47 = vld [vmem:[#allocation3] sm:$0xff]
    %v48 = vld [vmem:[#allocation4] sm:$0xff]
    %v49 = vld [vmem:[#allocation7] sm:$0xff]
    %v50 = vld [vmem:[#allocation7 + $0x8] sm:$0xff]
    %v51 = vld [vmem:[#allocation7 + $0x10] sm:$0xff]
    %v52 = vld [vmem:[#allocation7 + $0x18] sm:$0xff]
    %v53 = vld [vmem:[#allocation7 + $0x20] sm:$0xff]
    %v54 = vld [vmem:[#allocation7 + $0x28] sm:$0xff]
    %v55 = vld [vmem:[#allocation7 + $0x30] sm:$0xff]
    %v56 = vld [vmem:[#allocation7 + $0x38] sm:$0xff]
    %v57 = vld [vmem:[#allocation7 + $0x40] sm:$0xff]
    %v58 = vld [vmem:[#allocation7 + $0x48] sm:$0xff]
    %v59 = vld [vmem:[#allocation7 + $0x50] sm:$0xff]
    %v60 = vld [vmem:[#allocation7 + $0x58] sm:$0xff]
    %v61 = vld [vmem:[#allocation7 + $0x60] sm:$0xff]
    %v62 = vld [vmem:[#allocation7 + $0x68] sm:$0xff]
    %v63 = vld [vmem:[#allocation7 + $0x70] sm:$0xff]
    %v64 = vld [vmem:[#allocation7 + $0x78] sm:$0xff]
    %65 = vmatprep.subr.mxu0 0.0
    %66 = vmatpush1.msra.mxu0 %v49
    %67 = vmatprep.subr.mxu0 0.0
    %68 = vmatpush1.msra.mxu0 %v50
    %69 = vmatprep.subr.mxu0 0.0
    %70 = vmatpush1.msra.mxu0 %v51
    %71 = vmatprep.subr.mxu0 0.0
    %72 = vmatpush1.msra.mxu0 %v52
    %73 = vmatprep.subr.mxu0 0.0
    %74 = vmatpush1.msra.mxu0 %v53
    %75 = vmatprep.subr.mxu0 0.0
    %76 = vmatpush1.msra.mxu0 %v54
    %77 = vmatprep.subr.mxu0 0.0
    %78 = vmatpush1.msra.mxu0 %v55
    %79 = vmatprep.subr.mxu0 0.0
    %80 = vmatpush1.msra.mxu0 %v56
    %81 = vmatprep.subr.mxu0 0.0
    %82 = vmatpush1.msra.mxu0 %v57
    %83 = vmatprep.subr.mxu0 0.0
    %84 = vmatpush1.msra.mxu0 %v58
    %85 = vmatprep.subr.mxu0 0.0
    %86 = vmatpush1.msra.mxu0 %v59
    %87 = vmatprep.subr.mxu0 0.0
    %88 = vmatpush1.msra.mxu0 %v60
    %89 = vmatprep.subr.mxu0 0.0
    %90 = vmatpush1.msra.mxu0 %v61
    %91 = vmatprep.subr.mxu0 0.0
    %92 = vmatpush1.msra.mxu0 %v62
    %93 = vmatprep.subr.mxu0 0.0
    %94 = vmatpush1.msra.mxu0 %v63
    %95 = vmatprep.subr.mxu0 0.0
    %96 = vmatpush1.msra.mxu0 %v64
    %97 = vmatprep.subr.mxu0 0.0
    %98 = vmatpush1.msra.mxu0 0.0
    %99 = vmatprep.subr.mxu0 0.0
    %100 = vmatpush1.msra.mxu0 0.0
    %101 = vmatprep.subr.mxu0 0.0
    %102 = vmatpush1.msra.mxu0 0.0
    %103 = vmatprep.subr.mxu0 0.0
    %104 = vmatpush1.msra.mxu0 0.0
    %105 = vmatprep.subr.mxu0 0.0
    %106 = vmatpush1.msra.mxu0 0.0
    %107 = vmatprep.subr.mxu0 0.0
    %108 = vmatpush1.msra.mxu0 0.0
    %109 = vmatprep.subr.mxu0 0.0
    %110 = vmatpush1.msra.mxu0 0.0
    %111 = vmatprep.subr.mxu0 0.0
    %112 = vmatpush1.msra.mxu0 0.0
    %113 = vmatprep.subr.mxu0 0.0
    %114 = vmatpush1.msra.mxu0 0.0
    %115 = vmatprep.subr.mxu0 0.0
    %116 = vmatpush1.msra.mxu0 0.0
    %117 = vmatprep.subr.mxu0 0.0
    %118 = vmatpush1.msra.mxu0 0.0
    %119 = vmatprep.subr.mxu0 0.0
    %120 = vmatpush1.msra.mxu0 0.0
    %121 = vmatprep.subr.mxu0 0.0
    %122 = vmatpush1.msra.mxu0 0.0
    %123 = vmatprep.subr.mxu0 0.0
    %124 = vmatpush1.msra.mxu0 0.0
    %125 = vmatprep.subr.mxu0 0.0
    %126 = vmatpush1.msra.mxu0 0.0
    %127 = vmatprep.subr.mxu0 0.0
    %128 = vmatpush1.msra.mxu0 0.0
    %129 = vmatprep.mubr.f32.mxu0 0.0
    %130 = vmatmul.mubr.f32.gmra.mrb[0].mxu0 %v47
    %v131 = vpop.f32.mrb[0].mxu0
    %v132 = vadd.f32 0.0, %v131
    %v133 = vpop.f32.mrb[0].mxu0
    %134 = vdwg.mxu0
    %v135 = vadd.f32 %v48, %v132
    %vm136 = vcmp.gt.f32.partialorder %v47, 0.0
    %v137 = vmul.f32 %v46, 0.3
    %v138 = vsel %vm136, 0.0, %v137
    %v139 = vadd.f32 %v135, %v138
    %vm140 = vcmp.gt.f32.partialorder %v139, 0.5
    %v141 = vsel %vm140, 1, 0
    %v142 = vcvt.s32.f32 %v141
    %143 = vst [vmem:[#allocation2] sm:$0xff] %v139
    %144 = vst [vmem:[#allocation3] sm:$0xff] %v142
    %145 = vst [vmem:[#allocation9] sm:$0xff] %v142
    %v146 = vld [vmem:[#allocation2] sm:$0xff]
    %v147 = vld [vmem:[#allocation3] sm:$0xff]
    %s148 = scalar_lea.vmem [#allocation4], 8
    %v149 = vld [vmem:[%s148] sm:$0xff]
    %v150 = vld [vmem:[#allocation7] sm:$0xff]
    %v151 = vld [vmem:[#allocation7 + $0x8] sm:$0xff]
    %v152 = vld [vmem:[#allocation7 + $0x10] sm:$0xff]
    %v153 = vld [vmem:[#allocation7 + $0x18] sm:$0xff]
    %v154 = vld [vmem:[#allocation7 + $0x20] sm:$0xff]
    %v155 = vld [vmem:[#allocation7 + $0x28] sm:$0xff]
    %v156 = vld [vmem:[#allocation7 + $0x30] sm:$0xff]
    %v157 = vld [vmem:[#allocation7 + $0x38] sm:$0xff]
    %v158 = vld [vmem:[#allocation7 + $0x40] sm:$0xff]
    %v159 = vld [vmem:[#allocation7 + $0x48] sm:$0xff]
    %v160 = vld [vmem:[#allocation7 + $0x50] sm:$0xff]
    %v161 = vld [vmem:[#allocation7 + $0x58] sm:$0xff]
    %v162 = vld [vmem:[#allocation7 + $0x60] sm:$0xff]
    %v163 = vld [vmem:[#allocation7 + $0x68] sm:$0xff]
    %v164 = vld [vmem:[#allocation7 + $0x70] sm:$0xff]
    %v165 = vld [vmem:[#allocation7 + $0x78] sm:$0xff]
    %166 = vmatprep.subr.mxu0 0.0
    %167 = vmatpush1.msra.mxu0 %v150
    %168 = vmatprep.subr.mxu0 0.0
    %169 = vmatpush1.msra.mxu0 %v151
    %170 = vmatprep.subr.mxu0 0.0
    %171 = vmatpush1.msra.mxu0 %v152
    %172 = vmatprep.subr.mxu0 0.0
    %173 = vmatpush1.msra.mxu0 %v153
    %174 = vmatprep.subr.mxu0 0.0
    %175 = vmatpush1.msra.mxu0 %v154
    %176 = vmatprep.subr.mxu0 0.0
    %177 = vmatpush1.msra.mxu0 %v155
    %178 = vmatprep.subr.mxu0 0.0
    %179 = vmatpush1.msra.mxu0 %v156
    %180 = vmatprep.subr.mxu0 0.0
    %181 = vmatpush1.msra.mxu0 %v157
    %182 = vmatprep.subr.mxu0 0.0
    %183 = vmatpush1.msra.mxu0 %v158
    %184 = vmatprep.subr.mxu0 0.0
    %185 = vmatpush1.msra.mxu0 %v159
    %186 = vmatprep.subr.mxu0 0.0
    %187 = vmatpush1.msra.mxu0 %v160
    %188 = vmatprep.subr.mxu0 0.0
    %189 = vmatpush1.msra.mxu0 %v161
    %190 = vmatprep.subr.mxu0 0.0
    %191 = vmatpush1.msra.mxu0 %v162
    %192 = vmatprep.subr.mxu0 0.0
    %193 = vmatpush1.msra.mxu0 %v163
    %194 = vmatprep.subr.mxu0 0.0
    %195 = vmatpush1.msra.mxu0 %v164
    %196 = vmatprep.subr.mxu0 0.0
    %197 = vmatpush1.msra.mxu0 %v165
    %198 = vmatprep.subr.mxu0 0.0
    %199 = vmatpush1.msra.mxu0 0.0
    %200 = vmatprep.subr.mxu0 0.0
    %201 = vmatpush1.msra.mxu0 0.0
    %202 = vmatprep.subr.mxu0 0.0
    %203 = vmatpush1.msra.mxu0 0.0
    %204 = vmatprep.subr.mxu0 0.0
    %205 = vmatpush1.msra.mxu0 0.0
    %206 = vmatprep.subr.mxu0 0.0
    %207 = vmatpush1.msra.mxu0 0.0
    %208 = vmatprep.subr.mxu0 0.0
    %209 = vmatpush1.msra.mxu0 0.0
    %210 = vmatprep.subr.mxu0 0.0
    %211 = vmatpush1.msra.mxu0 0.0
    %212 = vmatprep.subr.mxu0 0.0
    %213 = vmatpush1.msra.mxu0 0.0
    %214 = vmatprep.subr.mxu0 0.0
    %215 = vmatpush1.msra.mxu0 0.0
    %216 = vmatprep.subr.mxu0 0.0
    %217 = vmatpush1.msra.mxu0 0.0
    %218 = vmatprep.subr.mxu0 0.0
    %219 = vmatpush1.msra.mxu0 0.0
    %220 = vmatprep.subr.mxu0 0.0
    %221 = vmatpush1.msra.mxu0 0.0
    %222 = vmatprep.subr.mxu0 0.0
    %223 = vmatpush1.msra.mxu0 0.0
    %224 = vmatprep.subr.mxu0 0.0
    %225 = vmatpush1.msra.mxu0 0.0
    %226 = vmatprep.subr.mxu0 0.0
    %227 = vmatpush1.msra.mxu0 0.0
    %228 = vmatprep.subr.mxu0 0.0
    %229 = vmatpush1.msra.mxu0 0.0
    %230 = vmatprep.mubr.f32.mxu0 0.0
    %231 = vmatmul.mubr.f32.gmra.mrb[0].mxu0 %v147
    %v232 = vpop.f32.mrb[0].mxu0
    %v233 = vadd.f32 0.0, %v232
    %v234 = vpop.f32.mrb[0].mxu0
    %235 = vdwg.mxu0
    %v236 = vadd.f32 %v149, %v233
    %vm237 = vcmp.gt.f32.partialorder %v147, 0.0
    %v238 = vmul.f32 %v146, 0.3
    %v239 = vsel %vm237, 0.0, %v238
    %v240 = vadd.f32 %v236, %v239
    %vm241 = vcmp.gt.f32.partialorder %v240, 0.5
    %v242 = vsel %vm241, 1, 0
    %v243 = vcvt.s32.f32 %v242
    %244 = vst [vmem:[#allocation2] sm:$0xff] %v240
    %245 = vst [vmem:[#allocation3] sm:$0xff] %v243
    %s246 = scalar_lea.vmem [#allocation9], 8
    %247 = vst [vmem:[%s246] sm:$0xff] %v243
    %v248 = vld [vmem:[#allocation2] sm:$0xff]
    %v249 = vld [vmem:[#allocation3] sm:$0xff]
    %s250 = scalar_lea.vmem [#allocation4], 16
    %v251 = vld [vmem:[%s250] sm:$0xff]
    %v252 = vld [vmem:[#allocation7] sm:$0xff]
    %v253 = vld [vmem:[#allocation7 + $0x8] sm:$0xff]
    %v254 = vld [vmem:[#allocation7 + $0x10] sm:$0xff]
    %v255 = vld [vmem:[#allocation7 + $0x18] sm:$0xff]
    %v256 = vld [vmem:[#allocation7 + $0x20] sm:$0xff]
    %v257 = vld [vmem:[#allocation7 + $0x28] sm:$0xff]
    %v258 = vld [vmem:[#allocation7 + $0x30] sm:$0xff]
    %v259 = vld [vmem:[#allocation7 + $0x38] sm:$0xff]
    %v260 = vld [vmem:[#allocation7 + $0x40] sm:$0xff]
    %v261 = vld [vmem:[#allocation7 + $0x48] sm:$0xff]
    %v262 = vld [vmem:[#allocation7 + $0x50] sm:$0xff]
    %v263 = vld [vmem:[#allocation7 + $0x58] sm:$0xff]
    %v264 = vld [vmem:[#allocation7 + $0x60] sm:$0xff]
    %v265 = vld [vmem:[#allocation7 + $0x68] sm:$0xff]
    %v266 = vld [vmem:[#allocation7 + $0x70] sm:$0xff]
    %v267 = vld [vmem:[#allocation7 + $0x78] sm:$0xff]
    %268 = vmatprep.subr.mxu0 0.0
    %269 = vmatpush1.msra.mxu0 %v252
    %270 = vmatprep.subr.mxu0 0.0
    %271 = vmatpush1.msra.mxu0 %v253
    %272 = vmatprep.subr.mxu0 0.0
    %273 = vmatpush1.msra.mxu0 %v254
    %274 = vmatprep.subr.mxu0 0.0
    %275 = vmatpush1.msra.mxu0 %v255
    %276 = vmatprep.subr.mxu0 0.0
    %277 = vmatpush1.msra.mxu0 %v256
    %278 = vmatprep.subr.mxu0 0.0
    %279 = vmatpush1.msra.mxu0 %v257
    %280 = vmatprep.subr.mxu0 0.0
    %281 = vmatpush1.msra.mxu0 %v258
    %282 = vmatprep.subr.mxu0 0.0
    %283 = vmatpush1.msra.mxu0 %v259
    %284 = vmatprep.subr.mxu0 0.0
    %285 = vmatpush1.msra.mxu0 %v260
    %286 = vmatprep.subr.mxu0 0.0
    %287 = vmatpush1.msra.mxu0 %v261
    %288 = vmatprep.subr.mxu0 0.0
    %289 = vmatpush1.msra.mxu0 %v262
    %290 = vmatprep.subr.mxu0 0.0
    %291 = vmatpush1.msra.mxu0 %v263
    %292 = vmatprep.subr.mxu0 0.0
    %293 = vmatpush1.msra.mxu0 %v264
    %294 = vmatprep.subr.mxu0 0.0
    %295 = vmatpush1.msra.mxu0 %v265
    %296 = vmatprep.subr.mxu0 0.0
    %297 = vmatpush1.msra.mxu0 %v266
    %298 = vmatprep.subr.mxu0 0.0
    %299 = vmatpush1.msra.mxu0 %v267
    %300 = vmatprep.subr.mxu0 0.0
    %301 = vmatpush1.msra.mxu0 0.0
    %302 = vmatprep.subr.mxu0 0.0
    %303 = vmatpush1.msra.mxu0 0.0
    %304 = vmatprep.subr.mxu0 0.0
    %305 = vmatpush1.msra.mxu0 0.0
    %306 = vmatprep.subr.mxu0 0.0
    %307 = vmatpush1.msra.mxu0 0.0
    %308 = vmatprep.subr.mxu0 0.0
    %309 = vmatpush1.msra.mxu0 0.0
    %310 = vmatprep.subr.mxu0 0.0
    %311 = vmatpush1.msra.mxu0 0.0
    %312 = vmatprep.subr.mxu0 0.0
    %313 = vmatpush1.msra.mxu0 0.0
    %314 = vmatprep.subr.mxu0 0.0
    %315 = vmatpush1.msra.mxu0 0.0
    %316 = vmatprep.subr.mxu0 0.0
    %317 = vmatpush1.msra.mxu0 0.0
    %318 = vmatprep.subr.mxu0 0.0
    %319 = vmatpush1.msra.mxu0 0.0
    %320 = vmatprep.subr.mxu0 0.0
    %321 = vmatpush1.msra.mxu0 0.0
    %322 = vmatprep.subr.mxu0 0.0
    %323 = vmatpush1.msra.mxu0 0.0
    %324 = vmatprep.subr.mxu0 0.0
    %325 = vmatpush1.msra.mxu0 0.0
    %326 = vmatprep.subr.mxu0 0.0
    %327 = vmatpush1.msra.mxu0 0.0
    %328 = vmatprep.subr.mxu0 0.0
    %329 = vmatpush1.msra.mxu0 0.0
    %330 = vmatprep.subr.mxu0 0.0
    %331 = vmatpush1.msra.mxu0 0.0
    %332 = vmatprep.mubr.f32.mxu0 0.0
    %333 = vmatmul.mubr.f32.gmra.mrb[0].mxu0 %v249
    %v334 = vpop.f32.mrb[0].mxu0
    %v335 = vadd.f32 0.0, %v334
    %v336 = vpop.f32.mrb[0].mxu0
    %337 = vdwg.mxu0
    %v338 = vadd.f32 %v251, %v335
    %vm339 = vcmp.gt.f32.partialorder %v249, 0.0
    %v340 = vmul.f32 %v248, 0.3
    %v341 = vsel %vm339, 0.0, %v340
    %v342 = vadd.f32 %v338, %v341
    %vm343 = vcmp.gt.f32.partialorder %v342, 0.5
    %v344 = vsel %vm343, 1, 0
    %v345 = vcvt.s32.f32 %v344
    %346 = vst [vmem:[#allocation2] sm:$0xff] %v342
    %347 = vst [vmem:[#allocation3] sm:$0xff] %v345
    %s348 = scalar_lea.vmem [#allocation9], 16
    %349 = vst [vmem:[%s348] sm:$0xff] %v345
    %v350 = vld [vmem:[#allocation2] sm:$0xff]
    %v351 = vld [vmem:[#allocation3] sm:$0xff]
    %s352 = scalar_lea.vmem [#allocation4], 24
    %v353 = vld [vmem:[%s352] sm:$0xff]
    %v354 = vld [vmem:[#allocation7] sm:$0xff]
    %v355 = vld [vmem:[#allocation7 + $0x8] sm:$0xff]
    %v356 = vld [vmem:[#allocation7 + $0x10] sm:$0xff]
    %v357 = vld [vmem:[#allocation7 + $0x18] sm:$0xff]
    %v358 = vld [vmem:[#allocation7 + $0x20] sm:$0xff]
    %v359 = vld [vmem:[#allocation7 + $0x28] sm:$0xff]
    %v360 = vld [vmem:[#allocation7 + $0x30] sm:$0xff]
    %v361 = vld [vmem:[#allocation7 + $0x38] sm:$0xff]
    %v362 = vld [vmem:[#allocation7 + $0x40] sm:$0xff]
    %v363 = vld [vmem:[#allocation7 + $0x48] sm:$0xff]
    %v364 = vld [vmem:[#allocation7 + $0x50] sm:$0xff]
    %v365 = vld [vmem:[#allocation7 + $0x58] sm:$0xff]
    %v366 = vld [vmem:[#allocation7 + $0x60] sm:$0xff]
    %v367 = vld [vmem:[#allocation7 + $0x68] sm:$0xff]
    %v368 = vld [vmem:[#allocation7 + $0x70] sm:$0xff]
    %v369 = vld [vmem:[#allocation7 + $0x78] sm:$0xff]
    %370 = vmatprep.subr.mxu0 0.0
    %371 = vmatpush1.msra.mxu0 %v354
    %372 = vmatprep.subr.mxu0 0.0
    %373 = vmatpush1.msra.mxu0 %v355
    %374 = vmatprep.subr.mxu0 0.0
    %375 = vmatpush1.msra.mxu0 %v356
    %376 = vmatprep.subr.mxu0 0.0
    %377 = vmatpush1.msra.mxu0 %v357
    %378 = vmatprep.subr.mxu0 0.0
    %379 = vmatpush1.msra.mxu0 %v358
    %380 = vmatprep.subr.mxu0 0.0
    %381 = vmatpush1.msra.mxu0 %v359
    %382 = vmatprep.subr.mxu0 0.0
    %383 = vmatpush1.msra.mxu0 %v360
    %384 = vmatprep.subr.mxu0 0.0
    %385 = vmatpush1.msra.mxu0 %v361
    %386 = vmatprep.subr.mxu0 0.0
    %387 = vmatpush1.msra.mxu0 %v362
    %388 = vmatprep.subr.mxu0 0.0
    %389 = vmatpush1.msra.mxu0 %v363
    %390 = vmatprep.subr.mxu0 0.0
    %391 = vmatpush1.msra.mxu0 %v364
    %392 = vmatprep.subr.mxu0 0.0
    %393 = vmatpush1.msra.mxu0 %v365
    %394 = vmatprep.subr.mxu0 0.0
    %395 = vmatpush1.msra.mxu0 %v366
    %396 = vmatprep.subr.mxu0 0.0
    %397 = vmatpush1.msra.mxu0 %v367
    %398 = vmatprep.subr.mxu0 0.0
    %399 = vmatpush1.msra.mxu0 %v368
    %400 = vmatprep.subr.mxu0 0.0
    %401 = vmatpush1.msra.mxu0 %v369
    %402 = vmatprep.subr.mxu0 0.0
    %403 = vmatpush1.msra.mxu0 0.0
    %404 = vmatprep.subr.mxu0 0.0
    %405 = vmatpush1.msra.mxu0 0.0
    %406 = vmatprep.subr.mxu0 0.0
    %407 = vmatpush1.msra.mxu0 0.0
    %408 = vmatprep.subr.mxu0 0.0
    %409 = vmatpush1.msra.mxu0 0.0
    %410 = vmatprep.subr.mxu0 0.0
    %411 = vmatpush1.msra.mxu0 0.0
    %412 = vmatprep.subr.mxu0 0.0
    %413 = vmatpush1.msra.mxu0 0.0
    %414 = vmatprep.subr.mxu0 0.0
    %415 = vmatpush1.msra.mxu0 0.0
    %416 = vmatprep.subr.mxu0 0.0
    %417 = vmatpush1.msra.mxu0 0.0
    %418 = vmatprep.subr.mxu0 0.0
    %419 = vmatpush1.msra.mxu0 0.0
    %420 = vmatprep.subr.mxu0 0.0
    %421 = vmatpush1.msra.mxu0 0.0
    %422 = vmatprep.subr.mxu0 0.0
    %423 = vmatpush1.msra.mxu0 0.0
    %424 = vmatprep.subr.mxu0 0.0
    %425 = vmatpush1.msra.mxu0 0.0
    %426 = vmatprep.subr.mxu0 0.0
    %427 = vmatpush1.msra.mxu0 0.0
    %428 = vmatprep.subr.mxu0 0.0
    %429 = vmatpush1.msra.mxu0 0.0
    %430 = vmatprep.subr.mxu0 0.0
    %431 = vmatpush1.msra.mxu0 0.0
    %432 = vmatprep.subr.mxu0 0.0
    %433 = vmatpush1.msra.mxu0 0.0
    %434 = vmatprep.mubr.f32.mxu0 0.0
    %435 = vmatmul.mubr.f32.gmra.mrb[0].mxu0 %v351
    %v436 = vpop.f32.mrb[0].mxu0
    %v437 = vadd.f32 0.0, %v436
    %v438 = vpop.f32.mrb[0].mxu0
    %439 = vdwg.mxu0
    %v440 = vadd.f32 %v353, %v437
    %vm441 = vcmp.gt.f32.partialorder %v351, 0.0
    %v442 = vmul.f32 %v350, 0.3
    %v443 = vsel %vm441, 0.0, %v442
    %v444 = vadd.f32 %v440, %v443
    %vm445 = vcmp.gt.f32.partialorder %v444, 0.5
    %v446 = vsel %vm445, 1, 0
    %v447 = vcvt.s32.f32 %v446
    %448 = vst [vmem:[#allocation2] sm:$0xff] %v444
    %449 = vst [vmem:[#allocation3] sm:$0xff] %v447
    %s450 = scalar_lea.vmem [#allocation9], 24
    %451 = vst [vmem:[%s450] sm:$0xff] %v447
    %v452 = vld [vmem:[#allocation2] sm:$0xff]
    %v453 = vld [vmem:[#allocation3] sm:$0xff]
    %s454 = scalar_lea.vmem [#allocation4], 32
    %v455 = vld [vmem:[%s454] sm:$0xff]
    %v456 = vld [vmem:[#allocation7] sm:$0xff]
    %v457 = vld [vmem:[#allocation7 + $0x8] sm:$0xff]
    %v458 = vld [vmem:[#allocation7 + $0x10] sm:$0xff]
    %v459 = vld [vmem:[#allocation7 + $0x18] sm:$0xff]
    %v460 = vld [vmem:[#allocation7 + $0x20] sm:$0xff]
    %v461 = vld [vmem:[#allocation7 + $0x28] sm:$0xff]
    %v462 = vld [vmem:[#allocation7 + $0x30] sm:$0xff]
    %v463 = vld [vmem:[#allocation7 + $0x38] sm:$0xff]
    %v464 = vld [vmem:[#allocation7 + $0x40] sm:$0xff]
    %v465 = vld [vmem:[#allocation7 + $0x48] sm:$0xff]
    %v466 = vld [vmem:[#allocation7 + $0x50] sm:$0xff]
    %v467 = vld [vmem:[#allocation7 + $0x58] sm:$0xff]
    %v468 = vld [vmem:[#allocation7 + $0x60] sm:$0xff]
    %v469 = vld [vmem:[#allocation7 + $0x68] sm:$0xff]
    %v470 = vld [vmem:[#allocation7 + $0x70] sm:$0xff]
    %v471 = vld [vmem:[#allocation7 + $0x78] sm:$0xff]
    %472 = vmatprep.subr.mxu0 0.0
    %473 = vmatpush1.msra.mxu0 %v456
    %474 = vmatprep.subr.mxu0 0.0
    %475 = vmatpush1.msra.mxu0 %v457
    %476 = vmatprep.subr.mxu0 0.0
    %477 = vmatpush1.msra.mxu0 %v458
    %478 = vmatprep.subr.mxu0 0.0
    %479 = vmatpush1.msra.mxu0 %v459
    %480 = vmatprep.subr.mxu0 0.0
    %481 = vmatpush1.msra.mxu0 %v460
    %482 = vmatprep.subr.mxu0 0.0
    %483 = vmatpush1.msra.mxu0 %v461
    %484 = vmatprep.subr.mxu0 0.0
    %485 = vmatpush1.msra.mxu0 %v462
    %486 = vmatprep.subr.mxu0 0.0
    %487 = vmatpush1.msra.mxu0 %v463
    %488 = vmatprep.subr.mxu0 0.0
    %489 = vmatpush1.msra.mxu0 %v464
    %490 = vmatprep.subr.mxu0 0.0
    %491 = vmatpush1.msra.mxu0 %v465
    %492 = vmatprep.subr.mxu0 0.0
    %493 = vmatpush1.msra.mxu0 %v466
    %494 = vmatprep.subr.mxu0 0.0
    %495 = vmatpush1.msra.mxu0 %v467
    %496 = vmatprep.subr.mxu0 0.0
    %497 = vmatpush1.msra.mxu0 %v468
    %498 = vmatprep.subr.mxu0 0.0
    %499 = vmatpush1.msra.mxu0 %v469
    %500 = vmatprep.subr.mxu0 0.0
    %501 = vmatpush1.msra.mxu0 %v470
    %502 = vmatprep.subr.mxu0 0.0
    %503 = vmatpush1.msra.mxu0 %v471
    %504 = vmatprep.subr.mxu0 0.0
    %505 = vmatpush1.msra.mxu0 0.0
    %506 = vmatprep.subr.mxu0 0.0
    %507 = vmatpush1.msra.mxu0 0.0
    %508 = vmatprep.subr.mxu0 0.0
    %509 = vmatpush1.msra.mxu0 0.0
    %510 = vmatprep.subr.mxu0 0.0
    %511 = vmatpush1.msra.mxu0 0.0
    %512 = vmatprep.subr.mxu0 0.0
    %513 = vmatpush1.msra.mxu0 0.0
    %514 = vmatprep.subr.mxu0 0.0
    %515 = vmatpush1.msra.mxu0 0.0
    %516 = vmatprep.subr.mxu0 0.0
    %517 = vmatpush1.msra.mxu0 0.0
    %518 = vmatprep.subr.mxu0 0.0
    %519 = vmatpush1.msra.mxu0 0.0
    %520 = vmatprep.subr.mxu0 0.0
    %521 = vmatpush1.msra.mxu0 0.0
    %522 = vmatprep.subr.mxu0 0.0
    %523 = vmatpush1.msra.mxu0 0.0
    %524 = vmatprep.subr.mxu0 0.0
    %525 = vmatpush1.msra.mxu0 0.0
    %526 = vmatprep.subr.mxu0 0.0
    %527 = vmatpush1.msra.mxu0 0.0
    %528 = vmatprep.subr.mxu0 0.0
    %529 = vmatpush1.msra.mxu0 0.0
    %530 = vmatprep.subr.mxu0 0.0
    %531 = vmatpush1.msra.mxu0 0.0
    %532 = vmatprep.subr.mxu0 0.0
    %533 = vmatpush1.msra.mxu0 0.0
    %534 = vmatprep.subr.mxu0 0.0
    %535 = vmatpush1.msra.mxu0 0.0
    %536 = vmatprep.mubr.f32.mxu0 0.0
    %537 = vmatmul.mubr.f32.gmra.mrb[0].mxu0 %v453
    %v538 = vpop.f32.mrb[0].mxu0
    %v539 = vadd.f32 0.0, %v538
    %v540 = vpop.f32.mrb[0].mxu0
    %541 = vdwg.mxu0
    %v542 = vadd.f32 %v455, %v539
    %vm543 = vcmp.gt.f32.partialorder %v453, 0.0
    %v544 = vmul.f32 %v452, 0.3
    %v545 = vsel %vm543, 0.0, %v544
    %v546 = vadd.f32 %v542, %v545
    %vm547 = vcmp.gt.f32.partialorder %v546, 0.5
    %v548 = vsel %vm547, 1, 0
    %v549 = vcvt.s32.f32 %v548
    %550 = vst [vmem:[#allocation2] sm:$0xff] %v546
    %551 = vst [vmem:[#allocation3] sm:$0xff] %v549
    %s552 = scalar_lea.vmem [#allocation9], 32
    %553 = vst [vmem:[%s552] sm:$0xff] %v549
    %v554 = vld [vmem:[#allocation2] sm:$0xff]
    %v555 = vld [vmem:[#allocation3] sm:$0xff]
    %s556 = scalar_lea.vmem [#allocation4], 40
    %v557 = vld [vmem:[%s556] sm:$0xff]
    %v558 = vld [vmem:[#allocation7] sm:$0xff]
    %v559 = vld [vmem:[#allocation7 + $0x8] sm:$0xff]
    %v560 = vld [vmem:[#allocation7 + $0x10] sm:$0xff]
    %v561 = vld [vmem:[#allocation7 + $0x18] sm:$0xff]
    %v562 = vld [vmem:[#allocation7 + $0x20] sm:$0xff]
    %v563 = vld [vmem:[#allocation7 + $0x28] sm:$0xff]
    %v564 = vld [vmem:[#allocation7 + $0x30] sm:$0xff]
    %v565 = vld [vmem:[#allocation7 + $0x38] sm:$0xff]
    %v566 = vld [vmem:[#allocation7 + $0x40] sm:$0xff]
    %v567 = vld [vmem:[#allocation7 + $0x48] sm:$0xff]
    %v568 = vld [vmem:[#allocation7 + $0x50] sm:$0xff]
    %v569 = vld [vmem:[#allocation7 + $0x58] sm:$0xff]
    %v570 = vld [vmem:[#allocation7 + $0x60] sm:$0xff]
    %v571 = vld [vmem:[#allocation7 + $0x68] sm:$0xff]
    %v572 = vld [vmem:[#allocation7 + $0x70] sm:$0xff]
    %v573 = vld [vmem:[#allocation7 + $0x78] sm:$0xff]
    %574 = vmatprep.subr.mxu0 0.0
    %575 = vmatpush1.msra.mxu0 %v558
    %576 = vmatprep.subr.mxu0 0.0
    %577 = vmatpush1.msra.mxu0 %v559
    %578 = vmatprep.subr.mxu0 0.0
    %579 = vmatpush1.msra.mxu0 %v560
    %580 = vmatprep.subr.mxu0 0.0
    %581 = vmatpush1.msra.mxu0 %v561
    %582 = vmatprep.subr.mxu0 0.0
    %583 = vmatpush1.msra.mxu0 %v562
    %584 = vmatprep.subr.mxu0 0.0
    %585 = vmatpush1.msra.mxu0 %v563
    %586 = vmatprep.subr.mxu0 0.0
    %587 = vmatpush1.msra.mxu0 %v564
    %588 = vmatprep.subr.mxu0 0.0
    %589 = vmatpush1.msra.mxu0 %v565
    %590 = vmatprep.subr.mxu0 0.0
    %591 = vmatpush1.msra.mxu0 %v566
    %592 = vmatprep.subr.mxu0 0.0
    %593 = vmatpush1.msra.mxu0 %v567
    %594 = vmatprep.subr.mxu0 0.0
    %595 = vmatpush1.msra.mxu0 %v568
    %596 = vmatprep.subr.mxu0 0.0
    %597 = vmatpush1.msra.mxu0 %v569
    %598 = vmatprep.subr.mxu0 0.0
    %599 = vmatpush1.msra.mxu0 %v570
    %600 = vmatprep.subr.mxu0 0.0
    %601 = vmatpush1.msra.mxu0 %v571
    %602 = vmatprep.subr.mxu0 0.0
    %603 = vmatpush1.msra.mxu0 %v572
    %604 = vmatprep.subr.mxu0 0.0
    %605 = vmatpush1.msra.mxu0 %v573
    %606 = vmatprep.subr.mxu0 0.0
    %607 = vmatpush1.msra.mxu0 0.0
    %608 = vmatprep.subr.mxu0 0.0
    %609 = vmatpush1.msra.mxu0 0.0
    %610 = vmatprep.subr.mxu0 0.0
    %611 = vmatpush1.msra.mxu0 0.0
    %612 = vmatprep.subr.mxu0 0.0
    %613 = vmatpush1.msra.mxu0 0.0
    %614 = vmatprep.subr.mxu0 0.0
    %615 = vmatpush1.msra.mxu0 0.0
    %616 = vmatprep.subr.mxu0 0.0
    %617 = vmatpush1.msra.mxu0 0.0
    %618 = vmatprep.subr.mxu0 0.0
    %619 = vmatpush1.msra.mxu0 0.0
    %620 = vmatprep.subr.mxu0 0.0
    %621 = vmatpush1.msra.mxu0 0.0
    %622 = vmatprep.subr.mxu0 0.0
    %623 = vmatpush1.msra.mxu0 0.0
    %624 = vmatprep.subr.mxu0 0.0
    %625 = vmatpush1.msra.mxu0 0.0
    %626 = vmatprep.subr.mxu0 0.0
    %627 = vmatpush1.msra.mxu0 0.0
    %628 = vmatprep.subr.mxu0 0.0
    %629 = vmatpush1.msra.mxu0 0.0
    %630 = vmatprep.subr.mxu0 0.0
    %631 = vmatpush1.msra.mxu0 0.0
    %632 = vmatprep.subr.mxu0 0.0
    %633 = vmatpush1.msra.mxu0 0.0
    %634 = vmatprep.subr.mxu0 0.0
    %635 = vmatpush1.msra.mxu0 0.0
    %636 = vmatprep.subr.mxu0 0.0
    %637 = vmatpush1.msra.mxu0 0.0
    %638 = vmatprep.mubr.f32.mxu0 0.0
    %639 = vmatmul.mubr.f32.gmra.mrb[0].mxu0 %v555
    %v640 = vpop.f32.mrb[0].mxu0
    %v641 = vadd.f32 0.0, %v640
    %v642 = vpop.f32.mrb[0].mxu0
    %643 = vdwg.mxu0
    %v644 = vadd.f32 %v557, %v641
    %vm645 = vcmp.gt.f32.partialorder %v555, 0.0
    %v646 = vmul.f32 %v554, 0.3
    %v647 = vsel %vm645, 0.0, %v646
    %v648 = vadd.f32 %v644, %v647
    %vm649 = vcmp.gt.f32.partialorder %v648, 0.5
    %v650 = vsel %vm649, 1, 0
    %v651 = vcvt.s32.f32 %v650
    %652 = vst [vmem:[#allocation2] sm:$0xff] %v648
    %653 = vst [vmem:[#allocation3] sm:$0xff] %v651
    %s654 = scalar_lea.vmem [#allocation9], 40
    %655 = vst [vmem:[%s654] sm:$0xff] %v651
    %v656 = vld [vmem:[#allocation2] sm:$0xff]
    %v657 = vld [vmem:[#allocation3] sm:$0xff]
    %s658 = scalar_lea.vmem [#allocation4], 48
    %v659 = vld [vmem:[%s658] sm:$0xff]
    %v660 = vld [vmem:[#allocation7] sm:$0xff]
    %v661 = vld [vmem:[#allocation7 + $0x8] sm:$0xff]
    %v662 = vld [vmem:[#allocation7 + $0x10] sm:$0xff]
    %v663 = vld [vmem:[#allocation7 + $0x18] sm:$0xff]
    %v664 = vld [vmem:[#allocation7 + $0x20] sm:$0xff]
    %v665 = vld [vmem:[#allocation7 + $0x28] sm:$0xff]
    %v666 = vld [vmem:[#allocation7 + $0x30] sm:$0xff]
    %v667 = vld [vmem:[#allocation7 + $0x38] sm:$0xff]
    %v668 = vld [vmem:[#allocation7 + $0x40] sm:$0xff]
    %v669 = vld [vmem:[#allocation7 + $0x48] sm:$0xff]
    %v670 = vld [vmem:[#allocation7 + $0x50] sm:$0xff]
    %v671 = vld [vmem:[#allocation7 + $0x58] sm:$0xff]
    %v672 = vld [vmem:[#allocation7 + $0x60] sm:$0xff]
    %v673 = vld [vmem:[#allocation7 + $0x68] sm:$0xff]
    %v674 = vld [vmem:[#allocation7 + $0x70] sm:$0xff]
    %v675 = vld [vmem:[#allocation7 + $0x78] sm:$0xff]
    %676 = vmatprep.subr.mxu0 0.0
    %677 = vmatpush1.msra.mxu0 %v660
    %678 = vmatprep.subr.mxu0 0.0
    %679 = vmatpush1.msra.mxu0 %v661
    %680 = vmatprep.subr.mxu0 0.0
    %681 = vmatpush1.msra.mxu0 %v662
    %682 = vmatprep.subr.mxu0 0.0
    %683 = vmatpush1.msra.mxu0 %v663
    %684 = vmatprep.subr.mxu0 0.0
    %685 = vmatpush1.msra.mxu0 %v664
    %686 = vmatprep.subr.mxu0 0.0
    %687 = vmatpush1.msra.mxu0 %v665
    %688 = vmatprep.subr.mxu0 0.0
    %689 = vmatpush1.msra.mxu0 %v666
    %690 = vmatprep.subr.mxu0 0.0
    %691 = vmatpush1.msra.mxu0 %v667
    %692 = vmatprep.subr.mxu0 0.0
    %693 = vmatpush1.msra.mxu0 %v668
    %694 = vmatprep.subr.mxu0 0.0
    %695 = vmatpush1.msra.mxu0 %v669
    %696 = vmatprep.subr.mxu0 0.0
    %697 = vmatpush1.msra.mxu0 %v670
    %698 = vmatprep.subr.mxu0 0.0
    %699 = vmatpush1.msra.mxu0 %v671
    %700 = vmatprep.subr.mxu0 0.0
    %701 = vmatpush1.msra.mxu0 %v672
    %702 = vmatprep.subr.mxu0 0.0
    %703 = vmatpush1.msra.mxu0 %v673
    %704 = vmatprep.subr.mxu0 0.0
    %705 = vmatpush1.msra.mxu0 %v674
    %706 = vmatprep.subr.mxu0 0.0
    %707 = vmatpush1.msra.mxu0 %v675
    %708 = vmatprep.subr.mxu0 0.0
    %709 = vmatpush1.msra.mxu0 0.0
    %710 = vmatprep.subr.mxu0 0.0
    %711 = vmatpush1.msra.mxu0 0.0
    %712 = vmatprep.subr.mxu0 0.0
    %713 = vmatpush1.msra.mxu0 0.0
    %714 = vmatprep.subr.mxu0 0.0
    %715 = vmatpush1.msra.mxu0 0.0
    %716 = vmatprep.subr.mxu0 0.0
    %717 = vmatpush1.msra.mxu0 0.0
    %718 = vmatprep.subr.mxu0 0.0
    %719 = vmatpush1.msra.mxu0 0.0
    %720 = vmatprep.subr.mxu0 0.0
    %721 = vmatpush1.msra.mxu0 0.0
    %722 = vmatprep.subr.mxu0 0.0
    %723 = vmatpush1.msra.mxu0 0.0
    %724 = vmatprep.subr.mxu0 0.0
    %725 = vmatpush1.msra.mxu0 0.0
    %726 = vmatprep.subr.mxu0 0.0
    %727 = vmatpush1.msra.mxu0 0.0
    %728 = vmatprep.subr.mxu0 0.0
    %729 = vmatpush1.msra.mxu0 0.0
    %730 = vmatprep.subr.mxu0 0.0
    %731 = vmatpush1.msra.mxu0 0.0
    %732 = vmatprep.subr.mxu0 0.0
    %733 = vmatpush1.msra.mxu0 0.0
    %734 = vmatprep.subr.mxu0 0.0
    %735 = vmatpush1.msra.mxu0 0.0
    %736 = vmatprep.subr.mxu0 0.0
    %737 = vmatpush1.msra.mxu0 0.0
    %738 = vmatprep.subr.mxu0 0.0
    %739 = vmatpush1.msra.mxu0 0.0
    %740 = vmatprep.mubr.f32.mxu0 0.0
    %741 = vmatmul.mubr.f32.gmra.mrb[0].mxu0 %v657
    %v742 = vpop.f32.mrb[0].mxu0
    %v743 = vadd.f32 0.0, %v742
    %v744 = vpop.f32.mrb[0].mxu0
    %745 = vdwg.mxu0
    %v746 = vadd.f32 %v659, %v743
    %vm747 = vcmp.gt.f32.partialorder %v657, 0.0
    %v748 = vmul.f32 %v656, 0.3
    %v749 = vsel %vm747, 0.0, %v748
    %v750 = vadd.f32 %v746, %v749
    %vm751 = vcmp.gt.f32.partialorder %v750, 0.5
    %v752 = vsel %vm751, 1, 0
    %v753 = vcvt.s32.f32 %v752
    %754 = vst [vmem:[#allocation2] sm:$0xff] %v750
    %755 = vst [vmem:[#allocation3] sm:$0xff] %v753
    %s756 = scalar_lea.vmem [#allocation9], 48
    %757 = vst [vmem:[%s756] sm:$0xff] %v753
    %v758 = vld [vmem:[#allocation2] sm:$0xff]
    %v759 = vld [vmem:[#allocation3] sm:$0xff]
    %s760 = scalar_lea.vmem [#allocation4], 56
    %v761 = vld [vmem:[%s760] sm:$0xff]
    %v762 = vld [vmem:[#allocation7] sm:$0xff]
    %v763 = vld [vmem:[#allocation7 + $0x8] sm:$0xff]
    %v764 = vld [vmem:[#allocation7 + $0x10] sm:$0xff]
    %v765 = vld [vmem:[#allocation7 + $0x18] sm:$0xff]
    %v766 = vld [vmem:[#allocation7 + $0x20] sm:$0xff]
    %v767 = vld [vmem:[#allocation7 + $0x28] sm:$0xff]
    %v768 = vld [vmem:[#allocation7 + $0x30] sm:$0xff]
    %v769 = vld [vmem:[#allocation7 + $0x38] sm:$0xff]
    %v770 = vld [vmem:[#allocation7 + $0x40] sm:$0xff]
    %v771 = vld [vmem:[#allocation7 + $0x48] sm:$0xff]
    %v772 = vld [vmem:[#allocation7 + $0x50] sm:$0xff]
    %v773 = vld [vmem:[#allocation7 + $0x58] sm:$0xff]
    %v774 = vld [vmem:[#allocation7 + $0x60] sm:$0xff]
    %v775 = vld [vmem:[#allocation7 + $0x68] sm:$0xff]
    %v776 = vld [vmem:[#allocation7 + $0x70] sm:$0xff]
    %v777 = vld [vmem:[#allocation7 + $0x78] sm:$0xff]
    %778 = vmatprep.subr.mxu0 0.0
    %779 = vmatpush1.msra.mxu0 %v762
    %780 = vmatprep.subr.mxu0 0.0
    %781 = vmatpush1.msra.mxu0 %v763
    %782 = vmatprep.subr.mxu0 0.0
    %783 = vmatpush1.msra.mxu0 %v764
    %784 = vmatprep.subr.mxu0 0.0
    %785 = vmatpush1.msra.mxu0 %v765
    %786 = vmatprep.subr.mxu0 0.0
    %787 = vmatpush1.msra.mxu0 %v766
    %788 = vmatprep.subr.mxu0 0.0
    %789 = vmatpush1.msra.mxu0 %v767
    %790 = vmatprep.subr.mxu0 0.0
    %791 = vmatpush1.msra.mxu0 %v768
    %792 = vmatprep.subr.mxu0 0.0
    %793 = vmatpush1.msra.mxu0 %v769
    %794 = vmatprep.subr.mxu0 0.0
    %795 = vmatpush1.msra.mxu0 %v770
    %796 = vmatprep.subr.mxu0 0.0
    %797 = vmatpush1.msra.mxu0 %v771
    %798 = vmatprep.subr.mxu0 0.0
    %799 = vmatpush1.msra.mxu0 %v772
    %800 = vmatprep.subr.mxu0 0.0
    %801 = vmatpush1.msra.mxu0 %v773
    %802 = vmatprep.subr.mxu0 0.0
    %803 = vmatpush1.msra.mxu0 %v774
    %804 = vmatprep.subr.mxu0 0.0
    %805 = vmatpush1.msra.mxu0 %v775
    %806 = vmatprep.subr.mxu0 0.0
    %807 = vmatpush1.msra.mxu0 %v776
    %808 = vmatprep.subr.mxu0 0.0
    %809 = vmatpush1.msra.mxu0 %v777
    %810 = vmatprep.subr.mxu0 0.0
    %811 = vmatpush1.msra.mxu0 0.0
    %812 = vmatprep.subr.mxu0 0.0
    %813 = vmatpush1.msra.mxu0 0.0
    %814 = vmatprep.subr.mxu0 0.0
    %815 = vmatpush1.msra.mxu0 0.0
    %816 = vmatprep.subr.mxu0 0.0
    %817 = vmatpush1.msra.mxu0 0.0
    %818 = vmatprep.subr.mxu0 0.0
    %819 = vmatpush1.msra.mxu0 0.0
    %820 = vmatprep.subr.mxu0 0.0
    %821 = vmatpush1.msra.mxu0 0.0
    %822 = vmatprep.subr.mxu0 0.0
    %823 = vmatpush1.msra.mxu0 0.0
    %824 = vmatprep.subr.mxu0 0.0
    %825 = vmatpush1.msra.mxu0 0.0
    %826 = vmatprep.subr.mxu0 0.0
    %827 = vmatpush1.msra.mxu0 0.0
    %828 = vmatprep.subr.mxu0 0.0
    %829 = vmatpush1.msra.mxu0 0.0
    %830 = vmatprep.subr.mxu0 0.0
    %831 = vmatpush1.msra.mxu0 0.0
    %832 = vmatprep.subr.mxu0 0.0
    %833 = vmatpush1.msra.mxu0 0.0
    %834 = vmatprep.subr.mxu0 0.0
    %835 = vmatpush1.msra.mxu0 0.0
    %836 = vmatprep.subr.mxu0 0.0
    %837 = vmatpush1.msra.mxu0 0.0
    %838 = vmatprep.subr.mxu0 0.0
    %839 = vmatpush1.msra.mxu0 0.0
    %840 = vmatprep.subr.mxu0 0.0
    %841 = vmatpush1.msra.mxu0 0.0
    %842 = vmatprep.mubr.f32.mxu0 0.0
    %843 = vmatmul.mubr.f32.gmra.mrb[0].mxu0 %v759
    %v844 = vpop.f32.mrb[0].mxu0
    %v845 = vadd.f32 0.0, %v844
    %v846 = vpop.f32.mrb[0].mxu0
    %847 = vdwg.mxu0
    %v848 = vadd.f32 %v761, %v845
    %vm849 = vcmp.gt.f32.partialorder %v759, 0.0
    %v850 = vmul.f32 %v758, 0.3
    %v851 = vsel %vm849, 0.0, %v850
    %v852 = vadd.f32 %v848, %v851
    %vm853 = vcmp.gt.f32.partialorder %v852, 0.5
    %v854 = vsel %vm853, 1, 0
    %v855 = vcvt.s32.f32 %v854
    %856 = vst [vmem:[#allocation2] sm:$0xff] %v852
    %857 = vst [vmem:[#allocation3] sm:$0xff] %v855
    %s858 = scalar_lea.vmem [#allocation9], 56
    %859 = vst [vmem:[%s858] sm:$0xff] %v855
    // Predicated region
    $region22: #{tpu_custom_call.1} parent=1 // pred_check
      _
    $region23: #{tpu_custom_call.1} parent=1 // pred_check_branch
      %861 = sbr.rel (0) target = $region25
    $region24: #{tpu_custom_call.1} parent=1 // pred_region
      %s863 = ssub.s32 1024, 1024
      %864 = vsyncadd [#allocation6], %s863
      %s865 = sshll.u32 [#allocation9], 4
      %s866 = int_to_ptr.vmem [resolvable:$true] %s865
      %871 = dma.vmem_to_hbm [thread:$0]  %s866, 1024, %s2, [#allocation6], 128, 128, 8
    $region25: #{tpu_custom_call.1} parent=1 // pred_fallthru
      _
    // Predicated region
    $region26: #{tpu_custom_call.1} parent=1 // pred_check
      _
    $region27: #{tpu_custom_call.1} parent=1 // pred_check_branch
      %873 = sbr.rel (0) target = $region29
    $region28: #{tpu_custom_call.1} parent=1 // pred_region
      %874 = dma.done [#allocation6], 1024
    $region29: #{tpu_custom_call.1} parent=1 // pred_fallthru
      _
    %875 = vsyncpa [#allocation5], 1
    %876 = vsyncpa [#allocation8], 1
    %877 = vsyncpa [#allocation6], 1

// kernel: tpu_custom_call.1
$region0: #{tpu_custom_call.1}
  #allocation0 [shape = 'u32[]', space=smem, size = 0x4, offset = 0x4, fixed_abs, tag = 'smem constant byte address 0x4 - core index']
  #allocation1 [shape = 'u32[144,128]{1,0:T(1,128)}', space=vmem, size = 0x12000, scoped, tag = 'internal scratch']
  #allocation2 [shape = 'f32[8,128]{1,0:T(8,128)}', space=vmem, size = 0x1000, scoped, tag = 'scratch operand']
  #allocation3 [shape = 'f32[8,128]{1,0:T(8,128)}', space=vmem, size = 0x1000, scoped, tag = 'scratch operand']
  %s0 = inlined_call_operand.hbm [shape: f32[8,8,128], index: 0, kind: input, shape index: {}]
  %s1 = inlined_call_operand.hbm [shape: f32[128,128], index: 1, kind: input, shape index: {}]
  %s2 = inlined_call_operand.hbm [shape: f32[8,8,128], index: 2, kind: output, shape index: {}]
  %s3 = sld [smem:[#allocation0]]
  $region30: #{tpu_custom_call.1} parent=0
    _
  %s5 = ssub.s32 1, %s3
  %s6 = scalar_select 0, %s5, %s3
  $region1: #{tpu_custom_call.1} parent=0
    #allocation4 [shape = 'u8[32768]{0}', space=vmem, size = 0x8000, scoped, tag = 'input window, operand 0, single buffered']
    #allocation5 [shape = 's32[1]{0}', space=sflag, size = 0x4, scoped, tag = 'scoped memory for tpu_custom_call.1']
    #allocation6 [shape = 's32[1]{0}', space=sflag, size = 0x4, scoped, tag = 'scoped memory for tpu_custom_call.1']
    #allocation7 [shape = 'u8[65536]{0}', space=vmem, size = 0x10000, scoped, tag = 'input window, operand 1, single buffered']
    #allocation8 [shape = 's32[1]{0}', space=sflag, size = 0x4, scoped, tag = 'scoped memory for tpu_custom_call.1']
    #allocation9 [shape = 'u8[32768]{0}', space=vmem, size = 0x8000, scoped, tag = 'output window, operand 0, single buffered']
    %7 = vsyncpa [#allocation5], 0
    %8 = vsyncpa [#allocation8], 0
    %9 = vsyncpa [#allocation6], 0
    // Predicated region
    $region2: #{tpu_custom_call.1} parent=1 // pred_check
      _
    $region3: #{tpu_custom_call.1} parent=1 // pred_check_branch
      %11 = sbr.rel (0) target = $region5
    $region4: #{tpu_custom_call.1} parent=1 // pred_region
      %s13 = ssub.s32 1024, 1024
      %14 = vsyncadd [#allocation5], %s13
      %s15 = sshll.u32 [#allocation4], 4
      %s16 = int_to_ptr.vmem [resolvable:$true] %s15
      %21 = dma.hbm_to_vmem [thread:$0]  %s0, 1024, %s16, [#allocation5], 128, 128, 8
    $region5: #{tpu_custom_call.1} parent=1 // pred_fallthru
      _
    // Predicated region
    $region6: #{tpu_custom_call.1} parent=1 // pred_check
      _
    $region7: #{tpu_custom_call.1} parent=1 // pred_check_branch
      %23 = sbr.rel (0) target = $region9
    $region8: #{tpu_custom_call.1} parent=1 // pred_region
      %s25 = ssub.s32 2048, 2048
      %26 = vsyncadd [#allocation8], %s25
      %s27 = sshll.u32 [#allocation7], 4
      %s28 = int_to_ptr.vmem [resolvable:$true] %s27
      %33 = dma.hbm_to_vmem [thread:$0]  %s1, 2048, %s28, [#allocation8], 128, 128, 8
    $region9: #{tpu_custom_call.1} parent=1 // pred_fallthru
      _
    // Predicated region
    $region10: #{tpu_custom_call.1} parent=1 // pred_check
      _
    $region11: #{tpu_custom_call.1} parent=1 // pred_check_branch
      %35 = sbr.rel (0) target = $region13
    $region12: #{tpu_custom_call.1} parent=1 // pred_region
      %36 = dma.done [#allocation5], 1024
    $region13: #{tpu_custom_call.1} parent=1 // pred_fallthru
      _
    // Predicated region
    $region14: #{tpu_custom_call.1} parent=1 // pred_check
      _
    $region15: #{tpu_custom_call.1} parent=1 // pred_check_branch
      %38 = sbr.rel (0) target = $region17
    $region16: #{tpu_custom_call.1} parent=1 // pred_region
      %39 = dma.done [#allocation8], 2048
    $region17: #{tpu_custom_call.1} parent=1 // pred_fallthru
      _
    %p40 = scmp.eq.s32.totalorder 0, 0
    // Predicated region
    $region18: #{tpu_custom_call.1} parent=1 // pred_check
      %p41 = pneg %p40
    $region19: #{tpu_custom_call.1} parent=1 // pred_check_branch
      %43 = sbr.rel (%p41) target = $region21
    $region20: #{tpu_custom_call.1} parent=1 // pred_region
      %44 = vst [vmem:[#allocation2] sm:$0xff] 0.0
      %45 = vst [vmem:[#allocation3] sm:$0xff] 0.0
    $region21: #{tpu_custom_call.1} parent=1 // pred_fallthru
      _
    %v46 = vld [vmem:[#allocation2] sm:$0xff]
    %v47 = vld [vmem:[#allocation3] sm:$0xff]
    %v48 = vld [vmem:[#allocation4] sm:$0xff]
    %v49 = vld [vmem:[#allocation7] sm:$0xff]
    %v50 = vld [vmem:[#allocation7 + $0x8] sm:$0xff]
    %v51 = vld [vmem:[#allocation7 + $0x10] sm:$0xff]
    %v52 = vld [vmem:[#allocation7 + $0x18] sm:$0xff]
    %v53 = vld [vmem:[#allocation7 + $0x20] sm:$0xff]
    %v54 = vld [vmem:[#allocation7 + $0x28] sm:$0xff]
    %v55 = vld [vmem:[#allocation7 + $0x30] sm:$0xff]
    %v56 = vld [vmem:[#allocation7 + $0x38] sm:$0xff]
    %v57 = vld [vmem:[#allocation7 + $0x40] sm:$0xff]
    %v58 = vld [vmem:[#allocation7 + $0x48] sm:$0xff]
    %v59 = vld [vmem:[#allocation7 + $0x50] sm:$0xff]
    %v60 = vld [vmem:[#allocation7 + $0x58] sm:$0xff]
    %v61 = vld [vmem:[#allocation7 + $0x60] sm:$0xff]
    %v62 = vld [vmem:[#allocation7 + $0x68] sm:$0xff]
    %v63 = vld [vmem:[#allocation7 + $0x70] sm:$0xff]
    %v64 = vld [vmem:[#allocation7 + $0x78] sm:$0xff]
    %65 = vmatprep.subr.mxu0 0.0
    %66 = vmatpush1.msra.mxu0 %v49
    %67 = vmatprep.subr.mxu0 0.0
    %68 = vmatpush1.msra.mxu0 %v50
    %69 = vmatprep.subr.mxu0 0.0
    %70 = vmatpush1.msra.mxu0 %v51
    %71 = vmatprep.subr.mxu0 0.0
    %72 = vmatpush1.msra.mxu0 %v52
    %73 = vmatprep.subr.mxu0 0.0
    %74 = vmatpush1.msra.mxu0 %v53
    %75 = vmatprep.subr.mxu0 0.0
    %76 = vmatpush1.msra.mxu0 %v54
    %77 = vmatprep.subr.mxu0 0.0
    %78 = vmatpush1.msra.mxu0 %v55
    %79 = vmatprep.subr.mxu0 0.0
    %80 = vmatpush1.msra.mxu0 %v56
    %81 = vmatprep.subr.mxu0 0.0
    %82 = vmatpush1.msra.mxu0 %v57
    %83 = vmatprep.subr.mxu0 0.0
    %84 = vmatpush1.msra.mxu0 %v58
    %85 = vmatprep.subr.mxu0 0.0
    %86 = vmatpush1.msra.mxu0 %v59
    %87 = vmatprep.subr.mxu0 0.0
    %88 = vmatpush1.msra.mxu0 %v60
    %89 = vmatprep.subr.mxu0 0.0
    %90 = vmatpush1.msra.mxu0 %v61
    %91 = vmatprep.subr.mxu0 0.0
    %92 = vmatpush1.msra.mxu0 %v62
    %93 = vmatprep.subr.mxu0 0.0
    %94 = vmatpush1.msra.mxu0 %v63
    %95 = vmatprep.subr.mxu0 0.0
    %96 = vmatpush1.msra.mxu0 %v64
    %97 = vmatprep.subr.mxu0 0.0
    %98 = vmatpush1.msra.mxu0 0.0
    %99 = vmatprep.subr.mxu0 0.0
    %100 = vmatpush1.msra.mxu0 0.0
    %101 = vmatprep.subr.mxu0 0.0
    %102 = vmatpush1.msra.mxu0 0.0
    %103 = vmatprep.subr.mxu0 0.0
    %104 = vmatpush1.msra.mxu0 0.0
    %105 = vmatprep.subr.mxu0 0.0
    %106 = vmatpush1.msra.mxu0 0.0
    %107 = vmatprep.subr.mxu0 0.0
    %108 = vmatpush1.msra.mxu0 0.0
    %109 = vmatprep.subr.mxu0 0.0
    %110 = vmatpush1.msra.mxu0 0.0
    %111 = vmatprep.subr.mxu0 0.0
    %112 = vmatpush1.msra.mxu0 0.0
    %113 = vmatprep.subr.mxu0 0.0
    %114 = vmatpush1.msra.mxu0 0.0
    %115 = vmatprep.subr.mxu0 0.0
    %116 = vmatpush1.msra.mxu0 0.0
    %117 = vmatprep.subr.mxu0 0.0
    %118 = vmatpush1.msra.mxu0 0.0
    %119 = vmatprep.subr.mxu0 0.0
    %120 = vmatpush1.msra.mxu0 0.0
    %121 = vmatprep.subr.mxu0 0.0
    %122 = vmatpush1.msra.mxu0 0.0
    %123 = vmatprep.subr.mxu0 0.0
    %124 = vmatpush1.msra.mxu0 0.0
    %125 = vmatprep.subr.mxu0 0.0
    %126 = vmatpush1.msra.mxu0 0.0
    %127 = vmatprep.subr.mxu0 0.0
    %128 = vmatpush1.msra.mxu0 0.0
    %129 = vmatprep.mubr.f32.mxu0 0.0
    %130 = vmatmul.mubr.f32.gmra.mrb[0].mxu0 %v47
    %v131 = vpop.f32.mrb[0].mxu0
    %v132 = vadd.f32 0.0, %v131
    %v133 = vpop.f32.mrb[0].mxu0
    %134 = vdwg.mxu0
    %v135 = vadd.f32 %v48, %v132
    %vm136 = vcmp.gt.f32.partialorder %v47, 0.0
    %v137 = vmul.f32 %v46, 0.3
    %v138 = vsel %vm136, 0.0, %v137
    %v139 = vadd.f32 %v135, %v138
    %vm140 = vcmp.gt.f32.partialorder %v139, 0.5
    %v141 = vsel %vm140, 1, 0
    %v142 = vcvt.s32.f32 %v141
    %143 = vst [vmem:[#allocation2] sm:$0xff] %v139
    %144 = vst [vmem:[#allocation3] sm:$0xff] %v142
    %145 = vst [vmem:[#allocation9] sm:$0xff] %v142
    %v146 = vld [vmem:[#allocation2] sm:$0xff]
    %v147 = vld [vmem:[#allocation3] sm:$0xff]
    %s148 = scalar_lea.vmem [#allocation4], 8
    %v149 = vld [vmem:[%s148] sm:$0xff]
    %v150 = vld [vmem:[#allocation7] sm:$0xff]
    %v151 = vld [vmem:[#allocation7 + $0x8] sm:$0xff]
    %v152 = vld [vmem:[#allocation7 + $0x10] sm:$0xff]
    %v153 = vld [vmem:[#allocation7 + $0x18] sm:$0xff]
    %v154 = vld [vmem:[#allocation7 + $0x20] sm:$0xff]
    %v155 = vld [vmem:[#allocation7 + $0x28] sm:$0xff]
    %v156 = vld [vmem:[#allocation7 + $0x30] sm:$0xff]
    %v157 = vld [vmem:[#allocation7 + $0x38] sm:$0xff]
    %v158 = vld [vmem:[#allocation7 + $0x40] sm:$0xff]
    %v159 = vld [vmem:[#allocation7 + $0x48] sm:$0xff]
    %v160 = vld [vmem:[#allocation7 + $0x50] sm:$0xff]
    %v161 = vld [vmem:[#allocation7 + $0x58] sm:$0xff]
    %v162 = vld [vmem:[#allocation7 + $0x60] sm:$0xff]
    %v163 = vld [vmem:[#allocation7 + $0x68] sm:$0xff]
    %v164 = vld [vmem:[#allocation7 + $0x70] sm:$0xff]
    %v165 = vld [vmem:[#allocation7 + $0x78] sm:$0xff]
    %166 = vmatprep.subr.mxu0 0.0
    %167 = vmatpush1.msra.mxu0 %v150
    %168 = vmatprep.subr.mxu0 0.0
    %169 = vmatpush1.msra.mxu0 %v151
    %170 = vmatprep.subr.mxu0 0.0
    %171 = vmatpush1.msra.mxu0 %v152
    %172 = vmatprep.subr.mxu0 0.0
    %173 = vmatpush1.msra.mxu0 %v153
    %174 = vmatprep.subr.mxu0 0.0
    %175 = vmatpush1.msra.mxu0 %v154
    %176 = vmatprep.subr.mxu0 0.0
    %177 = vmatpush1.msra.mxu0 %v155
    %178 = vmatprep.subr.mxu0 0.0
    %179 = vmatpush1.msra.mxu0 %v156
    %180 = vmatprep.subr.mxu0 0.0
    %181 = vmatpush1.msra.mxu0 %v157
    %182 = vmatprep.subr.mxu0 0.0
    %183 = vmatpush1.msra.mxu0 %v158
    %184 = vmatprep.subr.mxu0 0.0
    %185 = vmatpush1.msra.mxu0 %v159
    %186 = vmatprep.subr.mxu0 0.0
    %187 = vmatpush1.msra.mxu0 %v160
    %188 = vmatprep.subr.mxu0 0.0
    %189 = vmatpush1.msra.mxu0 %v161
    %190 = vmatprep.subr.mxu0 0.0
    %191 = vmatpush1.msra.mxu0 %v162
    %192 = vmatprep.subr.mxu0 0.0
    %193 = vmatpush1.msra.mxu0 %v163
    %194 = vmatprep.subr.mxu0 0.0
    %195 = vmatpush1.msra.mxu0 %v164
    %196 = vmatprep.subr.mxu0 0.0
    %197 = vmatpush1.msra.mxu0 %v165
    %198 = vmatprep.subr.mxu0 0.0
    %199 = vmatpush1.msra.mxu0 0.0
    %200 = vmatprep.subr.mxu0 0.0
    %201 = vmatpush1.msra.mxu0 0.0
    %202 = vmatprep.subr.mxu0 0.0
    %203 = vmatpush1.msra.mxu0 0.0
    %204 = vmatprep.subr.mxu0 0.0
    %205 = vmatpush1.msra.mxu0 0.0
    %206 = vmatprep.subr.mxu0 0.0
    %207 = vmatpush1.msra.mxu0 0.0
    %208 = vmatprep.subr.mxu0 0.0
    %209 = vmatpush1.msra.mxu0 0.0
    %210 = vmatprep.subr.mxu0 0.0
    %211 = vmatpush1.msra.mxu0 0.0
    %212 = vmatprep.subr.mxu0 0.0
    %213 = vmatpush1.msra.mxu0 0.0
    %214 = vmatprep.subr.mxu0 0.0
    %215 = vmatpush1.msra.mxu0 0.0
    %216 = vmatprep.subr.mxu0 0.0
    %217 = vmatpush1.msra.mxu0 0.0
    %218 = vmatprep.subr.mxu0 0.0
    %219 = vmatpush1.msra.mxu0 0.0
    %220 = vmatprep.subr.mxu0 0.0
    %221 = vmatpush1.msra.mxu0 0.0
    %222 = vmatprep.subr.mxu0 0.0
    %223 = vmatpush1.msra.mxu0 0.0
    %224 = vmatprep.subr.mxu0 0.0
    %225 = vmatpush1.msra.mxu0 0.0
    %226 = vmatprep.subr.mxu0 0.0
    %227 = vmatpush1.msra.mxu0 0.0
    %228 = vmatprep.subr.mxu0 0.0
    %229 = vmatpush1.msra.mxu0 0.0
    %230 = vmatprep.mubr.f32.mxu0 0.0
    %231 = vmatmul.mubr.f32.gmra.mrb[0].mxu0 %v147
    %v232 = vpop.f32.mrb[0].mxu0
    %v233 = vadd.f32 0.0, %v232
    %v234 = vpop.f32.mrb[0].mxu0
    %235 = vdwg.mxu0
    %v236 = vadd.f32 %v149, %v233
    %vm237 = vcmp.gt.f32.partialorder %v147, 0.0
    %v238 = vmul.f32 %v146, 0.3
    %v239 = vsel %vm237, 0.0, %v238
    %v240 = vadd.f32 %v236, %v239
    %vm241 = vcmp.gt.f32.partialorder %v240, 0.5
    %v242 = vsel %vm241, 1, 0
    %v243 = vcvt.s32.f32 %v242
    %244 = vst [vmem:[#allocation2] sm:$0xff] %v240
    %245 = vst [vmem:[#allocation3] sm:$0xff] %v243
    %s246 = scalar_lea.vmem [#allocation9], 8
    %247 = vst [vmem:[%s246] sm:$0xff] %v243
    %v248 = vld [vmem:[#allocation2] sm:$0xff]
    %v249 = vld [vmem:[#allocation3] sm:$0xff]
    %s250 = scalar_lea.vmem [#allocation4], 16
    %v251 = vld [vmem:[%s250] sm:$0xff]
    %v252 = vld [vmem:[#allocation7] sm:$0xff]
    %v253 = vld [vmem:[#allocation7 + $0x8] sm:$0xff]
    %v254 = vld [vmem:[#allocation7 + $0x10] sm:$0xff]
    %v255 = vld [vmem:[#allocation7 + $0x18] sm:$0xff]
    %v256 = vld [vmem:[#allocation7 + $0x20] sm:$0xff]
    %v257 = vld [vmem:[#allocation7 + $0x28] sm:$0xff]
    %v258 = vld [vmem:[#allocation7 + $0x30] sm:$0xff]
    %v259 = vld [vmem:[#allocation7 + $0x38] sm:$0xff]
    %v260 = vld [vmem:[#allocation7 + $0x40] sm:$0xff]
    %v261 = vld [vmem:[#allocation7 + $0x48] sm:$0xff]
    %v262 = vld [vmem:[#allocation7 + $0x50] sm:$0xff]
    %v263 = vld [vmem:[#allocation7 + $0x58] sm:$0xff]
    %v264 = vld [vmem:[#allocation7 + $0x60] sm:$0xff]
    %v265 = vld [vmem:[#allocation7 + $0x68] sm:$0xff]
    %v266 = vld [vmem:[#allocation7 + $0x70] sm:$0xff]
    %v267 = vld [vmem:[#allocation7 + $0x78] sm:$0xff]
    %268 = vmatprep.subr.mxu0 0.0
    %269 = vmatpush1.msra.mxu0 %v252
    %270 = vmatprep.subr.mxu0 0.0
    %271 = vmatpush1.msra.mxu0 %v253
    %272 = vmatprep.subr.mxu0 0.0
    %273 = vmatpush1.msra.mxu0 %v254
    %274 = vmatprep.subr.mxu0 0.0
    %275 = vmatpush1.msra.mxu0 %v255
    %276 = vmatprep.subr.mxu0 0.0
    %277 = vmatpush1.msra.mxu0 %v256
    %278 = vmatprep.subr.mxu0 0.0
    %279 = vmatpush1.msra.mxu0 %v257
    %280 = vmatprep.subr.mxu0 0.0
    %281 = vmatpush1.msra.mxu0 %v258
    %282 = vmatprep.subr.mxu0 0.0
    %283 = vmatpush1.msra.mxu0 %v259
    %284 = vmatprep.subr.mxu0 0.0
    %285 = vmatpush1.msra.mxu0 %v260
    %286 = vmatprep.subr.mxu0 0.0
    %287 = vmatpush1.msra.mxu0 %v261
    %288 = vmatprep.subr.mxu0 0.0
    %289 = vmatpush1.msra.mxu0 %v262
    %290 = vmatprep.subr.mxu0 0.0
    %291 = vmatpush1.msra.mxu0 %v263
    %292 = vmatprep.subr.mxu0 0.0
    %293 = vmatpush1.msra.mxu0 %v264
    %294 = vmatprep.subr.mxu0 0.0
    %295 = vmatpush1.msra.mxu0 %v265
    %296 = vmatprep.subr.mxu0 0.0
    %297 = vmatpush1.msra.mxu0 %v266
    %298 = vmatprep.subr.mxu0 0.0
    %299 = vmatpush1.msra.mxu0 %v267
    %300 = vmatprep.subr.mxu0 0.0
    %301 = vmatpush1.msra.mxu0 0.0
    %302 = vmatprep.subr.mxu0 0.0
    %303 = vmatpush1.msra.mxu0 0.0
    %304 = vmatprep.subr.mxu0 0.0
    %305 = vmatpush1.msra.mxu0 0.0
    %306 = vmatprep.subr.mxu0 0.0
    %307 = vmatpush1.msra.mxu0 0.0
    %308 = vmatprep.subr.mxu0 0.0
    %309 = vmatpush1.msra.mxu0 0.0
    %310 = vmatprep.subr.mxu0 0.0
    %311 = vmatpush1.msra.mxu0 0.0
    %312 = vmatprep.subr.mxu0 0.0
    %313 = vmatpush1.msra.mxu0 0.0
    %314 = vmatprep.subr.mxu0 0.0
    %315 = vmatpush1.msra.mxu0 0.0
    %316 = vmatprep.subr.mxu0 0.0
    %317 = vmatpush1.msra.mxu0 0.0
    %318 = vmatprep.subr.mxu0 0.0
    %319 = vmatpush1.msra.mxu0 0.0
    %320 = vmatprep.subr.mxu0 0.0
    %321 = vmatpush1.msra.mxu0 0.0
    %322 = vmatprep.subr.mxu0 0.0
    %323 = vmatpush1.msra.mxu0 0.0
    %324 = vmatprep.subr.mxu0 0.0
    %325 = vmatpush1.msra.mxu0 0.0
    %326 = vmatprep.subr.mxu0 0.0
    %327 = vmatpush1.msra.mxu0 0.0
    %328 = vmatprep.subr.mxu0 0.0
    %329 = vmatpush1.msra.mxu0 0.0
    %330 = vmatprep.subr.mxu0 0.0
    %331 = vmatpush1.msra.mxu0 0.0
    %332 = vmatprep.mubr.f32.mxu0 0.0
    %333 = vmatmul.mubr.f32.gmra.mrb[0].mxu0 %v249
    %v334 = vpop.f32.mrb[0].mxu0
    %v335 = vadd.f32 0.0, %v334
    %v336 = vpop.f32.mrb[0].mxu0
    %337 = vdwg.mxu0
    %v338 = vadd.f32 %v251, %v335
    %vm339 = vcmp.gt.f32.partialorder %v249, 0.0
    %v340 = vmul.f32 %v248, 0.3
    %v341 = vsel %vm339, 0.0, %v340
    %v342 = vadd.f32 %v338, %v341
    %vm343 = vcmp.gt.f32.partialorder %v342, 0.5
    %v344 = vsel %vm343, 1, 0
    %v345 = vcvt.s32.f32 %v344
    %346 = vst [vmem:[#allocation2] sm:$0xff] %v342
    %347 = vst [vmem:[#allocation3] sm:$0xff] %v345
    %s348 = scalar_lea.vmem [#allocation9], 16
    %349 = vst [vmem:[%s348] sm:$0xff] %v345
    %v350 = vld [vmem:[#allocation2] sm:$0xff]
    %v351 = vld [vmem:[#allocation3] sm:$0xff]
    %s352 = scalar_lea.vmem [#allocation4], 24
    %v353 = vld [vmem:[%s352] sm:$0xff]
    %v354 = vld [vmem:[#allocation7] sm:$0xff]
    %v355 = vld [vmem:[#allocation7 + $0x8] sm:$0xff]
    %v356 = vld [vmem:[#allocation7 + $0x10] sm:$0xff]
    %v357 = vld [vmem:[#allocation7 + $0x18] sm:$0xff]
    %v358 = vld [vmem:[#allocation7 + $0x20] sm:$0xff]
    %v359 = vld [vmem:[#allocation7 + $0x28] sm:$0xff]
    %v360 = vld [vmem:[#allocation7 + $0x30] sm:$0xff]
    %v361 = vld [vmem:[#allocation7 + $0x38] sm:$0xff]
    %v362 = vld [vmem:[#allocation7 + $0x40] sm:$0xff]
    %v363 = vld [vmem:[#allocation7 + $0x48] sm:$0xff]
    %v364 = vld [vmem:[#allocation7 + $0x50] sm:$0xff]
    %v365 = vld [vmem:[#allocation7 + $0x58] sm:$0xff]
    %v366 = vld [vmem:[#allocation7 + $0x60] sm:$0xff]
    %v367 = vld [vmem:[#allocation7 + $0x68] sm:$0xff]
    %v368 = vld [vmem:[#allocation7 + $0x70] sm:$0xff]
    %v369 = vld [vmem:[#allocation7 + $0x78] sm:$0xff]
    %370 = vmatprep.subr.mxu0 0.0
    %371 = vmatpush1.msra.mxu0 %v354
    %372 = vmatprep.subr.mxu0 0.0
    %373 = vmatpush1.msra.mxu0 %v355
    %374 = vmatprep.subr.mxu0 0.0
    %375 = vmatpush1.msra.mxu0 %v356
    %376 = vmatprep.subr.mxu0 0.0
    %377 = vmatpush1.msra.mxu0 %v357
    %378 = vmatprep.subr.mxu0 0.0
    %379 = vmatpush1.msra.mxu0 %v358
    %380 = vmatprep.subr.mxu0 0.0
    %381 = vmatpush1.msra.mxu0 %v359
    %382 = vmatprep.subr.mxu0 0.0
    %383 = vmatpush1.msra.mxu0 %v360
    %384 = vmatprep.subr.mxu0 0.0
    %385 = vmatpush1.msra.mxu0 %v361
    %386 = vmatprep.subr.mxu0 0.0
    %387 = vmatpush1.msra.mxu0 %v362
    %388 = vmatprep.subr.mxu0 0.0
    %389 = vmatpush1.msra.mxu0 %v363
    %390 = vmatprep.subr.mxu0 0.0
    %391 = vmatpush1.msra.mxu0 %v364
    %392 = vmatprep.subr.mxu0 0.0
    %393 = vmatpush1.msra.mxu0 %v365
    %394 = vmatprep.subr.mxu0 0.0
    %395 = vmatpush1.msra.mxu0 %v366
    %396 = vmatprep.subr.mxu0 0.0
    %397 = vmatpush1.msra.mxu0 %v367
    %398 = vmatprep.subr.mxu0 0.0
    %399 = vmatpush1.msra.mxu0 %v368
    %400 = vmatprep.subr.mxu0 0.0
    %401 = vmatpush1.msra.mxu0 %v369
    %402 = vmatprep.subr.mxu0 0.0
    %403 = vmatpush1.msra.mxu0 0.0
    %404 = vmatprep.subr.mxu0 0.0
    %405 = vmatpush1.msra.mxu0 0.0
    %406 = vmatprep.subr.mxu0 0.0
    %407 = vmatpush1.msra.mxu0 0.0
    %408 = vmatprep.subr.mxu0 0.0
    %409 = vmatpush1.msra.mxu0 0.0
    %410 = vmatprep.subr.mxu0 0.0
    %411 = vmatpush1.msra.mxu0 0.0
    %412 = vmatprep.subr.mxu0 0.0
    %413 = vmatpush1.msra.mxu0 0.0
    %414 = vmatprep.subr.mxu0 0.0
    %415 = vmatpush1.msra.mxu0 0.0
    %416 = vmatprep.subr.mxu0 0.0
    %417 = vmatpush1.msra.mxu0 0.0
    %418 = vmatprep.subr.mxu0 0.0
    %419 = vmatpush1.msra.mxu0 0.0
    %420 = vmatprep.subr.mxu0 0.0
    %421 = vmatpush1.msra.mxu0 0.0
    %422 = vmatprep.subr.mxu0 0.0
    %423 = vmatpush1.msra.mxu0 0.0
    %424 = vmatprep.subr.mxu0 0.0
    %425 = vmatpush1.msra.mxu0 0.0
    %426 = vmatprep.subr.mxu0 0.0
    %427 = vmatpush1.msra.mxu0 0.0
    %428 = vmatprep.subr.mxu0 0.0
    %429 = vmatpush1.msra.mxu0 0.0
    %430 = vmatprep.subr.mxu0 0.0
    %431 = vmatpush1.msra.mxu0 0.0
    %432 = vmatprep.subr.mxu0 0.0
    %433 = vmatpush1.msra.mxu0 0.0
    %434 = vmatprep.mubr.f32.mxu0 0.0
    %435 = vmatmul.mubr.f32.gmra.mrb[0].mxu0 %v351
    %v436 = vpop.f32.mrb[0].mxu0
    %v437 = vadd.f32 0.0, %v436
    %v438 = vpop.f32.mrb[0].mxu0
    %439 = vdwg.mxu0
    %v440 = vadd.f32 %v353, %v437
    %vm441 = vcmp.gt.f32.partialorder %v351, 0.0
    %v442 = vmul.f32 %v350, 0.3
    %v443 = vsel %vm441, 0.0, %v442
    %v444 = vadd.f32 %v440, %v443
    %vm445 = vcmp.gt.f32.partialorder %v444, 0.5
    %v446 = vsel %vm445, 1, 0
    %v447 = vcvt.s32.f32 %v446
    %448 = vst [vmem:[#allocation2] sm:$0xff] %v444
    %449 = vst [vmem:[#allocation3] sm:$0xff] %v447
    %s450 = scalar_lea.vmem [#allocation9], 24
    %451 = vst [vmem:[%s450] sm:$0xff] %v447
    %v452 = vld [vmem:[#allocation2] sm:$0xff]
    %v453 = vld [vmem:[#allocation3] sm:$0xff]
    %s454 = scalar_lea.vmem [#allocation4], 32
    %v455 = vld [vmem:[%s454] sm:$0xff]
    %v456 = vld [vmem:[#allocation7] sm:$0xff]
    %v457 = vld [vmem:[#allocation7 + $0x8] sm:$0xff]
    %v458 = vld [vmem:[#allocation7 + $0x10] sm:$0xff]
    %v459 = vld [vmem:[#allocation7 + $0x18] sm:$0xff]
    %v460 = vld [vmem:[#allocation7 + $0x20] sm:$0xff]
    %v461 = vld [vmem:[#allocation7 + $0x28] sm:$0xff]
    %v462 = vld [vmem:[#allocation7 + $0x30] sm:$0xff]
    %v463 = vld [vmem:[#allocation7 + $0x38] sm:$0xff]
    %v464 = vld [vmem:[#allocation7 + $0x40] sm:$0xff]
    %v465 = vld [vmem:[#allocation7 + $0x48] sm:$0xff]
    %v466 = vld [vmem:[#allocation7 + $0x50] sm:$0xff]
    %v467 = vld [vmem:[#allocation7 + $0x58] sm:$0xff]
    %v468 = vld [vmem:[#allocation7 + $0x60] sm:$0xff]
    %v469 = vld [vmem:[#allocation7 + $0x68] sm:$0xff]
    %v470 = vld [vmem:[#allocation7 + $0x70] sm:$0xff]
    %v471 = vld [vmem:[#allocation7 + $0x78] sm:$0xff]
    %472 = vmatprep.subr.mxu0 0.0
    %473 = vmatpush1.msra.mxu0 %v456
    %474 = vmatprep.subr.mxu0 0.0
    %475 = vmatpush1.msra.mxu0 %v457
    %476 = vmatprep.subr.mxu0 0.0
    %477 = vmatpush1.msra.mxu0 %v458
    %478 = vmatprep.subr.mxu0 0.0
    %479 = vmatpush1.msra.mxu0 %v459
    %480 = vmatprep.subr.mxu0 0.0
    %481 = vmatpush1.msra.mxu0 %v460
    %482 = vmatprep.subr.mxu0 0.0
    %483 = vmatpush1.msra.mxu0 %v461
    %484 = vmatprep.subr.mxu0 0.0
    %485 = vmatpush1.msra.mxu0 %v462
    %486 = vmatprep.subr.mxu0 0.0
    %487 = vmatpush1.msra.mxu0 %v463
    %488 = vmatprep.subr.mxu0 0.0
    %489 = vmatpush1.msra.mxu0 %v464
    %490 = vmatprep.subr.mxu0 0.0
    %491 = vmatpush1.msra.mxu0 %v465
    %492 = vmatprep.subr.mxu0 0.0
    %493 = vmatpush1.msra.mxu0 %v466
    %494 = vmatprep.subr.mxu0 0.0
    %495 = vmatpush1.msra.mxu0 %v467
    %496 = vmatprep.subr.mxu0 0.0
    %497 = vmatpush1.msra.mxu0 %v468
    %498 = vmatprep.subr.mxu0 0.0
    %499 = vmatpush1.msra.mxu0 %v469
    %500 = vmatprep.subr.mxu0 0.0
    %501 = vmatpush1.msra.mxu0 %v470
    %502 = vmatprep.subr.mxu0 0.0
    %503 = vmatpush1.msra.mxu0 %v471
    %504 = vmatprep.subr.mxu0 0.0
    %505 = vmatpush1.msra.mxu0 0.0
    %506 = vmatprep.subr.mxu0 0.0
    %507 = vmatpush1.msra.mxu0 0.0
    %508 = vmatprep.subr.mxu0 0.0
    %509 = vmatpush1.msra.mxu0 0.0
    %510 = vmatprep.subr.mxu0 0.0
    %511 = vmatpush1.msra.mxu0 0.0
    %512 = vmatprep.subr.mxu0 0.0
    %513 = vmatpush1.msra.mxu0 0.0
    %514 = vmatprep.subr.mxu0 0.0
    %515 = vmatpush1.msra.mxu0 0.0
    %516 = vmatprep.subr.mxu0 0.0
    %517 = vmatpush1.msra.mxu0 0.0
    %518 = vmatprep.subr.mxu0 0.0
    %519 = vmatpush1.msra.mxu0 0.0
    %520 = vmatprep.subr.mxu0 0.0
    %521 = vmatpush1.msra.mxu0 0.0
    %522 = vmatprep.subr.mxu0 0.0
    %523 = vmatpush1.msra.mxu0 0.0
    %524 = vmatprep.subr.mxu0 0.0
    %525 = vmatpush1.msra.mxu0 0.0
    %526 = vmatprep.subr.mxu0 0.0
    %527 = vmatpush1.msra.mxu0 0.0
    %528 = vmatprep.subr.mxu0 0.0
    %529 = vmatpush1.msra.mxu0 0.0
    %530 = vmatprep.subr.mxu0 0.0
    %531 = vmatpush1.msra.mxu0 0.0
    %532 = vmatprep.subr.mxu0 0.0
    %533 = vmatpush1.msra.mxu0 0.0
    %534 = vmatprep.subr.mxu0 0.0
    %535 = vmatpush1.msra.mxu0 0.0
    %536 = vmatprep.mubr.f32.mxu0 0.0
    %537 = vmatmul.mubr.f32.gmra.mrb[0].mxu0 %v453
    %v538 = vpop.f32.mrb[0].mxu0
    %v539 = vadd.f32 0.0, %v538
    %v540 = vpop.f32.mrb[0].mxu0
    %541 = vdwg.mxu0
    %v542 = vadd.f32 %v455, %v539
    %vm543 = vcmp.gt.f32.partialorder %v453, 0.0
    %v544 = vmul.f32 %v452, 0.3
    %v545 = vsel %vm543, 0.0, %v544
    %v546 = vadd.f32 %v542, %v545
    %vm547 = vcmp.gt.f32.partialorder %v546, 0.5
    %v548 = vsel %vm547, 1, 0
    %v549 = vcvt.s32.f32 %v548
    %550 = vst [vmem:[#allocation2] sm:$0xff] %v546
    %551 = vst [vmem:[#allocation3] sm:$0xff] %v549
    %s552 = scalar_lea.vmem [#allocation9], 32
    %553 = vst [vmem:[%s552] sm:$0xff] %v549
    %v554 = vld [vmem:[#allocation2] sm:$0xff]
    %v555 = vld [vmem:[#allocation3] sm:$0xff]
    %s556 = scalar_lea.vmem [#allocation4], 40
    %v557 = vld [vmem:[%s556] sm:$0xff]
    %v558 = vld [vmem:[#allocation7] sm:$0xff]
    %v559 = vld [vmem:[#allocation7 + $0x8] sm:$0xff]
    %v560 = vld [vmem:[#allocation7 + $0x10] sm:$0xff]
    %v561 = vld [vmem:[#allocation7 + $0x18] sm:$0xff]
    %v562 = vld [vmem:[#allocation7 + $0x20] sm:$0xff]
    %v563 = vld [vmem:[#allocation7 + $0x28] sm:$0xff]
    %v564 = vld [vmem:[#allocation7 + $0x30] sm:$0xff]
    %v565 = vld [vmem:[#allocation7 + $0x38] sm:$0xff]
    %v566 = vld [vmem:[#allocation7 + $0x40] sm:$0xff]
    %v567 = vld [vmem:[#allocation7 + $0x48] sm:$0xff]
    %v568 = vld [vmem:[#allocation7 + $0x50] sm:$0xff]
    %v569 = vld [vmem:[#allocation7 + $0x58] sm:$0xff]
    %v570 = vld [vmem:[#allocation7 + $0x60] sm:$0xff]
    %v571 = vld [vmem:[#allocation7 + $0x68] sm:$0xff]
    %v572 = vld [vmem:[#allocation7 + $0x70] sm:$0xff]
    %v573 = vld [vmem:[#allocation7 + $0x78] sm:$0xff]
    %574 = vmatprep.subr.mxu0 0.0
    %575 = vmatpush1.msra.mxu0 %v558
    %576 = vmatprep.subr.mxu0 0.0
    %577 = vmatpush1.msra.mxu0 %v559
    %578 = vmatprep.subr.mxu0 0.0
    %579 = vmatpush1.msra.mxu0 %v560
    %580 = vmatprep.subr.mxu0 0.0
    %581 = vmatpush1.msra.mxu0 %v561
    %582 = vmatprep.subr.mxu0 0.0
    %583 = vmatpush1.msra.mxu0 %v562
    %584 = vmatprep.subr.mxu0 0.0
    %585 = vmatpush1.msra.mxu0 %v563
    %586 = vmatprep.subr.mxu0 0.0
    %587 = vmatpush1.msra.mxu0 %v564
    %588 = vmatprep.subr.mxu0 0.0
    %589 = vmatpush1.msra.mxu0 %v565
    %590 = vmatprep.subr.mxu0 0.0
    %591 = vmatpush1.msra.mxu0 %v566
    %592 = vmatprep.subr.mxu0 0.0
    %593 = vmatpush1.msra.mxu0 %v567
    %594 = vmatprep.subr.mxu0 0.0
    %595 = vmatpush1.msra.mxu0 %v568
    %596 = vmatprep.subr.mxu0 0.0
    %597 = vmatpush1.msra.mxu0 %v569
    %598 = vmatprep.subr.mxu0 0.0
    %599 = vmatpush1.msra.mxu0 %v570
    %600 = vmatprep.subr.mxu0 0.0
    %601 = vmatpush1.msra.mxu0 %v571
    %602 = vmatprep.subr.mxu0 0.0
    %603 = vmatpush1.msra.mxu0 %v572
    %604 = vmatprep.subr.mxu0 0.0
    %605 = vmatpush1.msra.mxu0 %v573
    %606 = vmatprep.subr.mxu0 0.0
    %607 = vmatpush1.msra.mxu0 0.0
    %608 = vmatprep.subr.mxu0 0.0
    %609 = vmatpush1.msra.mxu0 0.0
    %610 = vmatprep.subr.mxu0 0.0
    %611 = vmatpush1.msra.mxu0 0.0
    %612 = vmatprep.subr.mxu0 0.0
    %613 = vmatpush1.msra.mxu0 0.0
    %614 = vmatprep.subr.mxu0 0.0
    %615 = vmatpush1.msra.mxu0 0.0
    %616 = vmatprep.subr.mxu0 0.0
    %617 = vmatpush1.msra.mxu0 0.0
    %618 = vmatprep.subr.mxu0 0.0
    %619 = vmatpush1.msra.mxu0 0.0
    %620 = vmatprep.subr.mxu0 0.0
    %621 = vmatpush1.msra.mxu0 0.0
    %622 = vmatprep.subr.mxu0 0.0
    %623 = vmatpush1.msra.mxu0 0.0
    %624 = vmatprep.subr.mxu0 0.0
    %625 = vmatpush1.msra.mxu0 0.0
    %626 = vmatprep.subr.mxu0 0.0
    %627 = vmatpush1.msra.mxu0 0.0
    %628 = vmatprep.subr.mxu0 0.0
    %629 = vmatpush1.msra.mxu0 0.0
    %630 = vmatprep.subr.mxu0 0.0
    %631 = vmatpush1.msra.mxu0 0.0
    %632 = vmatprep.subr.mxu0 0.0
    %633 = vmatpush1.msra.mxu0 0.0
    %634 = vmatprep.subr.mxu0 0.0
    %635 = vmatpush1.msra.mxu0 0.0
    %636 = vmatprep.subr.mxu0 0.0
    %637 = vmatpush1.msra.mxu0 0.0
    %638 = vmatprep.mubr.f32.mxu0 0.0
    %639 = vmatmul.mubr.f32.gmra.mrb[0].mxu0 %v555
    %v640 = vpop.f32.mrb[0].mxu0
    %v641 = vadd.f32 0.0, %v640
    %v642 = vpop.f32.mrb[0].mxu0
    %643 = vdwg.mxu0
    %v644 = vadd.f32 %v557, %v641
    %vm645 = vcmp.gt.f32.partialorder %v555, 0.0
    %v646 = vmul.f32 %v554, 0.3
    %v647 = vsel %vm645, 0.0, %v646
    %v648 = vadd.f32 %v644, %v647
    %vm649 = vcmp.gt.f32.partialorder %v648, 0.5
    %v650 = vsel %vm649, 1, 0
    %v651 = vcvt.s32.f32 %v650
    %652 = vst [vmem:[#allocation2] sm:$0xff] %v648
    %653 = vst [vmem:[#allocation3] sm:$0xff] %v651
    %s654 = scalar_lea.vmem [#allocation9], 40
    %655 = vst [vmem:[%s654] sm:$0xff] %v651
    %v656 = vld [vmem:[#allocation2] sm:$0xff]
    %v657 = vld [vmem:[#allocation3] sm:$0xff]
    %s658 = scalar_lea.vmem [#allocation4], 48
    %v659 = vld [vmem:[%s658] sm:$0xff]
    %v660 = vld [vmem:[#allocation7] sm:$0xff]
    %v661 = vld [vmem:[#allocation7 + $0x8] sm:$0xff]
    %v662 = vld [vmem:[#allocation7 + $0x10] sm:$0xff]
    %v663 = vld [vmem:[#allocation7 + $0x18] sm:$0xff]
    %v664 = vld [vmem:[#allocation7 + $0x20] sm:$0xff]
    %v665 = vld [vmem:[#allocation7 + $0x28] sm:$0xff]
    %v666 = vld [vmem:[#allocation7 + $0x30] sm:$0xff]
    %v667 = vld [vmem:[#allocation7 + $0x38] sm:$0xff]
    %v668 = vld [vmem:[#allocation7 + $0x40] sm:$0xff]
    %v669 = vld [vmem:[#allocation7 + $0x48] sm:$0xff]
    %v670 = vld [vmem:[#allocation7 + $0x50] sm:$0xff]
    %v671 = vld [vmem:[#allocation7 + $0x58] sm:$0xff]
    %v672 = vld [vmem:[#allocation7 + $0x60] sm:$0xff]
    %v673 = vld [vmem:[#allocation7 + $0x68] sm:$0xff]
    %v674 = vld [vmem:[#allocation7 + $0x70] sm:$0xff]
    %v675 = vld [vmem:[#allocation7 + $0x78] sm:$0xff]
    %676 = vmatprep.subr.mxu0 0.0
    %677 = vmatpush1.msra.mxu0 %v660
    %678 = vmatprep.subr.mxu0 0.0
    %679 = vmatpush1.msra.mxu0 %v661
    %680 = vmatprep.subr.mxu0 0.0
    %681 = vmatpush1.msra.mxu0 %v662
    %682 = vmatprep.subr.mxu0 0.0
    %683 = vmatpush1.msra.mxu0 %v663
    %684 = vmatprep.subr.mxu0 0.0
    %685 = vmatpush1.msra.mxu0 %v664
    %686 = vmatprep.subr.mxu0 0.0
    %687 = vmatpush1.msra.mxu0 %v665
    %688 = vmatprep.subr.mxu0 0.0
    %689 = vmatpush1.msra.mxu0 %v666
    %690 = vmatprep.subr.mxu0 0.0
    %691 = vmatpush1.msra.mxu0 %v667
    %692 = vmatprep.subr.mxu0 0.0
    %693 = vmatpush1.msra.mxu0 %v668
    %694 = vmatprep.subr.mxu0 0.0
    %695 = vmatpush1.msra.mxu0 %v669
    %696 = vmatprep.subr.mxu0 0.0
    %697 = vmatpush1.msra.mxu0 %v670
    %698 = vmatprep.subr.mxu0 0.0
    %699 = vmatpush1.msra.mxu0 %v671
    %700 = vmatprep.subr.mxu0 0.0
    %701 = vmatpush1.msra.mxu0 %v672
    %702 = vmatprep.subr.mxu0 0.0
    %703 = vmatpush1.msra.mxu0 %v673
    %704 = vmatprep.subr.mxu0 0.0
    %705 = vmatpush1.msra.mxu0 %v674
    %706 = vmatprep.subr.mxu0 0.0
    %707 = vmatpush1.msra.mxu0 %v675
    %708 = vmatprep.subr.mxu0 0.0
    %709 = vmatpush1.msra.mxu0 0.0
    %710 = vmatprep.subr.mxu0 0.0
    %711 = vmatpush1.msra.mxu0 0.0
    %712 = vmatprep.subr.mxu0 0.0
    %713 = vmatpush1.msra.mxu0 0.0
    %714 = vmatprep.subr.mxu0 0.0
    %715 = vmatpush1.msra.mxu0 0.0
    %716 = vmatprep.subr.mxu0 0.0
    %717 = vmatpush1.msra.mxu0 0.0
    %718 = vmatprep.subr.mxu0 0.0
    %719 = vmatpush1.msra.mxu0 0.0
    %720 = vmatprep.subr.mxu0 0.0
    %721 = vmatpush1.msra.mxu0 0.0
    %722 = vmatprep.subr.mxu0 0.0
    %723 = vmatpush1.msra.mxu0 0.0
    %724 = vmatprep.subr.mxu0 0.0
    %725 = vmatpush1.msra.mxu0 0.0
    %726 = vmatprep.subr.mxu0 0.0
    %727 = vmatpush1.msra.mxu0 0.0
    %728 = vmatprep.subr.mxu0 0.0
    %729 = vmatpush1.msra.mxu0 0.0
    %730 = vmatprep.subr.mxu0 0.0
    %731 = vmatpush1.msra.mxu0 0.0
    %732 = vmatprep.subr.mxu0 0.0
    %733 = vmatpush1.msra.mxu0 0.0
    %734 = vmatprep.subr.mxu0 0.0
    %735 = vmatpush1.msra.mxu0 0.0
    %736 = vmatprep.subr.mxu0 0.0
    %737 = vmatpush1.msra.mxu0 0.0
    %738 = vmatprep.subr.mxu0 0.0
    %739 = vmatpush1.msra.mxu0 0.0
    %740 = vmatprep.mubr.f32.mxu0 0.0
    %741 = vmatmul.mubr.f32.gmra.mrb[0].mxu0 %v657
    %v742 = vpop.f32.mrb[0].mxu0
    %v743 = vadd.f32 0.0, %v742
    %v744 = vpop.f32.mrb[0].mxu0
    %745 = vdwg.mxu0
    %v746 = vadd.f32 %v659, %v743
    %vm747 = vcmp.gt.f32.partialorder %v657, 0.0
    %v748 = vmul.f32 %v656, 0.3
    %v749 = vsel %vm747, 0.0, %v748
    %v750 = vadd.f32 %v746, %v749
    %vm751 = vcmp.gt.f32.partialorder %v750, 0.5
    %v752 = vsel %vm751, 1, 0
    %v753 = vcvt.s32.f32 %v752
    %754 = vst [vmem:[#allocation2] sm:$0xff] %v750
    %755 = vst [vmem:[#allocation3] sm:$0xff] %v753
    %s756 = scalar_lea.vmem [#allocation9], 48
    %757 = vst [vmem:[%s756] sm:$0xff] %v753
    %v758 = vld [vmem:[#allocation2] sm:$0xff]
    %v759 = vld [vmem:[#allocation3] sm:$0xff]
    %s760 = scalar_lea.vmem [#allocation4], 56
    %v761 = vld [vmem:[%s760] sm:$0xff]
    %v762 = vld [vmem:[#allocation7] sm:$0xff]
    %v763 = vld [vmem:[#allocation7 + $0x8] sm:$0xff]
    %v764 = vld [vmem:[#allocation7 + $0x10] sm:$0xff]
    %v765 = vld [vmem:[#allocation7 + $0x18] sm:$0xff]
    %v766 = vld [vmem:[#allocation7 + $0x20] sm:$0xff]
    %v767 = vld [vmem:[#allocation7 + $0x28] sm:$0xff]
    %v768 = vld [vmem:[#allocation7 + $0x30] sm:$0xff]
    %v769 = vld [vmem:[#allocation7 + $0x38] sm:$0xff]
    %v770 = vld [vmem:[#allocation7 + $0x40] sm:$0xff]
    %v771 = vld [vmem:[#allocation7 + $0x48] sm:$0xff]
    %v772 = vld [vmem:[#allocation7 + $0x50] sm:$0xff]
    %v773 = vld [vmem:[#allocation7 + $0x58] sm:$0xff]
    %v774 = vld [vmem:[#allocation7 + $0x60] sm:$0xff]
    %v775 = vld [vmem:[#allocation7 + $0x68] sm:$0xff]
    %v776 = vld [vmem:[#allocation7 + $0x70] sm:$0xff]
    %v777 = vld [vmem:[#allocation7 + $0x78] sm:$0xff]
    %778 = vmatprep.subr.mxu0 0.0
    %779 = vmatpush1.msra.mxu0 %v762
    %780 = vmatprep.subr.mxu0 0.0
    %781 = vmatpush1.msra.mxu0 %v763
    %782 = vmatprep.subr.mxu0 0.0
    %783 = vmatpush1.msra.mxu0 %v764
    %784 = vmatprep.subr.mxu0 0.0
    %785 = vmatpush1.msra.mxu0 %v765
    %786 = vmatprep.subr.mxu0 0.0
    %787 = vmatpush1.msra.mxu0 %v766
    %788 = vmatprep.subr.mxu0 0.0
    %789 = vmatpush1.msra.mxu0 %v767
    %790 = vmatprep.subr.mxu0 0.0
    %791 = vmatpush1.msra.mxu0 %v768
    %792 = vmatprep.subr.mxu0 0.0
    %793 = vmatpush1.msra.mxu0 %v769
    %794 = vmatprep.subr.mxu0 0.0
    %795 = vmatpush1.msra.mxu0 %v770
    %796 = vmatprep.subr.mxu0 0.0
    %797 = vmatpush1.msra.mxu0 %v771
    %798 = vmatprep.subr.mxu0 0.0
    %799 = vmatpush1.msra.mxu0 %v772
    %800 = vmatprep.subr.mxu0 0.0
    %801 = vmatpush1.msra.mxu0 %v773
    %802 = vmatprep.subr.mxu0 0.0
    %803 = vmatpush1.msra.mxu0 %v774
    %804 = vmatprep.subr.mxu0 0.0
    %805 = vmatpush1.msra.mxu0 %v775
    %806 = vmatprep.subr.mxu0 0.0
    %807 = vmatpush1.msra.mxu0 %v776
    %808 = vmatprep.subr.mxu0 0.0
    %809 = vmatpush1.msra.mxu0 %v777
    %810 = vmatprep.subr.mxu0 0.0
    %811 = vmatpush1.msra.mxu0 0.0
    %812 = vmatprep.subr.mxu0 0.0
    %813 = vmatpush1.msra.mxu0 0.0
    %814 = vmatprep.subr.mxu0 0.0
    %815 = vmatpush1.msra.mxu0 0.0
    %816 = vmatprep.subr.mxu0 0.0
    %817 = vmatpush1.msra.mxu0 0.0
    %818 = vmatprep.subr.mxu0 0.0
    %819 = vmatpush1.msra.mxu0 0.0
    %820 = vmatprep.subr.mxu0 0.0
    %821 = vmatpush1.msra.mxu0 0.0
    %822 = vmatprep.subr.mxu0 0.0
    %823 = vmatpush1.msra.mxu0 0.0
    %824 = vmatprep.subr.mxu0 0.0
    %825 = vmatpush1.msra.mxu0 0.0
    %826 = vmatprep.subr.mxu0 0.0
    %827 = vmatpush1.msra.mxu0 0.0
    %828 = vmatprep.subr.mxu0 0.0
    %829 = vmatpush1.msra.mxu0 0.0
    %830 = vmatprep.subr.mxu0 0.0
    %831 = vmatpush1.msra.mxu0 0.0
    %832 = vmatprep.subr.mxu0 0.0
    %833 = vmatpush1.msra.mxu0 0.0
    %834 = vmatprep.subr.mxu0 0.0
    %835 = vmatpush1.msra.mxu0 0.0
    %836 = vmatprep.subr.mxu0 0.0
    %837 = vmatpush1.msra.mxu0 0.0
    %838 = vmatprep.subr.mxu0 0.0
    %839 = vmatpush1.msra.mxu0 0.0
    %840 = vmatprep.subr.mxu0 0.0
    %841 = vmatpush1.msra.mxu0 0.0
    %842 = vmatprep.mubr.f32.mxu0 0.0
    %843 = vmatmul.mubr.f32.gmra.mrb[0].mxu0 %v759
    %v844 = vpop.f32.mrb[0].mxu0
    %v845 = vadd.f32 0.0, %v844
    %v846 = vpop.f32.mrb[0].mxu0
    %847 = vdwg.mxu0
    %v848 = vadd.f32 %v761, %v845
    %vm849 = vcmp.gt.f32.partialorder %v759, 0.0
    %v850 = vmul.f32 %v758, 0.3
    %v851 = vsel %vm849, 0.0, %v850
    %v852 = vadd.f32 %v848, %v851
    %vm853 = vcmp.gt.f32.partialorder %v852, 0.5
    %v854 = vsel %vm853, 1, 0
    %v855 = vcvt.s32.f32 %v854
    %856 = vst [vmem:[#allocation2] sm:$0xff] %v852
    %857 = vst [vmem:[#allocation3] sm:$0xff] %v855
    %s858 = scalar_lea.vmem [#allocation9], 56
    %859 = vst [vmem:[%s858] sm:$0xff] %v855
    // Predicated region
    $region22: #{tpu_custom_call.1} parent=1 // pred_check
      _
    $region23: #{tpu_custom_call.1} parent=1 // pred_check_branch
      %861 = sbr.rel (0) target = $region25
    $region24: #{tpu_custom_call.1} parent=1 // pred_region
      %s863 = ssub.s32 1024, 1024
      %864 = vsyncadd [#allocation6], %s863
      %s865 = sshll.u32 [#allocation9], 4
      %s866 = int_to_ptr.vmem [resolvable:$true] %s865
      %871 = dma.vmem_to_hbm [thread:$0]  %s866, 1024, %s2, [#allocation6], 128, 128, 8
    $region25: #{tpu_custom_call.1} parent=1 // pred_fallthru
      _
    // Predicated region
    $region26: #{tpu_custom_call.1} parent=1 // pred_check
      _
    $region27: #{tpu_custom_call.1} parent=1 // pred_check_branch
      %873 = sbr.rel (0) target = $region29
    $region28: #{tpu_custom_call.1} parent=1 // pred_region
      %874 = dma.done [#allocation6], 1024
    $region29: #{tpu_custom_call.1} parent=1 // pred_fallthru
      _
    %875 = vsyncpa [#allocation5], 1
    %876 = vsyncpa [#allocation8], 1
    %877 = vsyncpa [#allocation6], 1

</llo_original>
